<compile_context>
chip_gen: v5e
topology: v5e:2x2
jax: 0.10.0
libtpu: 0.0.40
codegen_flags: <defaults>
</compile_context>

<pallas_src>
import jax
import jax.numpy as jnp
import numpy as np
from jax.experimental import pallas as pl
from jax.experimental.pallas import tpu as pltpu

TIME_STEP_NUM = 3
EPS = 1e-4          # eps used by `normalize` in the reference module
NUM_PRED_CLS = 51   # output dim of fc_output_proj_img_pred
PAD_OUT = 128       # lane-dense padded output width (sliced back to 51 outside)


# ---------------------------------------------------------------------------
# Small shared helpers (used both in-kernel and by the pure-JAX reference).
# ---------------------------------------------------------------------------
def _round_up(x, m):
    return (x + m - 1) // m * m


def _pick_tile(n):
    """Largest row-tile in {512, 256, 128} dividing n (n is a multiple of 128)."""
    for t in (512, 256, 128):
        if n % t == 0:
            return t
    return n


def _relu(x):
    return jnp.maximum(x, 0.0)


def _dot_bf16(a, b):
    # MXU-native bf16 operands, f32 accumulation.
    return jnp.dot(a.astype(jnp.bfloat16), b.astype(jnp.bfloat16),
                   preferred_element_type=jnp.float32)


def _dot_f32(a, b):
    # f32 matmul (used for the 1/deg-weighted adjacency aggregation).
    return jnp.dot(a, b, preferred_element_type=jnp.float32)


def _normalize(x):
    # reference `normalize`: clamps the *squared* sum at EPS, then sqrt.
    ss = jnp.sum(x * x, axis=-1, keepdims=True)
    return x * jax.lax.rsqrt(jnp.maximum(ss, EPS))


# ---------------------------------------------------------------------------
# Pallas kernel.  All arrays are fully VMEM-resident (grid=()); the per-step
# row-independent math is tiled over rows via in-kernel loops so the big f32
# gate intermediates only exist one tile at a time.
# ---------------------------------------------------------------------------
def ggnn_kernel(*refs):
    (obj_ref, vr_ref, adj_p2e_ref, adj_e2p_ref,
     ws1, bs1, ws2, bs2,                       # send MLPs        [0]=ent, [1]=pred
     wr1a, wr1b, br1, wr2, br2,                # receive MLPs, layer-1 split
     wgw, bgw, wgu, bgu, wguh, bguh,           # fused GRU weights
     wo1, bo1, wo2, bo2,                       # output projection (padded)
     out_ref,
     ne_s, npd_s, ms_e_s, ms_p_s, in_e_s, in_p_s) = refs

    E_pad, H = ne_s.shape
    P_pad = npd_s.shape[0]
    tile_e = _pick_tile(E_pad)
    tile_p = _pick_tile(P_pad)

    # Initialize recurrent states from the inputs (only data loaded eagerly).
    ne_s[...] = obj_ref[...]
    npd_s[...] = vr_ref[...]

    def for_row_tiles(n_rows, tile, body):
        @pl.loop(0, n_rows // tile)
        def _(t):
            body(pl.multiple_of(t * tile, tile))

    def send_tile(state_ref, ms_ref, i, r0, tile):
        x = state_ref[pl.ds(r0, tile), :]                      # (tile, H) f32
        h = _relu(_dot_bf16(x, ws1[i]) + bs1[i])               # (tile, H/2)
        ms_ref[pl.ds(r0, tile), :] = _relu(_dot_bf16(h, ws2[i]) + bs2[i])  # (tile, H/4)

    def recv_gru_tile(state_ref, in_ref, n_pad, i, r0, tile):
        xs = in_ref[pl.ds(r0, tile), :]                        # subject half
        xo = in_ref[pl.ds(n_pad + r0, tile), :]                # object half
        # concat([xs, xo], -1) @ wr1  ==  xs @ wr1[:H//4] + xo @ wr1[H//4:]
        h1 = _relu(_dot_bf16(xs, wr1a[i]) + _dot_bf16(xo, wr1b[i]) + br1[i])
        mr = _relu(_dot_bf16(h1, wr2[i]) + br2[i])             # (tile, H)
        st = state_ref[pl.ds(r0, tile), :]                     # (tile, H)
        gw = _dot_bf16(mr, wgw[i]) + bgw[i]                    # (tile, 3H): [z | r | h]
        gu = _dot_bf16(st, wgu[i]) + bgu[i]                    # (tile, 2H): [z | r]
        z = jax.nn.sigmoid(gw[:, :H] + gu[:, :H])
        r = jax.nn.sigmoid(gw[:, H:2 * H] + gu[:, H:])
        h = jnp.tanh(gw[:, 2 * H:] + _dot_bf16(r * st, wguh[i]) + bguh[i])
        state_ref[pl.ds(r0, tile), :] = (1.0 - z) * st + z * h

    # ---- time-step recurrence: traced loop, state lives in VMEM scratch ----
    @pl.loop(0, TIME_STEP_NUM)
    def _(step):
        # message send (row-tiled, row independent)
        for_row_tiles(E_pad, tile_e,
                      lambda r0: send_tile(ne_s, ms_e_s, 0, r0, tile_e))
        for_row_tiles(P_pad, tile_p,
                      lambda r0: send_tile(npd_s, ms_p_s, 1, r0, tile_p))

        # edge aggregation: the only row-coupling ops; f32 for 1/deg fidelity
        in_e_s[...] = _normalize(_dot_f32(adj_p2e_ref[...], ms_p_s[...]))  # (2E, H/4)
        in_p_s[...] = _normalize(_dot_f32(adj_e2p_ref[...], ms_e_s[...]))  # (2P, H/4)

        # message receive + GRU update (row-tiled, in-place state update)
        for_row_tiles(E_pad, tile_e,
                      lambda r0: recv_gru_tile(ne_s, in_e_s, E_pad, 0, r0, tile_e))
        for_row_tiles(P_pad, tile_p,
                      lambda r0: recv_gru_tile(npd_s, in_p_s, P_pad, 1, r0, tile_p))

    # ---- fc_output_proj_img_pred: Linear->ReLU->Linear, lane-dense padded ----
    def out_tile(r0):
        x = npd_s[pl.ds(r0, tile_p), :]
        h = _relu(_dot_bf16(x, wo1[...]) + bo1[...])
        out_ref[pl.ds(r0, tile_p), :] = (
            _dot_bf16(h, wo2[...]) + bo2[...]).astype(out_ref.dtype)

    for_row_tiles(P_pad, tile_p, out_tile)


# ---------------------------------------------------------------------------
# Input preparation: padding + dense stacked adjacency (matches the scatter +
# column-normalization done in GGNN.forward).  Padded rows/cols are zero, so
# they never influence real rows.
# ---------------------------------------------------------------------------
def prepare_inputs(rel_inds, obj_fmaps, vr):
    E, H = obj_fmaps.shape
    P = rel_inds.shape[0]
    E_pad = _round_up(max(E, 1), 128)
    P_pad = _round_up(max(P, 1), 128)

    obj_pad = jnp.zeros((E_pad, H), jnp.float32).at[:E, :].set(obj_fmaps)
    vr_pad = jnp.zeros((P_pad, H), jnp.float32).at[:P, :].set(vr)

    rows = jnp.arange(P)
    p2s = jnp.zeros((P_pad, E_pad), jnp.float32).at[rows, rel_inds[:, 0]].set(1.0)
    p2o = jnp.zeros((P_pad, E_pad), jnp.float32).at[rows, rel_inds[:, 1]].set(1.0)
    p2s_n = p2s / jnp.maximum(p2s.sum(axis=0, keepdims=True), 1.0)
    p2o_n = p2o / jnp.maximum(p2o.sum(axis=0, keepdims=True), 1.0)
    # entity-incoming uses the normalized transposes; pred-incoming the raw ones.
    adj_p2e = jnp.concatenate([p2s_n.T, p2o_n.T], axis=0)   # (2*E_pad, P_pad) f32
    adj_e2p = jnp.concatenate([p2s, p2o], axis=0)           # (2*P_pad, E_pad) f32
    return obj_pad, vr_pad, adj_p2e, adj_e2p, E_pad, P_pad


def _vmem_limit_bytes(inputs, E_pad, P_pad, H):
    """Generation-aware VMEM request: real footprint + tile intermediates."""
    resident = sum(int(np.prod(x.shape)) * x.dtype.itemsize for x in inputs)
    resident += P_pad * PAD_OUT * 4                      # padded output
    resident += (E_pad + P_pad) * H * 4                  # recurrent state scratch
    resident += 3 * (E_pad + P_pad) * (H // 4) * 4       # ms + stacked incoming scratch
    tile = max(_pick_tile(E_pad), _pick_tile(P_pad))
    # per-tile f32 intermediates: gates (3H + 2H), mr (H), new state (H),
    # receive hidden (3H/4), send hidden (H/2); x2 for scheduling overlap.
    per_tile = tile * (3 * H + 2 * H + H + H + 3 * H // 4 + H // 2) * 4
    needed = resident + 2 * per_tile + (4 << 20)
    try:
        cap = int(getattr(pltpu.get_tpu_info(), "vmem_capacity_bytes", 128 << 20))
    except Exception:
        cap = 128 << 20
    limit = min(needed, cap - (12 << 20))   # leave compiler headroom (v7x: 64 MiB total)
    return int(max(limit, 16 << 20))


def ggnn_forward(rel_inds, ent_cls_logits, obj_fmaps, vr, params):
    """Pallas implementation of GGNN.forward (refine_obj_cls=False)."""
    _, H = obj_fmaps.shape
    P = rel_inds.shape[0]

    obj_pad, vr_pad, adj_p2e, adj_e2p, E_pad, P_pad = prepare_inputs(
        rel_inds, obj_fmaps, vr)
    inputs = (obj_pad, vr_pad, adj_p2e, adj_e2p) + tuple(params)

    scratch = [
        pltpu.VMEM((E_pad, H), jnp.float32),            # entity state
        pltpu.VMEM((P_pad, H), jnp.float32),            # predicate state
        pltpu.VMEM((E_pad, H // 4), jnp.float32),       # ms_e
        pltpu.VMEM((P_pad, H // 4), jnp.float32),       # ms_p
        pltpu.VMEM((2 * E_pad, H // 4), jnp.float32),   # stacked incoming (ent)
        pltpu.VMEM((2 * P_pad, H // 4), jnp.float32),   # stacked incoming (pred)
    ]

    padded_logits = pl.pallas_call(
        ggnn_kernel,
        out_shape=jax.ShapeDtypeStruct((P_pad, PAD_OUT), jnp.float32),
        in_specs=[pl.BlockSpec(memory_space=pltpu.MemorySpace.VMEM)] * len(inputs),
        out_specs=pl.BlockSpec(memory_space=pltpu.MemorySpace.VMEM),
        scratch_shapes=scratch,
        compiler_params=pltpu.CompilerParams(
            vmem_limit_bytes=_vmem_limit_bytes(inputs, E_pad, P_pad, H)),
    )(*inputs)

    # refine_obj_cls=False -> entity logits returned unchanged.
    return padded_logits[:P, :NUM_PRED_CLS], ent_cls_logits


# ---------------------------------------------------------------------------
# Pure-JAX reference with identical math (bf16-operand MLP/GRU dots, f32
# aggregation) for the correctness check.
# ---------------------------------------------------------------------------
def _reference_math(ne, npd, adj_p2e, adj_e2p, params):
    (ws1, bs1, ws2, bs2, wr1a, wr1b, br1, wr2, br2,
     wgw, bgw, wgu, bgu, wguh, bguh, wo1, bo1, wo2, bo2) = params
    H = ne.shape[1]
    E_pad = ne.shape[0]
    P_pad = npd.shape[0]

    def send(x, i):
        h = _relu(_dot_bf16(x, ws1[i]) + bs1[i])
        return _relu(_dot_bf16(h, ws2[i]) + bs2[i])

    def recv(xs, xo, i):
        h = _relu(_dot_bf16(xs, wr1a[i]) + _dot_bf16(xo, wr1b[i]) + br1[i])
        return _relu(_dot_bf16(h, wr2[i]) + br2[i])

    def gru(st, mr, i):
        gw = _dot_bf16(mr, wgw[i]) + bgw[i]
        gu = _dot_bf16(st, wgu[i]) + bgu[i]
        z = jax.nn.sigmoid(gw[:, :H] + gu[:, :H])
        r = jax.nn.sigmoid(gw[:, H:2 * H] + gu[:, H:])
        h = jnp.tanh(gw[:, 2 * H:] + _dot_bf16(r * st, wguh[i]) + bguh[i])
        return (1.0 - z) * st + z * h

    for _ in range(TIME_STEP_NUM):
        ms_e = send(ne, 0)
        ms_p = send(npd, 1)
        in_e = _normalize(_dot_f32(adj_p2e, ms_p))
        in_p = _normalize(_dot_f32(adj_e2p, ms_e))
        ne = gru(ne, recv(in_e[:E_pad], in_e[E_pad:], 0), 0)
        npd = gru(npd, recv(in_p[:P_pad], in_p[P_pad:], 1), 1)

    h = _relu(_dot_bf16(npd, wo1) + bo1)
    return _dot_bf16(h, wo2) + bo2


def ggnn_reference(rel_inds, ent_cls_logits, obj_fmaps, vr, params):
    P = rel_inds.shape[0]
    obj_pad, vr_pad, adj_p2e, adj_e2p, _, _ = prepare_inputs(rel_inds, obj_fmaps, vr)
    padded = _reference_math(obj_pad, vr_pad, adj_p2e, adj_e2p, params)
    return padded[:P, :NUM_PRED_CLS]


# ---------------------------------------------------------------------------
# Deterministic parameter init (PyTorch-Linear-style uniform, fixed seed),
# with GRU-gate fusion, receive-layer split and output padding done once here.
# ---------------------------------------------------------------------------
def init_linear(key, fan_in, fan_out):
    kw, kb = jax.random.split(key)
    bound = 1.0 / np.sqrt(fan_in)
    w = jax.random.uniform(kw, (fan_in, fan_out), jnp.float32, -bound, bound)
    b = jax.random.uniform(kb, (fan_out,), jnp.float32, -bound, bound)
    return w, b


def make_params(hidden_dim, key):
    H = hidden_dim
    keys = iter(jax.random.split(key, 32))
    lin = lambda fi, fo: init_linear(next(keys), fi, fo)
    wdt = jnp.bfloat16   # matmul operand dtype (cast once here); biases stay f32

    # send MLPs [H, H/2, H/4] and receive MLPs [H/2, 3H/4, H]; [0]=ent, [1]=pred
    ws1, bs1, ws2, bs2 = [], [], [], []
    wr1a, wr1b, br1, wr2, br2 = [], [], [], [], []
    for _ in range(2):
        w1, b1 = lin(H, H // 2)
        w2, b2 = lin(H // 2, H // 4)
        ws1.append(w1); bs1.append(b1[None]); ws2.append(w2); bs2.append(b2[None])
        r1, rb1 = lin(H // 2, 3 * H // 4)
        r2, rb2 = lin(3 * H // 4, H)
        wr1a.append(r1[:H // 4]); wr1b.append(r1[H // 4:])
        br1.append(rb1[None]); wr2.append(r2); br2.append(rb2[None])

    # GRU gates fused: W = [Wz|Wr|Wh] on messages, U = [Uz|Ur] on state, Uh separate
    wgw, bgw, wgu, bgu, wguh, bguh = [], [], [], [], [], []
    for _ in range(2):
        w3w, b3w = lin(H, H); w3u, b3u = lin(H, H)   # eq3 (z)
        w4w, b4w = lin(H, H); w4u, b4u = lin(H, H)   # eq4 (r)
        w5w, b5w = lin(H, H); w5u, b5u = lin(H, H)   # eq5 (h)
        wgw.append(jnp.concatenate([w3w, w4w, w5w], axis=1))
        bgw.append(jnp.concatenate([b3w, b4w, b5w])[None])
        wgu.append(jnp.concatenate([w3u, w4u], axis=1))
        bgu.append(jnp.concatenate([b3u, b4u])[None])
        wguh.append(w5u); bguh.append(b5u[None])

    # output projection MLP for predicates: [H, H, 51], padded to PAD_OUT lanes
    wo1, bo1 = lin(H, H)
    wo2, bo2 = lin(H, NUM_PRED_CLS)
    wo2p = jnp.zeros((H, PAD_OUT), jnp.float32).at[:, :NUM_PRED_CLS].set(wo2)
    bo2p = jnp.zeros((1, PAD_OUT), jnp.float32).at[:, :NUM_PRED_CLS].set(bo2)

    W = lambda xs: jnp.stack(xs).astype(wdt)
    B = lambda xs: jnp.stack(xs)
    return (W(ws1), B(bs1), W(ws2), B(bs2),
            W(wr1a), W(wr1b), B(br1), W(wr2), B(br2),
            W(wgw), B(bgw), W(wgu), B(bgu), W(wguh), B(bguh),
            wo1.astype(wdt), bo1[None], wo2p.astype(wdt), bo2p)


if __name__ == "__main__":
    H = 32          # hidden_dim (small for the demo; module default is 512)
    E = 8           # num_img_ent
    P = 16          # num_img_pred

    root = jax.random.PRNGKey(0)
    k_rel, k_ent, k_obj, k_vr, k_par = jax.random.split(root, 5)

    rel_inds = jax.random.randint(k_rel, (P, 2), 0, E, dtype=jnp.int32)
    ent_cls_logits = jax.random.normal(k_ent, (E, 151), jnp.float32)
    obj_fmaps = jax.random.normal(k_obj, (E, H), jnp.float32)
    vr = jax.random.normal(k_vr, (P, H), jnp.float32)

    params = make_params(H, k_par)

    fwd = jax.jit(ggnn_forward)
    pred_logits, ent_logits_out = fwd(rel_inds, ent_cls_logits, obj_fmaps, vr, params)
    pred_logits = jax.block_until_ready(pred_logits)

    # Correctness check against a pure-JAX reference of the same (bf16-operand,
    # f32-aggregation) math; tolerance loosened for MXU accumulation order.
    ref = jax.block_until_ready(
        ggnn_reference(rel_inds, ent_cls_logits, obj_fmaps, vr, params))
    np.testing.assert_allclose(np.asarray(pred_logits), np.asarray(ref),
                               rtol=1e-2, atol=1e-2)
    assert pred_logits.shape == (P, NUM_PRED_CLS)
    assert ent_logits_out.shape == (E, 151)

    print("KERNEL_OK")
</pallas_src>

<mosaic_0001>
module attributes {stable_mosaic.version = 11 : i64} {
  func.func @ggnn_kernel(%arg0: memref<128x32xf32, #tpu.memory_space<vmem>>, %arg1: memref<128x32xf32, #tpu.memory_space<vmem>>, %arg2: memref<256x128xf32, #tpu.memory_space<vmem>>, %arg3: memref<256x128xf32, #tpu.memory_space<vmem>>, %arg4: memref<2x32x16xbf16, #tpu.memory_space<vmem>>, %arg5: memref<2x1x16xf32, #tpu.memory_space<vmem>>, %arg6: memref<2x16x8xbf16, #tpu.memory_space<vmem>>, %arg7: memref<2x1x8xf32, #tpu.memory_space<vmem>>, %arg8: memref<2x8x24xbf16, #tpu.memory_space<vmem>>, %arg9: memref<2x8x24xbf16, #tpu.memory_space<vmem>>, %arg10: memref<2x1x24xf32, #tpu.memory_space<vmem>>, %arg11: memref<2x24x32xbf16, #tpu.memory_space<vmem>>, %arg12: memref<2x1x32xf32, #tpu.memory_space<vmem>>, %arg13: memref<2x32x96xbf16, #tpu.memory_space<vmem>>, %arg14: memref<2x1x96xf32, #tpu.memory_space<vmem>>, %arg15: memref<2x32x64xbf16, #tpu.memory_space<vmem>>, %arg16: memref<2x1x64xf32, #tpu.memory_space<vmem>>, %arg17: memref<2x32x32xbf16, #tpu.memory_space<vmem>>, %arg18: memref<2x1x32xf32, #tpu.memory_space<vmem>>, %arg19: memref<32x32xbf16, #tpu.memory_space<vmem>>, %arg20: memref<1x32xf32, #tpu.memory_space<vmem>>, %arg21: memref<32x128xbf16, #tpu.memory_space<vmem>>, %arg22: memref<1x128xf32, #tpu.memory_space<vmem>>, %arg23: memref<128x128xf32, #tpu.memory_space<vmem>>, %arg24: memref<128x32xf32, #tpu.memory_space<vmem>>, %arg25: memref<128x32xf32, #tpu.memory_space<vmem>>, %arg26: memref<128x8xf32, #tpu.memory_space<vmem>>, %arg27: memref<128x8xf32, #tpu.memory_space<vmem>>, %arg28: memref<256x8xf32, #tpu.memory_space<vmem>>, %arg29: memref<256x8xf32, #tpu.memory_space<vmem>>) attributes {dimension_semantics = [], scalar_prefetch = 0 : i64, scratch_operands = 6 : i64, tpu.core_type = #tpu.core_type<tc>} {
    %c0 = arith.constant 0 : index
    %c0_0 = arith.constant 0 : index
    %0 = vector.load %arg0[%c0, %c0_0] : memref<128x32xf32, #tpu.memory_space<vmem>>, vector<128x32xf32>
    %c0_1 = arith.constant 0 : index
    %c0_2 = arith.constant 0 : index
    %1 = vector.load %arg24[%c0_1, %c0_2] : memref<128x32xf32, #tpu.memory_space<vmem>>, vector<128x32xf32>
    tpu.vector_store %arg24[%c0_1, %c0_2], %0 {strides = array<i32>} : memref<128x32xf32, #tpu.memory_space<vmem>>, vector<128x32xf32>,
    %c0_3 = arith.constant 0 : index
    %c0_4 = arith.constant 0 : index
    %2 = vector.load %arg1[%c0_3, %c0_4] : memref<128x32xf32, #tpu.memory_space<vmem>>, vector<128x32xf32>
    %c0_5 = arith.constant 0 : index
    %c0_6 = arith.constant 0 : index
    %3 = vector.load %arg25[%c0_5, %c0_6] : memref<128x32xf32, #tpu.memory_space<vmem>>, vector<128x32xf32>
    tpu.vector_store %arg25[%c0_5, %c0_6], %2 {strides = array<i32>} : memref<128x32xf32, #tpu.memory_space<vmem>>, vector<128x32xf32>,
    %c0_i32 = arith.constant 0 : i32
    %c3_i32 = arith.constant 3 : i32
    %4 = arith.addi %c0_i32, %c3_i32 : i32
    %c1_i32 = arith.constant 1 : i32
    scf.for %arg30 = %c0_i32 to %4 step %c1_i32  : i32 {
      %c0_i32_23 = arith.constant 0 : i32
      %c1_i32_24 = arith.constant 1 : i32
      %27 = arith.muli %c0_i32_23, %c1_i32_24 : i32
      %c0_i32_25 = arith.constant 0 : i32
      %28 = arith.addi %c0_i32_25, %27 : i32
      %c128_i32_26 = arith.constant 128 : i32
      %29 = arith.muli %28, %c128_i32_26 : i32
      %30 = tpu.assume_multiple %29, 128 : i32
      %31 = arith.index_cast %30 : i32 to index
      %c0_27 = arith.constant 0 : index
      %32 = vector.load %arg24[%31, %c0_27] : memref<128x32xf32, #tpu.memory_space<vmem>>, vector<128x32xf32>
      %c0_28 = arith.constant 0 : index
      %c0_29 = arith.constant 0 : index
      %c0_30 = arith.constant 0 : index
      %33 = vector.load %arg4[%c0_28, %c0_29, %c0_30] : memref<2x32x16xbf16, #tpu.memory_space<vmem>>, vector<1x32x16xbf16>
      %34 = vector.shape_cast %33 : vector<1x32x16xbf16> to vector<32x16xbf16>
      %35 = arith.truncf %32 : vector<128x32xf32> to vector<128x32xbf16>
      %cst_31 = arith.constant dense<0.000000e+00> : vector<128x16xf32>
      %36 = tpu.matmul %35, %34, %cst_31 {dimension_numbers = #tpu.dot_dimension_numbers<[1], [0], [0], [1], [0, 0, 1, 1], [], []>} : vector<128x32xbf16>, vector<32x16xbf16>, vector<128x16xf32> -> vector<128x16xf32>
      %c0_32 = arith.constant 0 : index
      %c0_33 = arith.constant 0 : index
      %c0_34 = arith.constant 0 : index
      %37 = vector.load %arg5[%c0_32, %c0_33, %c0_34] : memref<2x1x16xf32, #tpu.memory_space<vmem>>, vector<1x1x16xf32>
      %38 = vector.shape_cast %37 : vector<1x1x16xf32> to vector<1x16xf32>
      %39 = vector.broadcast %38 : vector<1x16xf32> to vector<128x16xf32>
      %40 = arith.addf %36, %39 : vector<128x16xf32>
      %cst_35 = arith.constant 0.000000e+00 : f32
      %41 = vector.broadcast %cst_35 : f32 to vector<128x16xf32>
      %42 = arith.maximumf %40, %41 : vector<128x16xf32>
      %c0_36 = arith.constant 0 : index
      %c0_37 = arith.constant 0 : index
      %c0_38 = arith.constant 0 : index
      %43 = vector.load %arg6[%c0_36, %c0_37, %c0_38] : memref<2x16x8xbf16, #tpu.memory_space<vmem>>, vector<1x16x8xbf16>
      %44 = vector.shape_cast %43 : vector<1x16x8xbf16> to vector<16x8xbf16>
      %45 = arith.truncf %42 : vector<128x16xf32> to vector<128x16xbf16>
      %cst_39 = arith.constant dense<0.000000e+00> : vector<128x8xf32>
      %46 = tpu.matmul %45, %44, %cst_39 {dimension_numbers = #tpu.dot_dimension_numbers<[1], [0], [0], [1], [0, 0, 1, 1], [], []>} : vector<128x16xbf16>, vector<16x8xbf16>, vector<128x8xf32> -> vector<128x8xf32>
      %c0_40 = arith.constant 0 : index
      %c0_41 = arith.constant 0 : index
      %c0_42 = arith.constant 0 : index
      %47 = vector.load %arg7[%c0_40, %c0_41, %c0_42] : memref<2x1x8xf32, #tpu.memory_space<vmem>>, vector<1x1x8xf32>
      %48 = vector.shape_cast %47 : vector<1x1x8xf32> to vector<1x8xf32>
      %49 = vector.broadcast %48 : vector<1x8xf32> to vector<128x8xf32>
      %50 = arith.addf %46, %49 : vector<128x8xf32>
      %cst_43 = arith.constant 0.000000e+00 : f32
      %51 = vector.broadcast %cst_43 : f32 to vector<128x8xf32>
      %52 = arith.maximumf %50, %51 : vector<128x8xf32>
      %53 = arith.index_cast %30 : i32 to index
      %c0_44 = arith.constant 0 : index
      %54 = vector.load %arg26[%53, %c0_44] : memref<128x8xf32, #tpu.memory_space<vmem>>, vector<128x8xf32>
      tpu.vector_store %arg26[%53, %c0_44], %52 {strides = array<i32>} : memref<128x8xf32, #tpu.memory_space<vmem>>, vector<128x8xf32>,
      %c1_i32_45 = arith.constant 1 : i32
      %c0_i32_46 = arith.constant 0 : i32
      %c1_i32_47 = arith.constant 1 : i32
      %55 = arith.muli %c0_i32_46, %c1_i32_47 : i32
      %c0_i32_48 = arith.constant 0 : i32
      %56 = arith.addi %c0_i32_48, %55 : i32
      %c128_i32_49 = arith.constant 128 : i32
      %57 = arith.muli %56, %c128_i32_49 : i32
      %58 = tpu.assume_multiple %57, 128 : i32
      %59 = arith.index_cast %58 : i32 to index
      %c0_50 = arith.constant 0 : index
      %60 = vector.load %arg25[%59, %c0_50] : memref<128x32xf32, #tpu.memory_space<vmem>>, vector<128x32xf32>
      %c1 = arith.constant 1 : index
      %c0_51 = arith.constant 0 : index
      %c0_52 = arith.constant 0 : index
      %61 = vector.load %arg4[%c1, %c0_51, %c0_52] : memref<2x32x16xbf16, #tpu.memory_space<vmem>>, vector<1x32x16xbf16>
      %62 = vector.shape_cast %61 : vector<1x32x16xbf16> to vector<32x16xbf16>
      %63 = arith.truncf %60 : vector<128x32xf32> to vector<128x32xbf16>
      %cst_53 = arith.constant dense<0.000000e+00> : vector<128x16xf32>
      %64 = tpu.matmul %63, %62, %cst_53 {dimension_numbers = #tpu.dot_dimension_numbers<[1], [0], [0], [1], [0, 0, 1, 1], [], []>} : vector<128x32xbf16>, vector<32x16xbf16>, vector<128x16xf32> -> vector<128x16xf32>
      %c1_54 = arith.constant 1 : index
      %c0_55 = arith.constant 0 : index
      %c0_56 = arith.constant 0 : index
      %65 = vector.load %arg5[%c1_54, %c0_55, %c0_56] : memref<2x1x16xf32, #tpu.memory_space<vmem>>, vector<1x1x16xf32>
      %66 = vector.shape_cast %65 : vector<1x1x16xf32> to vector<1x16xf32>
      %67 = vector.broadcast %66 : vector<1x16xf32> to vector<128x16xf32>
      %68 = arith.addf %64, %67 : vector<128x16xf32>
      %cst_57 = arith.constant 0.000000e+00 : f32
      %69 = vector.broadcast %cst_57 : f32 to vector<128x16xf32>
      %70 = arith.maximumf %68, %69 : vector<128x16xf32>
      %c1_58 = arith.constant 1 : index
      %c0_59 = arith.constant 0 : index
      %c0_60 = arith.constant 0 : index
      %71 = vector.load %arg6[%c1_58, %c0_59, %c0_60] : memref<2x16x8xbf16, #tpu.memory_space<vmem>>, vector<1x16x8xbf16>
      %72 = vector.shape_cast %71 : vector<1x16x8xbf16> to vector<16x8xbf16>
      %73 = arith.truncf %70 : vector<128x16xf32> to vector<128x16xbf16>
      %cst_61 = arith.constant dense<0.000000e+00> : vector<128x8xf32>
      %74 = tpu.matmul %73, %72, %cst_61 {dimension_numbers = #tpu.dot_dimension_numbers<[1], [0], [0], [1], [0, 0, 1, 1], [], []>} : vector<128x16xbf16>, vector<16x8xbf16>, vector<128x8xf32> -> vector<128x8xf32>
      %c1_62 = arith.constant 1 : index
      %c0_63 = arith.constant 0 : index
      %c0_64 = arith.constant 0 : index
      %75 = vector.load %arg7[%c1_62, %c0_63, %c0_64] : memref<2x1x8xf32, #tpu.memory_space<vmem>>, vector<1x1x8xf32>
      %76 = vector.shape_cast %75 : vector<1x1x8xf32> to vector<1x8xf32>
      %77 = vector.broadcast %76 : vector<1x8xf32> to vector<128x8xf32>
      %78 = arith.addf %74, %77 : vector<128x8xf32>
      %cst_65 = arith.constant 0.000000e+00 : f32
      %79 = vector.broadcast %cst_65 : f32 to vector<128x8xf32>
      %80 = arith.maximumf %78, %79 : vector<128x8xf32>
      %81 = arith.index_cast %58 : i32 to index
      %c0_66 = arith.constant 0 : index
      %82 = vector.load %arg27[%81, %c0_66] : memref<128x8xf32, #tpu.memory_space<vmem>>, vector<128x8xf32>
      tpu.vector_store %arg27[%81, %c0_66], %80 {strides = array<i32>} : memref<128x8xf32, #tpu.memory_space<vmem>>, vector<128x8xf32>,
      %c1_i32_67 = arith.constant 1 : i32
      %c0_68 = arith.constant 0 : index
      %c0_69 = arith.constant 0 : index
      %83 = vector.load %arg2[%c0_68, %c0_69] : memref<256x128xf32, #tpu.memory_space<vmem>>, vector<256x128xf32>
      %c0_70 = arith.constant 0 : index
      %c0_71 = arith.constant 0 : index
      %84 = vector.load %arg27[%c0_70, %c0_71] : memref<128x8xf32, #tpu.memory_space<vmem>>, vector<128x8xf32>
      %cst_72 = arith.constant dense<0.000000e+00> : vector<256x8xf32>
      %85 = tpu.matmul %83, %84, %cst_72 {dimension_numbers = #tpu.dot_dimension_numbers<[1], [0], [0], [1], [0, 0, 1, 1], [], []>} : vector<256x128xf32>, vector<128x8xf32>, vector<256x8xf32> -> vector<256x8xf32>
      %86 = arith.mulf %85, %85 : vector<256x8xf32>
      %cst_73 = arith.constant dense<0.000000e+00> : vector<256xf32>
      %87 = vector.multi_reduction <add>, %86, %cst_73 [1] : vector<256x8xf32> to vector<256xf32>
      %88 = vector.shape_cast %87 : vector<256xf32> to vector<256x1xf32>
      %cst_74 = arith.constant 9.99999974E-5 : f32
      %89 = vector.broadcast %cst_74 : f32 to vector<256x1xf32>
      %90 = arith.maximumf %88, %89 : vector<256x1xf32>
      %91 = math.rsqrt %90 : vector<256x1xf32>
      %92 = vector.broadcast %91 : vector<256x1xf32> to vector<256x8xf32>
      %93 = arith.mulf %85, %92 : vector<256x8xf32>
      %c0_75 = arith.constant 0 : index
      %c0_76 = arith.constant 0 : index
      %94 = vector.load %arg28[%c0_75, %c0_76] : memref<256x8xf32, #tpu.memory_space<vmem>>, vector<256x8xf32>
      tpu.vector_store %arg28[%c0_75, %c0_76], %93 {strides = array<i32>} : memref<256x8xf32, #tpu.memory_space<vmem>>, vector<256x8xf32>,
      %c0_77 = arith.constant 0 : index
      %c0_78 = arith.constant 0 : index
      %95 = vector.load %arg3[%c0_77, %c0_78] : memref<256x128xf32, #tpu.memory_space<vmem>>, vector<256x128xf32>
      %c0_79 = arith.constant 0 : index
      %c0_80 = arith.constant 0 : index
      %96 = vector.load %arg26[%c0_79, %c0_80] : memref<128x8xf32, #tpu.memory_space<vmem>>, vector<128x8xf32>
      %cst_81 = arith.constant dense<0.000000e+00> : vector<256x8xf32>
      %97 = tpu.matmul %95, %96, %cst_81 {dimension_numbers = #tpu.dot_dimension_numbers<[1], [0], [0], [1], [0, 0, 1, 1], [], []>} : vector<256x128xf32>, vector<128x8xf32>, vector<256x8xf32> -> vector<256x8xf32>
      %98 = arith.mulf %97, %97 : vector<256x8xf32>
      %cst_82 = arith.constant dense<0.000000e+00> : vector<256xf32>
      %99 = vector.multi_reduction <add>, %98, %cst_82 [1] : vector<256x8xf32> to vector<256xf32>
      %100 = vector.shape_cast %99 : vector<256xf32> to vector<256x1xf32>
      %cst_83 = arith.constant 9.99999974E-5 : f32
      %101 = vector.broadcast %cst_83 : f32 to vector<256x1xf32>
      %102 = arith.maximumf %100, %101 : vector<256x1xf32>
      %103 = math.rsqrt %102 : vector<256x1xf32>
      %104 = vector.broadcast %103 : vector<256x1xf32> to vector<256x8xf32>
      %105 = arith.mulf %97, %104 : vector<256x8xf32>
      %c0_84 = arith.constant 0 : index
      %c0_85 = arith.constant 0 : index
      %106 = vector.load %arg29[%c0_84, %c0_85] : memref<256x8xf32, #tpu.memory_space<vmem>>, vector<256x8xf32>
      tpu.vector_store %arg29[%c0_84, %c0_85], %105 {strides = array<i32>} : memref<256x8xf32, #tpu.memory_space<vmem>>, vector<256x8xf32>,
      %c0_i32_86 = arith.constant 0 : i32
      %c1_i32_87 = arith.constant 1 : i32
      %107 = arith.muli %c0_i32_86, %c1_i32_87 : i32
      %c0_i32_88 = arith.constant 0 : i32
      %108 = arith.addi %c0_i32_88, %107 : i32
      %c128_i32_89 = arith.constant 128 : i32
      %109 = arith.muli %108, %c128_i32_89 : i32
      %110 = tpu.assume_multiple %109, 128 : i32
      %111 = arith.index_cast %110 : i32 to index
      %c0_90 = arith.constant 0 : index
      %112 = vector.load %arg28[%111, %c0_90] : memref<256x8xf32, #tpu.memory_space<vmem>>, vector<128x8xf32>
      %c128_i32_91 = arith.constant 128 : i32
      %113 = arith.addi %c128_i32_91, %110 : i32
      %114 = arith.index_cast %113 : i32 to index
      %c0_92 = arith.constant 0 : index
      %115 = vector.load %arg28[%114, %c0_92] : memref<256x8xf32, #tpu.memory_space<vmem>>, vector<128x8xf32>
      %c0_93 = arith.constant 0 : index
      %c0_94 = arith.constant 0 : index
      %c0_95 = arith.constant 0 : index
      %116 = vector.load %arg8[%c0_93, %c0_94, %c0_95] : memref<2x8x24xbf16, #tpu.memory_space<vmem>>, vector<1x8x24xbf16>
      %117 = vector.shape_cast %116 : vector<1x8x24xbf16> to vector<8x24xbf16>
      %118 = arith.truncf %112 : vector<128x8xf32> to vector<128x8xbf16>
      %cst_96 = arith.constant dense<0.000000e+00> : vector<128x24xf32>
      %119 = tpu.matmul %118, %117, %cst_96 {dimension_numbers = #tpu.dot_dimension_numbers<[1], [0], [0], [1], [0, 0, 1, 1], [], []>} : vector<128x8xbf16>, vector<8x24xbf16>, vector<128x24xf32> -> vector<128x24xf32>
      %c0_97 = arith.constant 0 : index
      %c0_98 = arith.constant 0 : index
      %c0_99 = arith.constant 0 : index
      %120 = vector.load %arg9[%c0_97, %c0_98, %c0_99] : memref<2x8x24xbf16, #tpu.memory_space<vmem>>, vector<1x8x24xbf16>
      %121 = vector.shape_cast %120 : vector<1x8x24xbf16> to vector<8x24xbf16>
      %122 = arith.truncf %115 : vector<128x8xf32> to vector<128x8xbf16>
      %cst_100 = arith.constant dense<0.000000e+00> : vector<128x24xf32>
      %123 = tpu.matmul %122, %121, %cst_100 {dimension_numbers = #tpu.dot_dimension_numbers<[1], [0], [0], [1], [0, 0, 1, 1], [], []>} : vector<128x8xbf16>, vector<8x24xbf16>, vector<128x24xf32> -> vector<128x24xf32>
      %124 = arith.addf %119, %123 : vector<128x24xf32>
      %c0_101 = arith.constant 0 : index
      %c0_102 = arith.constant 0 : index
      %c0_103 = arith.constant 0 : index
      %125 = vector.load %arg10[%c0_101, %c0_102, %c0_103] : memref<2x1x24xf32, #tpu.memory_space<vmem>>, vector<1x1x24xf32>
      %126 = vector.shape_cast %125 : vector<1x1x24xf32> to vector<1x24xf32>
      %127 = vector.broadcast %126 : vector<1x24xf32> to vector<128x24xf32>
      %128 = arith.addf %124, %127 : vector<128x24xf32>
      %cst_104 = arith.constant 0.000000e+00 : f32
      %129 = vector.broadcast %cst_104 : f32 to vector<128x24xf32>
      %130 = arith.maximumf %128, %129 : vector<128x24xf32>
      %c0_105 = arith.constant 0 : index
      %c0_106 = arith.constant 0 : index
      %c0_107 = arith.constant 0 : index
      %131 = vector.load %arg11[%c0_105, %c0_106, %c0_107] : memref<2x24x32xbf16, #tpu.memory_space<vmem>>, vector<1x24x32xbf16>
      %132 = vector.shape_cast %131 : vector<1x24x32xbf16> to vector<24x32xbf16>
      %133 = arith.truncf %130 : vector<128x24xf32> to vector<128x24xbf16>
      %cst_108 = arith.constant dense<0.000000e+00> : vector<128x32xf32>
      %134 = tpu.matmul %133, %132, %cst_108 {dimension_numbers = #tpu.dot_dimension_numbers<[1], [0], [0], [1], [0, 0, 1, 1], [], []>} : vector<128x24xbf16>, vector<24x32xbf16>, vector<128x32xf32> -> vector<128x32xf32>
      %c0_109 = arith.constant 0 : index
      %c0_110 = arith.constant 0 : index
      %c0_111 = arith.constant 0 : index
      %135 = vector.load %arg12[%c0_109, %c0_110, %c0_111] : memref<2x1x32xf32, #tpu.memory_space<vmem>>, vector<1x1x32xf32>
      %136 = vector.shape_cast %135 : vector<1x1x32xf32> to vector<1x32xf32>
      %137 = vector.broadcast %136 : vector<1x32xf32> to vector<128x32xf32>
      %138 = arith.addf %134, %137 : vector<128x32xf32>
      %cst_112 = arith.constant 0.000000e+00 : f32
      %139 = vector.broadcast %cst_112 : f32 to vector<128x32xf32>
      %140 = arith.maximumf %138, %139 : vector<128x32xf32>
      %141 = arith.index_cast %110 : i32 to index
      %c0_113 = arith.constant 0 : index
      %142 = vector.load %arg24[%141, %c0_113] : memref<128x32xf32, #tpu.memory_space<vmem>>, vector<128x32xf32>
      %c0_114 = arith.constant 0 : index
      %c0_115 = arith.constant 0 : index
      %c0_116 = arith.constant 0 : index
      %143 = vector.load %arg13[%c0_114, %c0_115, %c0_116] : memref<2x32x96xbf16, #tpu.memory_space<vmem>>, vector<1x32x96xbf16>
      %144 = vector.shape_cast %143 : vector<1x32x96xbf16> to vector<32x96xbf16>
      %145 = arith.truncf %140 : vector<128x32xf32> to vector<128x32xbf16>
      %cst_117 = arith.constant dense<0.000000e+00> : vector<128x96xf32>
      %146 = tpu.matmul %145, %144, %cst_117 {dimension_numbers = #tpu.dot_dimension_numbers<[1], [0], [0], [1], [0, 0, 1, 1], [], []>} : vector<128x32xbf16>, vector<32x96xbf16>, vector<128x96xf32> -> vector<128x96xf32>
      %c0_118 = arith.constant 0 : index
      %c0_119 = arith.constant 0 : index
      %c0_120 = arith.constant 0 : index
      %147 = vector.load %arg14[%c0_118, %c0_119, %c0_120] : memref<2x1x96xf32, #tpu.memory_space<vmem>>, vector<1x1x96xf32>
      %148 = vector.shape_cast %147 : vector<1x1x96xf32> to vector<1x96xf32>
      %149 = vector.broadcast %148 : vector<1x96xf32> to vector<128x96xf32>
      %150 = arith.addf %146, %149 : vector<128x96xf32>
      %c0_121 = arith.constant 0 : index
      %c0_122 = arith.constant 0 : index
      %c0_123 = arith.constant 0 : index
      %151 = vector.load %arg15[%c0_121, %c0_122, %c0_123] : memref<2x32x64xbf16, #tpu.memory_space<vmem>>, vector<1x32x64xbf16>
      %152 = vector.shape_cast %151 : vector<1x32x64xbf16> to vector<32x64xbf16>
      %153 = arith.truncf %142 : vector<128x32xf32> to vector<128x32xbf16>
      %cst_124 = arith.constant dense<0.000000e+00> : vector<128x64xf32>
      %154 = tpu.matmul %153, %152, %cst_124 {dimension_numbers = #tpu.dot_dimension_numbers<[1], [0], [0], [1], [0, 0, 1, 1], [], []>} : vector<128x32xbf16>, vector<32x64xbf16>, vector<128x64xf32> -> vector<128x64xf32>
      %c0_125 = arith.constant 0 : index
      %c0_126 = arith.constant 0 : index
      %c0_127 = arith.constant 0 : index
      %155 = vector.load %arg16[%c0_125, %c0_126, %c0_127] : memref<2x1x64xf32, #tpu.memory_space<vmem>>, vector<1x1x64xf32>
      %156 = vector.shape_cast %155 : vector<1x1x64xf32> to vector<1x64xf32>
      %157 = vector.broadcast %156 : vector<1x64xf32> to vector<128x64xf32>
      %158 = arith.addf %154, %157 : vector<128x64xf32>
      %159 = vector.extract_strided_slice %150 {offsets = [0, 0], sizes = [128, 32], strides = [1, 1]} : vector<128x96xf32> to vector<128x32xf32>
      %160 = vector.extract_strided_slice %158 {offsets = [0, 0], sizes = [128, 32], strides = [1, 1]} : vector<128x64xf32> to vector<128x32xf32>
      %161 = arith.addf %159, %160 : vector<128x32xf32>
      %162 = arith.negf %161 : vector<128x32xf32>
      %163 = math.exp %162 : vector<128x32xf32>
      %cst_128 = arith.constant 1.000000e+00 : f32
      %164 = vector.broadcast %cst_128 : f32 to vector<128x32xf32>
      %165 = arith.addf %164, %163 : vector<128x32xf32>
      %166 = arith.divf %164, %165 : vector<128x32xf32>
      %167 = vector.extract_strided_slice %150 {offsets = [0, 32], sizes = [128, 32], strides = [1, 1]} : vector<128x96xf32> to vector<128x32xf32>
      %168 = vector.extract_strided_slice %158 {offsets = [0, 32], sizes = [128, 32], strides = [1, 1]} : vector<128x64xf32> to vector<128x32xf32>
      %169 = arith.addf %167, %168 : vector<128x32xf32>
      %170 = arith.negf %169 : vector<128x32xf32>
      %171 = math.exp %170 : vector<128x32xf32>
      %cst_129 = arith.constant 1.000000e+00 : f32
      %172 = vector.broadcast %cst_129 : f32 to vector<128x32xf32>
      %173 = arith.addf %172, %171 : vector<128x32xf32>
      %174 = arith.divf %172, %173 : vector<128x32xf32>
      %175 = vector.extract_strided_slice %150 {offsets = [0, 64], sizes = [128, 32], strides = [1, 1]} : vector<128x96xf32> to vector<128x32xf32>
      %176 = arith.mulf %174, %142 : vector<128x32xf32>
      %c0_130 = arith.constant 0 : index
      %c0_131 = arith.constant 0 : index
      %c0_132 = arith.constant 0 : index
      %177 = vector.load %arg17[%c0_130, %c0_131, %c0_132] : memref<2x32x32xbf16, #tpu.memory_space<vmem>>, vector<1x32x32xbf16>
      %178 = vector.shape_cast %177 : vector<1x32x32xbf16> to vector<32x32xbf16>
      %179 = arith.truncf %176 : vector<128x32xf32> to vector<128x32xbf16>
      %cst_133 = arith.constant dense<0.000000e+00> : vector<128x32xf32>
      %180 = tpu.matmul %179, %178, %cst_133 {dimension_numbers = #tpu.dot_dimension_numbers<[1], [0], [0], [1], [0, 0, 1, 1], [], []>} : vector<128x32xbf16>, vector<32x32xbf16>, vector<128x32xf32> -> vector<128x32xf32>
      %181 = arith.addf %175, %180 : vector<128x32xf32>
      %c0_134 = arith.constant 0 : index
      %c0_135 = arith.constant 0 : index
      %c0_136 = arith.constant 0 : index
      %182 = vector.load %arg18[%c0_134, %c0_135, %c0_136] : memref<2x1x32xf32, #tpu.memory_space<vmem>>, vector<1x1x32xf32>
      %183 = vector.shape_cast %182 : vector<1x1x32xf32> to vector<1x32xf32>
      %184 = vector.broadcast %183 : vector<1x32xf32> to vector<128x32xf32>
      %185 = arith.addf %181, %184 : vector<128x32xf32>
      %186 = math.tanh %185 : vector<128x32xf32>
      %cst_137 = arith.constant 1.000000e+00 : f32
      %187 = vector.broadcast %cst_137 : f32 to vector<128x32xf32>
      %188 = arith.subf %187, %166 : vector<128x32xf32>
      %189 = arith.mulf %188, %142 : vector<128x32xf32>
      %190 = arith.mulf %166, %186 : vector<128x32xf32>
      %191 = arith.addf %189, %190 : vector<128x32xf32>
      %192 = arith.index_cast %110 : i32 to index
      %c0_138 = arith.constant 0 : index
      %193 = vector.load %arg24[%192, %c0_138] : memref<128x32xf32, #tpu.memory_space<vmem>>, vector<128x32xf32>
      tpu.vector_store %arg24[%192, %c0_138], %191 {strides = array<i32>} : memref<128x32xf32, #tpu.memory_space<vmem>>, vector<128x32xf32>,
      %c1_i32_139 = arith.constant 1 : i32
      %c0_i32_140 = arith.constant 0 : i32
      %c1_i32_141 = arith.constant 1 : i32
      %194 = arith.muli %c0_i32_140, %c1_i32_141 : i32
      %c0_i32_142 = arith.constant 0 : i32
      %195 = arith.addi %c0_i32_142, %194 : i32
      %c128_i32_143 = arith.constant 128 : i32
      %196 = arith.muli %195, %c128_i32_143 : i32
      %197 = tpu.assume_multiple %196, 128 : i32
      %198 = arith.index_cast %197 : i32 to index
      %c0_144 = arith.constant 0 : index
      %199 = vector.load %arg29[%198, %c0_144] : memref<256x8xf32, #tpu.memory_space<vmem>>, vector<128x8xf32>
      %c128_i32_145 = arith.constant 128 : i32
      %200 = arith.addi %c128_i32_145, %197 : i32
      %201 = arith.index_cast %200 : i32 to index
      %c0_146 = arith.constant 0 : index
      %202 = vector.load %arg29[%201, %c0_146] : memref<256x8xf32, #tpu.memory_space<vmem>>, vector<128x8xf32>
      %c1_147 = arith.constant 1 : index
      %c0_148 = arith.constant 0 : index
      %c0_149 = arith.constant 0 : index
      %203 = vector.load %arg8[%c1_147, %c0_148, %c0_149] : memref<2x8x24xbf16, #tpu.memory_space<vmem>>, vector<1x8x24xbf16>
      %204 = vector.shape_cast %203 : vector<1x8x24xbf16> to vector<8x24xbf16>
      %205 = arith.truncf %199 : vector<128x8xf32> to vector<128x8xbf16>
      %cst_150 = arith.constant dense<0.000000e+00> : vector<128x24xf32>
      %206 = tpu.matmul %205, %204, %cst_150 {dimension_numbers = #tpu.dot_dimension_numbers<[1], [0], [0], [1], [0, 0, 1, 1], [], []>} : vector<128x8xbf16>, vector<8x24xbf16>, vector<128x24xf32> -> vector<128x24xf32>
      %c1_151 = arith.constant 1 : index
      %c0_152 = arith.constant 0 : index
      %c0_153 = arith.constant 0 : index
      %207 = vector.load %arg9[%c1_151, %c0_152, %c0_153] : memref<2x8x24xbf16, #tpu.memory_space<vmem>>, vector<1x8x24xbf16>
      %208 = vector.shape_cast %207 : vector<1x8x24xbf16> to vector<8x24xbf16>
      %209 = arith.truncf %202 : vector<128x8xf32> to vector<128x8xbf16>
      %cst_154 = arith.constant dense<0.000000e+00> : vector<128x24xf32>
      %210 = tpu.matmul %209, %208, %cst_154 {dimension_numbers = #tpu.dot_dimension_numbers<[1], [0], [0], [1], [0, 0, 1, 1], [], []>} : vector<128x8xbf16>, vector<8x24xbf16>, vector<128x24xf32> -> vector<128x24xf32>
      %211 = arith.addf %206, %210 : vector<128x24xf32>
      %c1_155 = arith.constant 1 : index
      %c0_156 = arith.constant 0 : index
      %c0_157 = arith.constant 0 : index
      %212 = vector.load %arg10[%c1_155, %c0_156, %c0_157] : memref<2x1x24xf32, #tpu.memory_space<vmem>>, vector<1x1x24xf32>
      %213 = vector.shape_cast %212 : vector<1x1x24xf32> to vector<1x24xf32>
      %214 = vector.broadcast %213 : vector<1x24xf32> to vector<128x24xf32>
      %215 = arith.addf %211, %214 : vector<128x24xf32>
      %cst_158 = arith.constant 0.000000e+00 : f32
      %216 = vector.broadcast %cst_158 : f32 to vector<128x24xf32>
      %217 = arith.maximumf %215, %216 : vector<128x24xf32>
      %c1_159 = arith.constant 1 : index
      %c0_160 = arith.constant 0 : index
      %c0_161 = arith.constant 0 : index
      %218 = vector.load %arg11[%c1_159, %c0_160, %c0_161] : memref<2x24x32xbf16, #tpu.memory_space<vmem>>, vector<1x24x32xbf16>
      %219 = vector.shape_cast %218 : vector<1x24x32xbf16> to vector<24x32xbf16>
      %220 = arith.truncf %217 : vector<128x24xf32> to vector<128x24xbf16>
      %cst_162 = arith.constant dense<0.000000e+00> : vector<128x32xf32>
      %221 = tpu.matmul %220, %219, %cst_162 {dimension_numbers = #tpu.dot_dimension_numbers<[1], [0], [0], [1], [0, 0, 1, 1], [], []>} : vector<128x24xbf16>, vector<24x32xbf16>, vector<128x32xf32> -> vector<128x32xf32>
      %c1_163 = arith.constant 1 : index
      %c0_164 = arith.constant 0 : index
      %c0_165 = arith.constant 0 : index
      %222 = vector.load %arg12[%c1_163, %c0_164, %c0_165] : memref<2x1x32xf32, #tpu.memory_space<vmem>>, vector<1x1x32xf32>
      %223 = vector.shape_cast %222 : vector<1x1x32xf32> to vector<1x32xf32>
      %224 = vector.broadcast %223 : vector<1x32xf32> to vector<128x32xf32>
      %225 = arith.addf %221, %224 : vector<128x32xf32>
      %cst_166 = arith.constant 0.000000e+00 : f32
      %226 = vector.broadcast %cst_166 : f32 to vector<128x32xf32>
      %227 = arith.maximumf %225, %226 : vector<128x32xf32>
      %228 = arith.index_cast %197 : i32 to index
      %c0_167 = arith.constant 0 : index
      %229 = vector.load %arg25[%228, %c0_167] : memref<128x32xf32, #tpu.memory_space<vmem>>, vector<128x32xf32>
      %c1_168 = arith.constant 1 : index
      %c0_169 = arith.constant 0 : index
      %c0_170 = arith.constant 0 : index
      %230 = vector.load %arg13[%c1_168, %c0_169, %c0_170] : memref<2x32x96xbf16, #tpu.memory_space<vmem>>, vector<1x32x96xbf16>
      %231 = vector.shape_cast %230 : vector<1x32x96xbf16> to vector<32x96xbf16>
      %232 = arith.truncf %227 : vector<128x32xf32> to vector<128x32xbf16>
      %cst_171 = arith.constant dense<0.000000e+00> : vector<128x96xf32>
      %233 = tpu.matmul %232, %231, %cst_171 {dimension_numbers = #tpu.dot_dimension_numbers<[1], [0], [0], [1], [0, 0, 1, 1], [], []>} : vector<128x32xbf16>, vector<32x96xbf16>, vector<128x96xf32> -> vector<128x96xf32>
      %c1_172 = arith.constant 1 : index
      %c0_173 = arith.constant 0 : index
      %c0_174 = arith.constant 0 : index
      %234 = vector.load %arg14[%c1_172, %c0_173, %c0_174] : memref<2x1x96xf32, #tpu.memory_space<vmem>>, vector<1x1x96xf32>
      %235 = vector.shape_cast %234 : vector<1x1x96xf32> to vector<1x96xf32>
      %236 = vector.broadcast %235 : vector<1x96xf32> to vector<128x96xf32>
      %237 = arith.addf %233, %236 : vector<128x96xf32>
      %c1_175 = arith.constant 1 : index
      %c0_176 = arith.constant 0 : index
      %c0_177 = arith.constant 0 : index
      %238 = vector.load %arg15[%c1_175, %c0_176, %c0_177] : memref<2x32x64xbf16, #tpu.memory_space<vmem>>, vector<1x32x64xbf16>
      %239 = vector.shape_cast %238 : vector<1x32x64xbf16> to vector<32x64xbf16>
      %240 = arith.truncf %229 : vector<128x32xf32> to vector<128x32xbf16>
      %cst_178 = arith.constant dense<0.000000e+00> : vector<128x64xf32>
      %241 = tpu.matmul %240, %239, %cst_178 {dimension_numbers = #tpu.dot_dimension_numbers<[1], [0], [0], [1], [0, 0, 1, 1], [], []>} : vector<128x32xbf16>, vector<32x64xbf16>, vector<128x64xf32> -> vector<128x64xf32>
      %c1_179 = arith.constant 1 : index
      %c0_180 = arith.constant 0 : index
      %c0_181 = arith.constant 0 : index
      %242 = vector.load %arg16[%c1_179, %c0_180, %c0_181] : memref<2x1x64xf32, #tpu.memory_space<vmem>>, vector<1x1x64xf32>
      %243 = vector.shape_cast %242 : vector<1x1x64xf32> to vector<1x64xf32>
      %244 = vector.broadcast %243 : vector<1x64xf32> to vector<128x64xf32>
      %245 = arith.addf %241, %244 : vector<128x64xf32>
      %246 = vector.extract_strided_slice %237 {offsets = [0, 0], sizes = [128, 32], strides = [1, 1]} : vector<128x96xf32> to vector<128x32xf32>
      %247 = vector.extract_strided_slice %245 {offsets = [0, 0], sizes = [128, 32], strides = [1, 1]} : vector<128x64xf32> to vector<128x32xf32>
      %248 = arith.addf %246, %247 : vector<128x32xf32>
      %249 = arith.negf %248 : vector<128x32xf32>
      %250 = math.exp %249 : vector<128x32xf32>
      %cst_182 = arith.constant 1.000000e+00 : f32
      %251 = vector.broadcast %cst_182 : f32 to vector<128x32xf32>
      %252 = arith.addf %251, %250 : vector<128x32xf32>
      %253 = arith.divf %251, %252 : vector<128x32xf32>
      %254 = vector.extract_strided_slice %237 {offsets = [0, 32], sizes = [128, 32], strides = [1, 1]} : vector<128x96xf32> to vector<128x32xf32>
      %255 = vector.extract_strided_slice %245 {offsets = [0, 32], sizes = [128, 32], strides = [1, 1]} : vector<128x64xf32> to vector<128x32xf32>
      %256 = arith.addf %254, %255 : vector<128x32xf32>
      %257 = arith.negf %256 : vector<128x32xf32>
      %258 = math.exp %257 : vector<128x32xf32>
      %cst_183 = arith.constant 1.000000e+00 : f32
      %259 = vector.broadcast %cst_183 : f32 to vector<128x32xf32>
      %260 = arith.addf %259, %258 : vector<128x32xf32>
      %261 = arith.divf %259, %260 : vector<128x32xf32>
      %262 = vector.extract_strided_slice %237 {offsets = [0, 64], sizes = [128, 32], strides = [1, 1]} : vector<128x96xf32> to vector<128x32xf32>
      %263 = arith.mulf %261, %229 : vector<128x32xf32>
      %c1_184 = arith.constant 1 : index
      %c0_185 = arith.constant 0 : index
      %c0_186 = arith.constant 0 : index
      %264 = vector.load %arg17[%c1_184, %c0_185, %c0_186] : memref<2x32x32xbf16, #tpu.memory_space<vmem>>, vector<1x32x32xbf16>
      %265 = vector.shape_cast %264 : vector<1x32x32xbf16> to vector<32x32xbf16>
      %266 = arith.truncf %263 : vector<128x32xf32> to vector<128x32xbf16>
      %cst_187 = arith.constant dense<0.000000e+00> : vector<128x32xf32>
      %267 = tpu.matmul %266, %265, %cst_187 {dimension_numbers = #tpu.dot_dimension_numbers<[1], [0], [0], [1], [0, 0, 1, 1], [], []>} : vector<128x32xbf16>, vector<32x32xbf16>, vector<128x32xf32> -> vector<128x32xf32>
      %268 = arith.addf %262, %267 : vector<128x32xf32>
      %c1_188 = arith.constant 1 : index
      %c0_189 = arith.constant 0 : index
      %c0_190 = arith.constant 0 : index
      %269 = vector.load %arg18[%c1_188, %c0_189, %c0_190] : memref<2x1x32xf32, #tpu.memory_space<vmem>>, vector<1x1x32xf32>
      %270 = vector.shape_cast %269 : vector<1x1x32xf32> to vector<1x32xf32>
      %271 = vector.broadcast %270 : vector<1x32xf32> to vector<128x32xf32>
      %272 = arith.addf %268, %271 : vector<128x32xf32>
      %273 = math.tanh %272 : vector<128x32xf32>
      %cst_191 = arith.constant 1.000000e+00 : f32
      %274 = vector.broadcast %cst_191 : f32 to vector<128x32xf32>
      %275 = arith.subf %274, %253 : vector<128x32xf32>
      %276 = arith.mulf %275, %229 : vector<128x32xf32>
      %277 = arith.mulf %253, %273 : vector<128x32xf32>
      %278 = arith.addf %276, %277 : vector<128x32xf32>
      %279 = arith.index_cast %197 : i32 to index
      %c0_192 = arith.constant 0 : index
      %280 = vector.load %arg25[%279, %c0_192] : memref<128x32xf32, #tpu.memory_space<vmem>>, vector<128x32xf32>
      tpu.vector_store %arg25[%279, %c0_192], %278 {strides = array<i32>} : memref<128x32xf32, #tpu.memory_space<vmem>>, vector<128x32xf32>,
      %c1_i32_193 = arith.constant 1 : i32
    }
    %c0_i32_7 = arith.constant 0 : i32
    %c1_i32_8 = arith.constant 1 : i32
    %5 = arith.muli %c0_i32_7, %c1_i32_8 : i32
    %c0_i32_9 = arith.constant 0 : i32
    %6 = arith.addi %c0_i32_9, %5 : i32
    %c128_i32 = arith.constant 128 : i32
    %7 = arith.muli %6, %c128_i32 : i32
    %8 = tpu.assume_multiple %7, 128 : i32
    %9 = arith.index_cast %8 : i32 to index
    %c0_10 = arith.constant 0 : index
    %10 = vector.load %arg25[%9, %c0_10] : memref<128x32xf32, #tpu.memory_space<vmem>>, vector<128x32xf32>
    %c0_11 = arith.constant 0 : index
    %c0_12 = arith.constant 0 : index
    %11 = vector.load %arg19[%c0_11, %c0_12] : memref<32x32xbf16, #tpu.memory_space<vmem>>, vector<32x32xbf16>
    %12 = arith.truncf %10 : vector<128x32xf32> to vector<128x32xbf16>
    %cst = arith.constant dense<0.000000e+00> : vector<128x32xf32>
    %13 = tpu.matmul %12, %11, %cst {dimension_numbers = #tpu.dot_dimension_numbers<[1], [0], [0], [1], [0, 0, 1, 1], [], []>} : vector<128x32xbf16>, vector<32x32xbf16>, vector<128x32xf32> -> vector<128x32xf32>
    %c0_13 = arith.constant 0 : index
    %c0_14 = arith.constant 0 : index
    %14 = vector.load %arg20[%c0_13, %c0_14] : memref<1x32xf32, #tpu.memory_space<vmem>>, vector<1x32xf32>
    %15 = vector.broadcast %14 : vector<1x32xf32> to vector<128x32xf32>
    %16 = arith.addf %13, %15 : vector<128x32xf32>
    %cst_15 = arith.constant 0.000000e+00 : f32
    %17 = vector.broadcast %cst_15 : f32 to vector<128x32xf32>
    %18 = arith.maximumf %16, %17 : vector<128x32xf32>
    %c0_16 = arith.constant 0 : index
    %c0_17 = arith.constant 0 : index
    %19 = vector.load %arg21[%c0_16, %c0_17] : memref<32x128xbf16, #tpu.memory_space<vmem>>, vector<32x128xbf16>
    %20 = arith.truncf %18 : vector<128x32xf32> to vector<128x32xbf16>
    %cst_18 = arith.constant dense<0.000000e+00> : vector<128x128xf32>
    %21 = tpu.matmul %20, %19, %cst_18 {dimension_numbers = #tpu.dot_dimension_numbers<[1], [0], [0], [1], [0, 0, 1, 1], [], []>} : vector<128x32xbf16>, vector<32x128xbf16>, vector<128x128xf32> -> vector<128x128xf32>
    %c0_19 = arith.constant 0 : index
    %c0_20 = arith.constant 0 : index
    %22 = vector.load %arg22[%c0_19, %c0_20] : memref<1x128xf32, #tpu.memory_space<vmem>>, vector<1x128xf32>
    %23 = vector.broadcast %22 : vector<1x128xf32> to vector<128x128xf32>
    %24 = arith.addf %21, %23 : vector<128x128xf32>
    %25 = arith.index_cast %8 : i32 to index
    %c0_21 = arith.constant 0 : index
    %26 = vector.load %arg23[%25, %c0_21] : memref<128x128xf32, #tpu.memory_space<vmem>>, vector<128x128xf32>
    tpu.vector_store %arg23[%25, %c0_21], %24 {strides = array<i32>} : memref<128x128xf32, #tpu.memory_space<vmem>>, vector<128x128xf32>,
    %c1_i32_22 = arith.constant 1 : i32
    return
  }
}

</mosaic_0001>

<llo_original>
// kernel: ggnn_forward.1
$region0: #{ggnn_forward.1}
  #allocation0 [shape = 'u32[]', space=smem, size = 0x4, offset = 0x4, fixed_abs, tag = 'smem constant byte address 0x4 - core index']
  #allocation1 [shape = 'u32[72,128]{1,0:T(1,128)}', space=vmem, size = 0x9000, scoped, tag = 'internal scratch']
  #allocation2 [shape = 'f32[128,32]{1,0:T(8,128)}', space=vmem, size = 0x10000, scoped, tag = 'scratch operand']
  #allocation3 [shape = 'f32[128,32]{1,0:T(8,128)}', space=vmem, size = 0x10000, scoped, tag = 'scratch operand']
  #allocation4 [shape = 'f32[128,8]{1,0:T(8,128)}', space=vmem, size = 0x10000, scoped, tag = 'scratch operand']
  #allocation5 [shape = 'f32[128,8]{1,0:T(8,128)}', space=vmem, size = 0x10000, scoped, tag = 'scratch operand']
  #allocation6 [shape = 'f32[256,8]{1,0:T(8,128)}', space=vmem, size = 0x20000, scoped, tag = 'scratch operand']
  #allocation7 [shape = 'f32[256,8]{1,0:T(8,128)}', space=vmem, size = 0x20000, scoped, tag = 'scratch operand']
  %s0 = inlined_call_operand.vmem [shape: f32[128,32], index: 0, kind: input, shape index: {}]
  %s1 = inlined_call_operand.vmem [shape: f32[128,32], index: 1, kind: input, shape index: {}]
  %s2 = inlined_call_operand.vmem [shape: f32[256,128], index: 2, kind: input, shape index: {}]
  %s3 = inlined_call_operand.vmem [shape: f32[256,128], index: 3, kind: input, shape index: {}]
  %s4 = inlined_call_operand.vmem [shape: bf16[2,32,16], index: 4, kind: input, shape index: {}]
  %s5 = inlined_call_operand.vmem [shape: f32[2,1,16], index: 5, kind: input, shape index: {}]
  %s6 = inlined_call_operand.vmem [shape: bf16[2,16,8], index: 6, kind: input, shape index: {}]
  %s7 = inlined_call_operand.vmem [shape: f32[2,1,8], index: 7, kind: input, shape index: {}]
  %s8 = inlined_call_operand.vmem [shape: bf16[2,8,24], index: 8, kind: input, shape index: {}]
  %s9 = inlined_call_operand.vmem [shape: bf16[2,8,24], index: 9, kind: input, shape index: {}]
  %s10 = inlined_call_operand.vmem [shape: f32[2,1,24], index: 10, kind: input, shape index: {}]
  %s11 = inlined_call_operand.vmem [shape: bf16[2,24,32], index: 11, kind: input, shape index: {}]
  %s12 = inlined_call_operand.vmem [shape: f32[2,1,32], index: 12, kind: input, shape index: {}]
  %s13 = inlined_call_operand.vmem [shape: bf16[2,32,96], index: 13, kind: input, shape index: {}]
  %s14 = inlined_call_operand.vmem [shape: f32[2,1,96], index: 14, kind: input, shape index: {}]
  %s15 = inlined_call_operand.vmem [shape: bf16[2,32,64], index: 15, kind: input, shape index: {}]
  %s16 = inlined_call_operand.vmem [shape: f32[2,1,64], index: 16, kind: input, shape index: {}]
  %s17 = inlined_call_operand.vmem [shape: bf16[2,32,32], index: 17, kind: input, shape index: {}]
  %s18 = inlined_call_operand.vmem [shape: f32[2,1,32], index: 18, kind: input, shape index: {}]
  %s19 = inlined_call_operand.vmem [shape: bf16[32,32], index: 19, kind: input, shape index: {}]
  %s20 = inlined_call_operand.vmem [shape: f32[1,32], index: 20, kind: input, shape index: {}]
  %s21 = inlined_call_operand.vmem [shape: bf16[32,128], index: 21, kind: input, shape index: {}]
  %s22 = inlined_call_operand.vmem [shape: f32[1,128], index: 22, kind: input, shape index: {}]
  %s23 = inlined_call_operand.vmem [shape: f32[128,128], index: 23, kind: output, shape index: {}]
  %s24 = sld [smem:[#allocation0]]
  $region109: #{ggnn_forward.1} parent=0
    _
  %s26 = ssub.s32 1, %s24
  %s27 = scalar_select 0, %s26, %s24
  // Predicated region
  $region2: #{ggnn_forward.1} parent=0 // pred_check
    _
  $region3: #{ggnn_forward.1} parent=0 // pred_check_branch
    %29 = sbr.rel (0) target = $region5
  $region4: #{ggnn_forward.1} parent=0 // pred_region
    _
  $region5: #{ggnn_forward.1} parent=0 // pred_fallthru
    _
  // Predicated region
  $region6: #{ggnn_forward.1} parent=0 // pred_check
    _
  $region7: #{ggnn_forward.1} parent=0 // pred_check_branch
    %31 = sbr.rel (0) target = $region9
  $region8: #{ggnn_forward.1} parent=0 // pred_region
    _
  $region9: #{ggnn_forward.1} parent=0 // pred_fallthru
    _
  // Predicated region
  $region10: #{ggnn_forward.1} parent=0 // pred_check
    _
  $region11: #{ggnn_forward.1} parent=0 // pred_check_branch
    %33 = sbr.rel (0) target = $region13
  $region12: #{ggnn_forward.1} parent=0 // pred_region
    _
  $region13: #{ggnn_forward.1} parent=0 // pred_fallthru
    _
  // Predicated region
  $region14: #{ggnn_forward.1} parent=0 // pred_check
    _
  $region15: #{ggnn_forward.1} parent=0 // pred_check_branch
    %35 = sbr.rel (0) target = $region17
  $region16: #{ggnn_forward.1} parent=0 // pred_region
    _
  $region17: #{ggnn_forward.1} parent=0 // pred_fallthru
    _
  // Predicated region
  $region18: #{ggnn_forward.1} parent=0 // pred_check
    _
  $region19: #{ggnn_forward.1} parent=0 // pred_check_branch
    %37 = sbr.rel (0) target = $region21
  $region20: #{ggnn_forward.1} parent=0 // pred_region
    _
  $region21: #{ggnn_forward.1} parent=0 // pred_fallthru
    _
  // Predicated region
  $region22: #{ggnn_forward.1} parent=0 // pred_check
    _
  $region23: #{ggnn_forward.1} parent=0 // pred_check_branch
    %39 = sbr.rel (0) target = $region25
  $region24: #{ggnn_forward.1} parent=0 // pred_region
    _
  $region25: #{ggnn_forward.1} parent=0 // pred_fallthru
    _
  // Predicated region
  $region26: #{ggnn_forward.1} parent=0 // pred_check
    _
  $region27: #{ggnn_forward.1} parent=0 // pred_check_branch
    %41 = sbr.rel (0) target = $region29
  $region28: #{ggnn_forward.1} parent=0 // pred_region
    _
  $region29: #{ggnn_forward.1} parent=0 // pred_fallthru
    _
  // Predicated region
  $region30: #{ggnn_forward.1} parent=0 // pred_check
    _
  $region31: #{ggnn_forward.1} parent=0 // pred_check_branch
    %43 = sbr.rel (0) target = $region33
  $region32: #{ggnn_forward.1} parent=0 // pred_region
    _
  $region33: #{ggnn_forward.1} parent=0 // pred_fallthru
    _
  // Predicated region
  $region34: #{ggnn_forward.1} parent=0 // pred_check
    _
  $region35: #{ggnn_forward.1} parent=0 // pred_check_branch
    %45 = sbr.rel (0) target = $region37
  $region36: #{ggnn_forward.1} parent=0 // pred_region
    _
  $region37: #{ggnn_forward.1} parent=0 // pred_fallthru
    _
  // Predicated region
  $region38: #{ggnn_forward.1} parent=0 // pred_check
    _
  $region39: #{ggnn_forward.1} parent=0 // pred_check_branch
    %47 = sbr.rel (0) target = $region41
  $region40: #{ggnn_forward.1} parent=0 // pred_region
    _
  $region41: #{ggnn_forward.1} parent=0 // pred_fallthru
    _
  // Predicated region
  $region42: #{ggnn_forward.1} parent=0 // pred_check
    _
  $region43: #{ggnn_forward.1} parent=0 // pred_check_branch
    %49 = sbr.rel (0) target = $region45
  $region44: #{ggnn_forward.1} parent=0 // pred_region
    _
  $region45: #{ggnn_forward.1} parent=0 // pred_fallthru
    _
  // Predicated region
  $region46: #{ggnn_forward.1} parent=0 // pred_check
    _
  $region47: #{ggnn_forward.1} parent=0 // pred_check_branch
    %51 = sbr.rel (0) target = $region49
  $region48: #{ggnn_forward.1} parent=0 // pred_region
    _
  $region49: #{ggnn_forward.1} parent=0 // pred_fallthru
    _
  // Predicated region
  $region50: #{ggnn_forward.1} parent=0 // pred_check
    _
  $region51: #{ggnn_forward.1} parent=0 // pred_check_branch
    %53 = sbr.rel (0) target = $region53
  $region52: #{ggnn_forward.1} parent=0 // pred_region
    _
  $region53: #{ggnn_forward.1} parent=0 // pred_fallthru
    _
  // Predicated region
  $region54: #{ggnn_forward.1} parent=0 // pred_check
    _
  $region55: #{ggnn_forward.1} parent=0 // pred_check_branch
    %55 = sbr.rel (0) target = $region57
  $region56: #{ggnn_forward.1} parent=0 // pred_region
    _
  $region57: #{ggnn_forward.1} parent=0 // pred_fallthru
    _
  // Predicated region
  $region58: #{ggnn_forward.1} parent=0 // pred_check
    _
  $region59: #{ggnn_forward.1} parent=0 // pred_check_branch
    %57 = sbr.rel (0) target = $region61
  $region60: #{ggnn_forward.1} parent=0 // pred_region
    _
  $region61: #{ggnn_forward.1} parent=0 // pred_fallthru
    _
  // Predicated region
  $region62: #{ggnn_forward.1} parent=0 // pred_check
    _
  $region63: #{ggnn_forward.1} parent=0 // pred_check_branch
    %59 = sbr.rel (0) target = $region65
  $region64: #{ggnn_forward.1} parent=0 // pred_region
    _
  $region65: #{ggnn_forward.1} parent=0 // pred_fallthru
    _
  // Predicated region
  $region66: #{ggnn_forward.1} parent=0 // pred_check
    _
  $region67: #{ggnn_forward.1} parent=0 // pred_check_branch
    %61 = sbr.rel (0) target = $region69
  $region68: #{ggnn_forward.1} parent=0 // pred_region
    _
  $region69: #{ggnn_forward.1} parent=0 // pred_fallthru
    _
  // Predicated region
  $region70: #{ggnn_forward.1} parent=0 // pred_check
    _
  $region71: #{ggnn_forward.1} parent=0 // pred_check_branch
    %63 = sbr.rel (0) target = $region73
  $region72: #{ggnn_forward.1} parent=0 // pred_region
    _
  $region73: #{ggnn_forward.1} parent=0 // pred_fallthru
    _
  // Predicated region
  $region74: #{ggnn_forward.1} parent=0 // pred_check
    _
  $region75: #{ggnn_forward.1} parent=0 // pred_check_branch
    %65 = sbr.rel (0) target = $region77
  $region76: #{ggnn_forward.1} parent=0 // pred_region
    _
  $region77: #{ggnn_forward.1} parent=0 // pred_fallthru
    _
  // Predicated region
  $region78: #{ggnn_forward.1} parent=0 // pred_check
    _
  $region79: #{ggnn_forward.1} parent=0 // pred_check_branch
    %67 = sbr.rel (0) target = $region81
  $region80: #{ggnn_forward.1} parent=0 // pred_region
    _
  $region81: #{ggnn_forward.1} parent=0 // pred_fallthru
    _
  // Predicated region
  $region82: #{ggnn_forward.1} parent=0 // pred_check
    _
  $region83: #{ggnn_forward.1} parent=0 // pred_check_branch
    %69 = sbr.rel (0) target = $region85
  $region84: #{ggnn_forward.1} parent=0 // pred_region
    _
  $region85: #{ggnn_forward.1} parent=0 // pred_fallthru
    _
  // Predicated region
  $region86: #{ggnn_forward.1} parent=0 // pred_check
    _
  $region87: #{ggnn_forward.1} parent=0 // pred_check_branch
    %71 = sbr.rel (0) target = $region89
  $region88: #{ggnn_forward.1} parent=0 // pred_region
    _
  $region89: #{ggnn_forward.1} parent=0 // pred_fallthru
    _
  // Predicated region
  $region90: #{ggnn_forward.1} parent=0 // pred_check
    _
  $region91: #{ggnn_forward.1} parent=0 // pred_check_branch
    %73 = sbr.rel (0) target = $region93
  $region92: #{ggnn_forward.1} parent=0 // pred_region
    _
  $region93: #{ggnn_forward.1} parent=0 // pred_fallthru
    _
  %v75 = vld [vmem:[%s0] sm:$0xff]
  %v76 = vld [vmem:[%s0 + $0x8] sm:$0xff]
  %v77 = vld [vmem:[%s0 + $0x10] sm:$0xff]
  %v78 = vld [vmem:[%s0 + $0x18] sm:$0xff]
  %v79 = vld [vmem:[%s0 + $0x20] sm:$0xff]
  %v80 = vld [vmem:[%s0 + $0x28] sm:$0xff]
  %v81 = vld [vmem:[%s0 + $0x30] sm:$0xff]
  %v82 = vld [vmem:[%s0 + $0x38] sm:$0xff]
  %v83 = vld [vmem:[%s0 + $0x40] sm:$0xff]
  %v84 = vld [vmem:[%s0 + $0x48] sm:$0xff]
  %v85 = vld [vmem:[%s0 + $0x50] sm:$0xff]
  %v86 = vld [vmem:[%s0 + $0x58] sm:$0xff]
  %v87 = vld [vmem:[%s0 + $0x60] sm:$0xff]
  %v88 = vld [vmem:[%s0 + $0x68] sm:$0xff]
  %v89 = vld [vmem:[%s0 + $0x70] sm:$0xff]
  %v90 = vld [vmem:[%s0 + $0x78] sm:$0xff]
  %vm91 = vcmask 261120
  %92 = vst.msk [vmem:[#allocation2] sm:$0xff] %vm91, %v75
  %93 = vst.msk [vmem:[#allocation2 + $0x8] sm:$0xff] %vm91, %v76
  %94 = vst.msk [vmem:[#allocation2 + $0x10] sm:$0xff] %vm91, %v77
  %95 = vst.msk [vmem:[#allocation2 + $0x18] sm:$0xff] %vm91, %v78
  %96 = vst.msk [vmem:[#allocation2 + $0x20] sm:$0xff] %vm91, %v79
  %97 = vst.msk [vmem:[#allocation2 + $0x28] sm:$0xff] %vm91, %v80
  %98 = vst.msk [vmem:[#allocation2 + $0x30] sm:$0xff] %vm91, %v81
  %99 = vst.msk [vmem:[#allocation2 + $0x38] sm:$0xff] %vm91, %v82
  %100 = vst.msk [vmem:[#allocation2 + $0x40] sm:$0xff] %vm91, %v83
  %101 = vst.msk [vmem:[#allocation2 + $0x48] sm:$0xff] %vm91, %v84
  %102 = vst.msk [vmem:[#allocation2 + $0x50] sm:$0xff] %vm91, %v85
  %103 = vst.msk [vmem:[#allocation2 + $0x58] sm:$0xff] %vm91, %v86
  %104 = vst.msk [vmem:[#allocation2 + $0x60] sm:$0xff] %vm91, %v87
  %105 = vst.msk [vmem:[#allocation2 + $0x68] sm:$0xff] %vm91, %v88
  %106 = vst.msk [vmem:[#allocation2 + $0x70] sm:$0xff] %vm91, %v89
  %107 = vst.msk [vmem:[#allocation2 + $0x78] sm:$0xff] %vm91, %v90
  %v108 = vld [vmem:[%s1] sm:$0xff]
  %v109 = vld [vmem:[%s1 + $0x8] sm:$0xff]
  %v110 = vld [vmem:[%s1 + $0x10] sm:$0xff]
  %v111 = vld [vmem:[%s1 + $0x18] sm:$0xff]
  %v112 = vld [vmem:[%s1 + $0x20] sm:$0xff]
  %v113 = vld [vmem:[%s1 + $0x28] sm:$0xff]
  %v114 = vld [vmem:[%s1 + $0x30] sm:$0xff]
  %v115 = vld [vmem:[%s1 + $0x38] sm:$0xff]
  %v116 = vld [vmem:[%s1 + $0x40] sm:$0xff]
  %v117 = vld [vmem:[%s1 + $0x48] sm:$0xff]
  %v118 = vld [vmem:[%s1 + $0x50] sm:$0xff]
  %v119 = vld [vmem:[%s1 + $0x58] sm:$0xff]
  %v120 = vld [vmem:[%s1 + $0x60] sm:$0xff]
  %v121 = vld [vmem:[%s1 + $0x68] sm:$0xff]
  %v122 = vld [vmem:[%s1 + $0x70] sm:$0xff]
  %v123 = vld [vmem:[%s1 + $0x78] sm:$0xff]
  %124 = vst.msk [vmem:[#allocation3] sm:$0xff] %vm91, %v108
  %125 = vst.msk [vmem:[#allocation3 + $0x8] sm:$0xff] %vm91, %v109
  %126 = vst.msk [vmem:[#allocation3 + $0x10] sm:$0xff] %vm91, %v110
  %127 = vst.msk [vmem:[#allocation3 + $0x18] sm:$0xff] %vm91, %v111
  %128 = vst.msk [vmem:[#allocation3 + $0x20] sm:$0xff] %vm91, %v112
  %129 = vst.msk [vmem:[#allocation3 + $0x28] sm:$0xff] %vm91, %v113
  %130 = vst.msk [vmem:[#allocation3 + $0x30] sm:$0xff] %vm91, %v114
  %131 = vst.msk [vmem:[#allocation3 + $0x38] sm:$0xff] %vm91, %v115
  %132 = vst.msk [vmem:[#allocation3 + $0x40] sm:$0xff] %vm91, %v116
  %133 = vst.msk [vmem:[#allocation3 + $0x48] sm:$0xff] %vm91, %v117
  %134 = vst.msk [vmem:[#allocation3 + $0x50] sm:$0xff] %vm91, %v118
  %135 = vst.msk [vmem:[#allocation3 + $0x58] sm:$0xff] %vm91, %v119
  %136 = vst.msk [vmem:[#allocation3 + $0x60] sm:$0xff] %vm91, %v120
  %137 = vst.msk [vmem:[#allocation3 + $0x68] sm:$0xff] %vm91, %v121
  %138 = vst.msk [vmem:[#allocation3 + $0x70] sm:$0xff] %vm91, %v122
  %139 = vst.msk [vmem:[#allocation3 + $0x78] sm:$0xff] %vm91, %v123
  loop: start=0, step=1, limit=3
  $region94: #{ggnn_forward.1} parent=0 // loop_pre_header
    _
  $region95: #{ggnn_forward.1} parent=0 // loop_header
    %s141 = sphi 0, %s145
    %p142 = scmp.ge.s32.totalorder %s141, 3
  $region96: #{ggnn_forward.1} parent=0 // loop_header_branch
    %144 = sbr.rel (%p142) target = $region100
  $region97: #{ggnn_forward.1} parent=0 // loop_body
    %v146 = vld [vmem:[#allocation2] sm:$0xff]
    %v147 = vld [vmem:[#allocation2 + $0x8] sm:$0xff]
    %v148 = vld [vmem:[#allocation2 + $0x10] sm:$0xff]
    %v149 = vld [vmem:[#allocation2 + $0x18] sm:$0xff]
    %v150 = vld [vmem:[#allocation2 + $0x20] sm:$0xff]
    %v151 = vld [vmem:[#allocation2 + $0x28] sm:$0xff]
    %v152 = vld [vmem:[#allocation2 + $0x30] sm:$0xff]
    %v153 = vld [vmem:[#allocation2 + $0x38] sm:$0xff]
    %v154 = vld [vmem:[#allocation2 + $0x40] sm:$0xff]
    %v155 = vld [vmem:[#allocation2 + $0x48] sm:$0xff]
    %v156 = vld [vmem:[#allocation2 + $0x50] sm:$0xff]
    %v157 = vld [vmem:[#allocation2 + $0x58] sm:$0xff]
    %v158 = vld [vmem:[#allocation2 + $0x60] sm:$0xff]
    %v159 = vld [vmem:[#allocation2 + $0x68] sm:$0xff]
    %v160 = vld [vmem:[#allocation2 + $0x70] sm:$0xff]
    %v161 = vld [vmem:[#allocation2 + $0x78] sm:$0xff]
    %v162 = vld [vmem:[%s4] sm:$0xf]
    %v163 = vld [vmem:[%s4 + $0x4] sm:$0xf]
    %v164 = vld [vmem:[%s4 + $0x8] sm:$0xf]
    %v165 = vld [vmem:[%s4 + $0xc] sm:$0xf]
    %v166 = vpack.c.bf16 %v147, %v146
    %v167 = vpack.c.bf16 %v149, %v148
    %v168 = vpack.c.bf16 %v151, %v150
    %v169 = vpack.c.bf16 %v153, %v152
    %v170 = vpack.c.bf16 %v155, %v154
    %v171 = vpack.c.bf16 %v157, %v156
    %v172 = vpack.c.bf16 %v159, %v158
    %v173 = vpack.c.bf16 %v161, %v160
    %v174 = vld [vmem:[%s5] sm:$0x1]
    %v176 = vperm.slane %v174, 0
    %v182 = vunpack.c.l.b16 %v162
    %v183 = vunpack.c.l.b16 %v163
    %v184 = vunpack.c.l.b16 %v164
    %v185 = vunpack.c.l.b16 %v165
    %v186 = vpack.c.b16 %v183, %v182
    %v187 = vpack.c.b16 %v185, %v184
    %v191 = vsel %vm91, %v166, 0
    %v194 = vsel %vm91, %v167, 0
    %v197 = vsel %vm91, %v168, 0
    %v200 = vsel %vm91, %v169, 0
    %v203 = vsel %vm91, %v170, 0
    %v206 = vsel %vm91, %v171, 0
    %v209 = vsel %vm91, %v172, 0
    %v212 = vsel %vm91, %v173, 0
    %214 = vmatpush.bf16.msra.mxu0 0
    %215 = vmatpush.bf16.msra.mxu0 0
    %216 = vmatpush.bf16.msra.mxu0 0
    %217 = vmatpush.bf16.msra.mxu0 0
    %218 = vmatpush.bf16.msra.mxu0 0
    %219 = vmatpush.bf16.msra.mxu0 0
    %220 = vmatpush.bf16.msra.mxu0 %v187
    %221 = vmatpush.bf16.msra.mxu0 %v186
    %222 = vmatmul.bf16.gmra.mxu0 %v191
    %v223 = vpop.f32.mrf.mxu0
    %v224 = vadd.f32 %v176, %v223
    %v225 = vpop.f32.mrf.mxu0
    %v226 = vadd.f32 %v176, %v225
    %227 = vmatmul.bf16.gmra.mxu0 %v194
    %v228 = vpop.f32.mrf.mxu0
    %v229 = vadd.f32 %v176, %v228
    %v230 = vpop.f32.mrf.mxu0
    %v231 = vadd.f32 %v176, %v230
    %232 = vmatmul.bf16.gmra.mxu0 %v197
    %v233 = vpop.f32.mrf.mxu0
    %v234 = vadd.f32 %v176, %v233
    %v235 = vpop.f32.mrf.mxu0
    %v236 = vadd.f32 %v176, %v235
    %237 = vmatmul.bf16.gmra.mxu0 %v200
    %v238 = vpop.f32.mrf.mxu0
    %v239 = vadd.f32 %v176, %v238
    %v240 = vpop.f32.mrf.mxu0
    %v241 = vadd.f32 %v176, %v240
    %242 = vmatmul.bf16.gmra.mxu0 %v203
    %v243 = vpop.f32.mrf.mxu0
    %v244 = vadd.f32 %v176, %v243
    %v245 = vpop.f32.mrf.mxu0
    %v246 = vadd.f32 %v176, %v245
    %247 = vmatmul.bf16.gmra.mxu0 %v206
    %v248 = vpop.f32.mrf.mxu0
    %v249 = vadd.f32 %v176, %v248
    %v250 = vpop.f32.mrf.mxu0
    %v251 = vadd.f32 %v176, %v250
    %252 = vmatmul.bf16.gmra.mxu0 %v209
    %v253 = vpop.f32.mrf.mxu0
    %v254 = vadd.f32 %v176, %v253
    %v255 = vpop.f32.mrf.mxu0
    %v256 = vadd.f32 %v176, %v255
    %257 = vmatmul.bf16.gmra.mxu0 %v212
    %v258 = vpop.f32.mrf.mxu0
    %v259 = vadd.f32 %v176, %v258
    %v260 = vpop.f32.mrf.mxu0
    %v261 = vadd.f32 %v176, %v260
    %262 = vdwg.mxu0
    %v263 = vmax.f32 %v224, 0.0
    %v264 = vmax.f32 %v226, 0.0
    %v265 = vmax.f32 %v229, 0.0
    %v266 = vmax.f32 %v231, 0.0
    %v267 = vmax.f32 %v234, 0.0
    %v268 = vmax.f32 %v236, 0.0
    %v269 = vmax.f32 %v239, 0.0
    %v270 = vmax.f32 %v241, 0.0
    %v271 = vmax.f32 %v244, 0.0
    %v272 = vmax.f32 %v246, 0.0
    %v273 = vmax.f32 %v249, 0.0
    %v274 = vmax.f32 %v251, 0.0
    %v275 = vmax.f32 %v254, 0.0
    %v276 = vmax.f32 %v256, 0.0
    %v277 = vmax.f32 %v259, 0.0
    %v278 = vmax.f32 %v261, 0.0
    %v279 = vld [vmem:[%s6] sm:$0xf]
    %v280 = vld [vmem:[%s6 + $0x4] sm:$0xf]
    %v281 = vpack.c.bf16 %v264, %v263
    %v282 = vpack.c.bf16 %v266, %v265
    %v283 = vpack.c.bf16 %v268, %v267
    %v284 = vpack.c.bf16 %v270, %v269
    %v285 = vpack.c.bf16 %v272, %v271
    %v286 = vpack.c.bf16 %v274, %v273
    %v287 = vpack.c.bf16 %v276, %v275
    %v288 = vpack.c.bf16 %v278, %v277
    %v289 = vld [vmem:[%s7] sm:$0x1]
    %v291 = vperm.slane %v289, 0
    %v295 = vunpack.c.l.b16 %v279
    %v296 = vunpack.c.l.b16 %v280
    %v297 = vpack.c.b16 %v296, %v295
    %vm299 = vcmask 130048
    %v301 = vsel %vm299, %v281, 0
    %v304 = vsel %vm299, %v282, 0
    %v307 = vsel %vm299, %v283, 0
    %v310 = vsel %vm299, %v284, 0
    %v313 = vsel %vm299, %v285, 0
    %v316 = vsel %vm299, %v286, 0
    %v319 = vsel %vm299, %v287, 0
    %v322 = vsel %vm299, %v288, 0
    %324 = vmatpush.bf16.msra.mxu0 0
    %325 = vmatpush.bf16.msra.mxu0 0
    %326 = vmatpush.bf16.msra.mxu0 0
    %327 = vmatpush.bf16.msra.mxu0 0
    %328 = vmatpush.bf16.msra.mxu0 0
    %329 = vmatpush.bf16.msra.mxu0 0
    %330 = vmatpush.bf16.msra.mxu0 0
    %331 = vmatpush.bf16.msra.mxu0 %v297
    %332 = vmatmul.bf16.gmra.mxu0 %v301
    %v333 = vpop.f32.mrf.mxu0
    %v334 = vadd.f32 %v291, %v333
    %v335 = vpop.f32.mrf.mxu0
    %v336 = vadd.f32 %v291, %v335
    %337 = vmatmul.bf16.gmra.mxu0 %v304
    %v338 = vpop.f32.mrf.mxu0
    %v339 = vadd.f32 %v291, %v338
    %v340 = vpop.f32.mrf.mxu0
    %v341 = vadd.f32 %v291, %v340
    %342 = vmatmul.bf16.gmra.mxu0 %v307
    %v343 = vpop.f32.mrf.mxu0
    %v344 = vadd.f32 %v291, %v343
    %v345 = vpop.f32.mrf.mxu0
    %v346 = vadd.f32 %v291, %v345
    %347 = vmatmul.bf16.gmra.mxu0 %v310
    %v348 = vpop.f32.mrf.mxu0
    %v349 = vadd.f32 %v291, %v348
    %v350 = vpop.f32.mrf.mxu0
    %v351 = vadd.f32 %v291, %v350
    %352 = vmatmul.bf16.gmra.mxu0 %v313
    %v353 = vpop.f32.mrf.mxu0
    %v354 = vadd.f32 %v291, %v353
    %v355 = vpop.f32.mrf.mxu0
    %v356 = vadd.f32 %v291, %v355
    %357 = vmatmul.bf16.gmra.mxu0 %v316
    %v358 = vpop.f32.mrf.mxu0
    %v359 = vadd.f32 %v291, %v358
    %v360 = vpop.f32.mrf.mxu0
    %v361 = vadd.f32 %v291, %v360
    %362 = vmatmul.bf16.gmra.mxu0 %v319
    %v363 = vpop.f32.mrf.mxu0
    %v364 = vadd.f32 %v291, %v363
    %v365 = vpop.f32.mrf.mxu0
    %v366 = vadd.f32 %v291, %v365
    %367 = vmatmul.bf16.gmra.mxu0 %v322
    %v368 = vpop.f32.mrf.mxu0
    %v369 = vadd.f32 %v291, %v368
    %v370 = vpop.f32.mrf.mxu0
    %v371 = vadd.f32 %v291, %v370
    %372 = vdwg.mxu0
    %v373 = vmax.f32 %v334, 0.0
    %v374 = vmax.f32 %v336, 0.0
    %v375 = vmax.f32 %v339, 0.0
    %v376 = vmax.f32 %v341, 0.0
    %v377 = vmax.f32 %v344, 0.0
    %v378 = vmax.f32 %v346, 0.0
    %v379 = vmax.f32 %v349, 0.0
    %v380 = vmax.f32 %v351, 0.0
    %v381 = vmax.f32 %v354, 0.0
    %v382 = vmax.f32 %v356, 0.0
    %v383 = vmax.f32 %v359, 0.0
    %v384 = vmax.f32 %v361, 0.0
    %v385 = vmax.f32 %v364, 0.0
    %v386 = vmax.f32 %v366, 0.0
    %v387 = vmax.f32 %v369, 0.0
    %v388 = vmax.f32 %v371, 0.0
    %vm389 = vcmask 64512
    %390 = vst.msk [vmem:[#allocation4] sm:$0xff] %vm389, %v373
    %391 = vst.msk [vmem:[#allocation4 + $0x8] sm:$0xff] %vm389, %v374
    %392 = vst.msk [vmem:[#allocation4 + $0x10] sm:$0xff] %vm389, %v375
    %393 = vst.msk [vmem:[#allocation4 + $0x18] sm:$0xff] %vm389, %v376
    %394 = vst.msk [vmem:[#allocation4 + $0x20] sm:$0xff] %vm389, %v377
    %395 = vst.msk [vmem:[#allocation4 + $0x28] sm:$0xff] %vm389, %v378
    %396 = vst.msk [vmem:[#allocation4 + $0x30] sm:$0xff] %vm389, %v379
    %397 = vst.msk [vmem:[#allocation4 + $0x38] sm:$0xff] %vm389, %v380
    %398 = vst.msk [vmem:[#allocation4 + $0x40] sm:$0xff] %vm389, %v381
    %399 = vst.msk [vmem:[#allocation4 + $0x48] sm:$0xff] %vm389, %v382
    %400 = vst.msk [vmem:[#allocation4 + $0x50] sm:$0xff] %vm389, %v383
    %401 = vst.msk [vmem:[#allocation4 + $0x58] sm:$0xff] %vm389, %v384
    %402 = vst.msk [vmem:[#allocation4 + $0x60] sm:$0xff] %vm389, %v385
    %403 = vst.msk [vmem:[#allocation4 + $0x68] sm:$0xff] %vm389, %v386
    %404 = vst.msk [vmem:[#allocation4 + $0x70] sm:$0xff] %vm389, %v387
    %405 = vst.msk [vmem:[#allocation4 + $0x78] sm:$0xff] %vm389, %v388
    %v406 = vld [vmem:[#allocation3] sm:$0xff]
    %v407 = vld [vmem:[#allocation3 + $0x8] sm:$0xff]
    %v408 = vld [vmem:[#allocation3 + $0x10] sm:$0xff]
    %v409 = vld [vmem:[#allocation3 + $0x18] sm:$0xff]
    %v410 = vld [vmem:[#allocation3 + $0x20] sm:$0xff]
    %v411 = vld [vmem:[#allocation3 + $0x28] sm:$0xff]
    %v412 = vld [vmem:[#allocation3 + $0x30] sm:$0xff]
    %v413 = vld [vmem:[#allocation3 + $0x38] sm:$0xff]
    %v414 = vld [vmem:[#allocation3 + $0x40] sm:$0xff]
    %v415 = vld [vmem:[#allocation3 + $0x48] sm:$0xff]
    %v416 = vld [vmem:[#allocation3 + $0x50] sm:$0xff]
    %v417 = vld [vmem:[#allocation3 + $0x58] sm:$0xff]
    %v418 = vld [vmem:[#allocation3 + $0x60] sm:$0xff]
    %v419 = vld [vmem:[#allocation3 + $0x68] sm:$0xff]
    %v420 = vld [vmem:[#allocation3 + $0x70] sm:$0xff]
    %v421 = vld [vmem:[#allocation3 + $0x78] sm:$0xff]
    %s422 = scalar_lea.vmem %s4, 16
    %v423 = vld [vmem:[%s422] sm:$0xf]
    %v424 = vld [vmem:[%s422 + $0x4] sm:$0xf]
    %v425 = vld [vmem:[%s422 + $0x8] sm:$0xf]
    %v426 = vld [vmem:[%s422 + $0xc] sm:$0xf]
    %v427 = vpack.c.bf16 %v407, %v406
    %v428 = vpack.c.bf16 %v409, %v408
    %v429 = vpack.c.bf16 %v411, %v410
    %v430 = vpack.c.bf16 %v413, %v412
    %v431 = vpack.c.bf16 %v415, %v414
    %v432 = vpack.c.bf16 %v417, %v416
    %v433 = vpack.c.bf16 %v419, %v418
    %v434 = vpack.c.bf16 %v421, %v420
    %s435 = scalar_lea.vmem %s5, 1
    %v436 = vld [vmem:[%s435] sm:$0x1]
    %v438 = vperm.slane %v436, 0
    %v444 = vunpack.c.l.b16 %v423
    %v445 = vunpack.c.l.b16 %v424
    %v446 = vunpack.c.l.b16 %v425
    %v447 = vunpack.c.l.b16 %v426
    %v448 = vpack.c.b16 %v445, %v444
    %v449 = vpack.c.b16 %v447, %v446
    %v453 = vsel %vm91, %v427, 0
    %v456 = vsel %vm91, %v428, 0
    %v459 = vsel %vm91, %v429, 0
    %v462 = vsel %vm91, %v430, 0
    %v465 = vsel %vm91, %v431, 0
    %v468 = vsel %vm91, %v432, 0
    %v471 = vsel %vm91, %v433, 0
    %v474 = vsel %vm91, %v434, 0
    %476 = vmatpush.bf16.msra.mxu0 0
    %477 = vmatpush.bf16.msra.mxu0 0
    %478 = vmatpush.bf16.msra.mxu0 0
    %479 = vmatpush.bf16.msra.mxu0 0
    %480 = vmatpush.bf16.msra.mxu0 0
    %481 = vmatpush.bf16.msra.mxu0 0
    %482 = vmatpush.bf16.msra.mxu0 %v449
    %483 = vmatpush.bf16.msra.mxu0 %v448
    %484 = vmatmul.bf16.gmra.mxu0 %v453
    %v485 = vpop.f32.mrf.mxu0
    %v486 = vadd.f32 %v438, %v485
    %v487 = vpop.f32.mrf.mxu0
    %v488 = vadd.f32 %v438, %v487
    %489 = vmatmul.bf16.gmra.mxu0 %v456
    %v490 = vpop.f32.mrf.mxu0
    %v491 = vadd.f32 %v438, %v490
    %v492 = vpop.f32.mrf.mxu0
    %v493 = vadd.f32 %v438, %v492
    %494 = vmatmul.bf16.gmra.mxu0 %v459
    %v495 = vpop.f32.mrf.mxu0
    %v496 = vadd.f32 %v438, %v495
    %v497 = vpop.f32.mrf.mxu0
    %v498 = vadd.f32 %v438, %v497
    %499 = vmatmul.bf16.gmra.mxu0 %v462
    %v500 = vpop.f32.mrf.mxu0
    %v501 = vadd.f32 %v438, %v500
    %v502 = vpop.f32.mrf.mxu0
    %v503 = vadd.f32 %v438, %v502
    %504 = vmatmul.bf16.gmra.mxu0 %v465
    %v505 = vpop.f32.mrf.mxu0
    %v506 = vadd.f32 %v438, %v505
    %v507 = vpop.f32.mrf.mxu0
    %v508 = vadd.f32 %v438, %v507
    %509 = vmatmul.bf16.gmra.mxu0 %v468
    %v510 = vpop.f32.mrf.mxu0
    %v511 = vadd.f32 %v438, %v510
    %v512 = vpop.f32.mrf.mxu0
    %v513 = vadd.f32 %v438, %v512
    %514 = vmatmul.bf16.gmra.mxu0 %v471
    %v515 = vpop.f32.mrf.mxu0
    %v516 = vadd.f32 %v438, %v515
    %v517 = vpop.f32.mrf.mxu0
    %v518 = vadd.f32 %v438, %v517
    %519 = vmatmul.bf16.gmra.mxu0 %v474
    %v520 = vpop.f32.mrf.mxu0
    %v521 = vadd.f32 %v438, %v520
    %v522 = vpop.f32.mrf.mxu0
    %v523 = vadd.f32 %v438, %v522
    %524 = vdwg.mxu0
    %v525 = vmax.f32 %v486, 0.0
    %v526 = vmax.f32 %v488, 0.0
    %v527 = vmax.f32 %v491, 0.0
    %v528 = vmax.f32 %v493, 0.0
    %v529 = vmax.f32 %v496, 0.0
    %v530 = vmax.f32 %v498, 0.0
    %v531 = vmax.f32 %v501, 0.0
    %v532 = vmax.f32 %v503, 0.0
    %v533 = vmax.f32 %v506, 0.0
    %v534 = vmax.f32 %v508, 0.0
    %v535 = vmax.f32 %v511, 0.0
    %v536 = vmax.f32 %v513, 0.0
    %v537 = vmax.f32 %v516, 0.0
    %v538 = vmax.f32 %v518, 0.0
    %v539 = vmax.f32 %v521, 0.0
    %v540 = vmax.f32 %v523, 0.0
    %s541 = scalar_lea.vmem %s6, 8
    %v542 = vld [vmem:[%s541] sm:$0xf]
    %v543 = vld [vmem:[%s541 + $0x4] sm:$0xf]
    %v544 = vpack.c.bf16 %v526, %v525
    %v545 = vpack.c.bf16 %v528, %v527
    %v546 = vpack.c.bf16 %v530, %v529
    %v547 = vpack.c.bf16 %v532, %v531
    %v548 = vpack.c.bf16 %v534, %v533
    %v549 = vpack.c.bf16 %v536, %v535
    %v550 = vpack.c.bf16 %v538, %v537
    %v551 = vpack.c.bf16 %v540, %v539
    %s552 = scalar_lea.vmem %s7, 1
    %v553 = vld [vmem:[%s552] sm:$0x1]
    %v555 = vperm.slane %v553, 0
    %v559 = vunpack.c.l.b16 %v542
    %v560 = vunpack.c.l.b16 %v543
    %v561 = vpack.c.b16 %v560, %v559
    %v564 = vsel %vm299, %v544, 0
    %v567 = vsel %vm299, %v545, 0
    %v570 = vsel %vm299, %v546, 0
    %v573 = vsel %vm299, %v547, 0
    %v576 = vsel %vm299, %v548, 0
    %v579 = vsel %vm299, %v549, 0
    %v582 = vsel %vm299, %v550, 0
    %v585 = vsel %vm299, %v551, 0
    %587 = vmatpush.bf16.msra.mxu0 0
    %588 = vmatpush.bf16.msra.mxu0 0
    %589 = vmatpush.bf16.msra.mxu0 0
    %590 = vmatpush.bf16.msra.mxu0 0
    %591 = vmatpush.bf16.msra.mxu0 0
    %592 = vmatpush.bf16.msra.mxu0 0
    %593 = vmatpush.bf16.msra.mxu0 0
    %594 = vmatpush.bf16.msra.mxu0 %v561
    %595 = vmatmul.bf16.gmra.mxu0 %v564
    %v596 = vpop.f32.mrf.mxu0
    %v597 = vadd.f32 %v555, %v596
    %v598 = vpop.f32.mrf.mxu0
    %v599 = vadd.f32 %v555, %v598
    %600 = vmatmul.bf16.gmra.mxu0 %v567
    %v601 = vpop.f32.mrf.mxu0
    %v602 = vadd.f32 %v555, %v601
    %v603 = vpop.f32.mrf.mxu0
    %v604 = vadd.f32 %v555, %v603
    %605 = vmatmul.bf16.gmra.mxu0 %v570
    %v606 = vpop.f32.mrf.mxu0
    %v607 = vadd.f32 %v555, %v606
    %v608 = vpop.f32.mrf.mxu0
    %v609 = vadd.f32 %v555, %v608
    %610 = vmatmul.bf16.gmra.mxu0 %v573
    %v611 = vpop.f32.mrf.mxu0
    %v612 = vadd.f32 %v555, %v611
    %v613 = vpop.f32.mrf.mxu0
    %v614 = vadd.f32 %v555, %v613
    %615 = vmatmul.bf16.gmra.mxu0 %v576
    %v616 = vpop.f32.mrf.mxu0
    %v617 = vadd.f32 %v555, %v616
    %v618 = vpop.f32.mrf.mxu0
    %v619 = vadd.f32 %v555, %v618
    %620 = vmatmul.bf16.gmra.mxu0 %v579
    %v621 = vpop.f32.mrf.mxu0
    %v622 = vadd.f32 %v555, %v621
    %v623 = vpop.f32.mrf.mxu0
    %v624 = vadd.f32 %v555, %v623
    %625 = vmatmul.bf16.gmra.mxu0 %v582
    %v626 = vpop.f32.mrf.mxu0
    %v627 = vadd.f32 %v555, %v626
    %v628 = vpop.f32.mrf.mxu0
    %v629 = vadd.f32 %v555, %v628
    %630 = vmatmul.bf16.gmra.mxu0 %v585
    %v631 = vpop.f32.mrf.mxu0
    %v632 = vadd.f32 %v555, %v631
    %v633 = vpop.f32.mrf.mxu0
    %v634 = vadd.f32 %v555, %v633
    %635 = vdwg.mxu0
    %v636 = vmax.f32 %v597, 0.0
    %v637 = vmax.f32 %v599, 0.0
    %v638 = vmax.f32 %v602, 0.0
    %v639 = vmax.f32 %v604, 0.0
    %v640 = vmax.f32 %v607, 0.0
    %v641 = vmax.f32 %v609, 0.0
    %v642 = vmax.f32 %v612, 0.0
    %v643 = vmax.f32 %v614, 0.0
    %v644 = vmax.f32 %v617, 0.0
    %v645 = vmax.f32 %v619, 0.0
    %v646 = vmax.f32 %v622, 0.0
    %v647 = vmax.f32 %v624, 0.0
    %v648 = vmax.f32 %v627, 0.0
    %v649 = vmax.f32 %v629, 0.0
    %v650 = vmax.f32 %v632, 0.0
    %v651 = vmax.f32 %v634, 0.0
    %652 = vst.msk [vmem:[#allocation5] sm:$0xff] %vm389, %v636
    %653 = vst.msk [vmem:[#allocation5 + $0x8] sm:$0xff] %vm389, %v637
    %654 = vst.msk [vmem:[#allocation5 + $0x10] sm:$0xff] %vm389, %v638
    %655 = vst.msk [vmem:[#allocation5 + $0x18] sm:$0xff] %vm389, %v639
    %656 = vst.msk [vmem:[#allocation5 + $0x20] sm:$0xff] %vm389, %v640
    %657 = vst.msk [vmem:[#allocation5 + $0x28] sm:$0xff] %vm389, %v641
    %658 = vst.msk [vmem:[#allocation5 + $0x30] sm:$0xff] %vm389, %v642
    %659 = vst.msk [vmem:[#allocation5 + $0x38] sm:$0xff] %vm389, %v643
    %660 = vst.msk [vmem:[#allocation5 + $0x40] sm:$0xff] %vm389, %v644
    %661 = vst.msk [vmem:[#allocation5 + $0x48] sm:$0xff] %vm389, %v645
    %662 = vst.msk [vmem:[#allocation5 + $0x50] sm:$0xff] %vm389, %v646
    %663 = vst.msk [vmem:[#allocation5 + $0x58] sm:$0xff] %vm389, %v647
    %664 = vst.msk [vmem:[#allocation5 + $0x60] sm:$0xff] %vm389, %v648
    %665 = vst.msk [vmem:[#allocation5 + $0x68] sm:$0xff] %vm389, %v649
    %666 = vst.msk [vmem:[#allocation5 + $0x70] sm:$0xff] %vm389, %v650
    %667 = vst.msk [vmem:[#allocation5 + $0x78] sm:$0xff] %vm389, %v651
    %v668 = vld [vmem:[%s2] sm:$0xff]
    %v669 = vld [vmem:[%s2 + $0x8] sm:$0xff]
    %v670 = vld [vmem:[%s2 + $0x10] sm:$0xff]
    %v671 = vld [vmem:[%s2 + $0x18] sm:$0xff]
    %v672 = vld [vmem:[%s2 + $0x20] sm:$0xff]
    %v673 = vld [vmem:[%s2 + $0x28] sm:$0xff]
    %v674 = vld [vmem:[%s2 + $0x30] sm:$0xff]
    %v675 = vld [vmem:[%s2 + $0x38] sm:$0xff]
    %v676 = vld [vmem:[%s2 + $0x40] sm:$0xff]
    %v677 = vld [vmem:[%s2 + $0x48] sm:$0xff]
    %v678 = vld [vmem:[%s2 + $0x50] sm:$0xff]
    %v679 = vld [vmem:[%s2 + $0x58] sm:$0xff]
    %v680 = vld [vmem:[%s2 + $0x60] sm:$0xff]
    %v681 = vld [vmem:[%s2 + $0x68] sm:$0xff]
    %v682 = vld [vmem:[%s2 + $0x70] sm:$0xff]
    %v683 = vld [vmem:[%s2 + $0x78] sm:$0xff]
    %v684 = vld [vmem:[%s2 + $0x80] sm:$0xff]
    %v685 = vld [vmem:[%s2 + $0x88] sm:$0xff]
    %v686 = vld [vmem:[%s2 + $0x90] sm:$0xff]
    %v687 = vld [vmem:[%s2 + $0x98] sm:$0xff]
    %v688 = vld [vmem:[%s2 + $0xa0] sm:$0xff]
    %v689 = vld [vmem:[%s2 + $0xa8] sm:$0xff]
    %v690 = vld [vmem:[%s2 + $0xb0] sm:$0xff]
    %v691 = vld [vmem:[%s2 + $0xb8] sm:$0xff]
    %v692 = vld [vmem:[%s2 + $0xc0] sm:$0xff]
    %v693 = vld [vmem:[%s2 + $0xc8] sm:$0xff]
    %v694 = vld [vmem:[%s2 + $0xd0] sm:$0xff]
    %v695 = vld [vmem:[%s2 + $0xd8] sm:$0xff]
    %v696 = vld [vmem:[%s2 + $0xe0] sm:$0xff]
    %v697 = vld [vmem:[%s2 + $0xe8] sm:$0xff]
    %v698 = vld [vmem:[%s2 + $0xf0] sm:$0xff]
    %v699 = vld [vmem:[%s2 + $0xf8] sm:$0xff]
    %v700 = vld [vmem:[#allocation5] sm:$0xff]
    %v701 = vld [vmem:[#allocation5 + $0x8] sm:$0xff]
    %v702 = vld [vmem:[#allocation5 + $0x10] sm:$0xff]
    %v703 = vld [vmem:[#allocation5 + $0x18] sm:$0xff]
    %v704 = vld [vmem:[#allocation5 + $0x20] sm:$0xff]
    %v705 = vld [vmem:[#allocation5 + $0x28] sm:$0xff]
    %v706 = vld [vmem:[#allocation5 + $0x30] sm:$0xff]
    %v707 = vld [vmem:[#allocation5 + $0x38] sm:$0xff]
    %v708 = vld [vmem:[#allocation5 + $0x40] sm:$0xff]
    %v709 = vld [vmem:[#allocation5 + $0x48] sm:$0xff]
    %v710 = vld [vmem:[#allocation5 + $0x50] sm:$0xff]
    %v711 = vld [vmem:[#allocation5 + $0x58] sm:$0xff]
    %v712 = vld [vmem:[#allocation5 + $0x60] sm:$0xff]
    %v713 = vld [vmem:[#allocation5 + $0x68] sm:$0xff]
    %v714 = vld [vmem:[#allocation5 + $0x70] sm:$0xff]
    %v715 = vld [vmem:[#allocation5 + $0x78] sm:$0xff]
    %716 = vmatpush.msra.mxu0 %v715
    %717 = vmatpush.msra.mxu0 %v714
    %718 = vmatpush.msra.mxu0 %v713
    %719 = vmatpush.msra.mxu0 %v712
    %720 = vmatpush.msra.mxu0 %v711
    %721 = vmatpush.msra.mxu0 %v710
    %722 = vmatpush.msra.mxu0 %v709
    %723 = vmatpush.msra.mxu0 %v708
    %724 = vmatpush.msra.mxu0 %v707
    %725 = vmatpush.msra.mxu0 %v706
    %726 = vmatpush.msra.mxu0 %v705
    %727 = vmatpush.msra.mxu0 %v704
    %728 = vmatpush.msra.mxu0 %v703
    %729 = vmatpush.msra.mxu0 %v702
    %730 = vmatpush.msra.mxu0 %v701
    %731 = vmatpush.msra.mxu0 %v700
    %732 = vmatmul.f32.gmra.mxu0 %v668
    %v733 = vpop.f32.mrf.mxu0
    %v734 = vadd.f32 0.0, %v733
    %735 = vmatmul.f32.gmra.mxu0 %v669
    %v736 = vpop.f32.mrf.mxu0
    %v737 = vadd.f32 0.0, %v736
    %738 = vmatmul.f32.gmra.mxu0 %v670
    %v739 = vpop.f32.mrf.mxu0
    %v740 = vadd.f32 0.0, %v739
    %741 = vmatmul.f32.gmra.mxu0 %v671
    %v742 = vpop.f32.mrf.mxu0
    %v743 = vadd.f32 0.0, %v742
    %744 = vmatmul.f32.gmra.mxu0 %v672
    %v745 = vpop.f32.mrf.mxu0
    %v746 = vadd.f32 0.0, %v745
    %747 = vmatmul.f32.gmra.mxu0 %v673
    %v748 = vpop.f32.mrf.mxu0
    %v749 = vadd.f32 0.0, %v748
    %750 = vmatmul.f32.gmra.mxu0 %v674
    %v751 = vpop.f32.mrf.mxu0
    %v752 = vadd.f32 0.0, %v751
    %753 = vmatmul.f32.gmra.mxu0 %v675
    %v754 = vpop.f32.mrf.mxu0
    %v755 = vadd.f32 0.0, %v754
    %756 = vmatmul.f32.gmra.mxu0 %v676
    %v757 = vpop.f32.mrf.mxu0
    %v758 = vadd.f32 0.0, %v757
    %759 = vmatmul.f32.gmra.mxu0 %v677
    %v760 = vpop.f32.mrf.mxu0
    %v761 = vadd.f32 0.0, %v760
    %762 = vmatmul.f32.gmra.mxu0 %v678
    %v763 = vpop.f32.mrf.mxu0
    %v764 = vadd.f32 0.0, %v763
    %765 = vmatmul.f32.gmra.mxu0 %v679
    %v766 = vpop.f32.mrf.mxu0
    %v767 = vadd.f32 0.0, %v766
    %768 = vmatmul.f32.gmra.mxu0 %v680
    %v769 = vpop.f32.mrf.mxu0
    %v770 = vadd.f32 0.0, %v769
    %771 = vmatmul.f32.gmra.mxu0 %v681
    %v772 = vpop.f32.mrf.mxu0
    %v773 = vadd.f32 0.0, %v772
    %774 = vmatmul.f32.gmra.mxu0 %v682
    %v775 = vpop.f32.mrf.mxu0
    %v776 = vadd.f32 0.0, %v775
    %777 = vmatmul.f32.gmra.mxu0 %v683
    %v778 = vpop.f32.mrf.mxu0
    %v779 = vadd.f32 0.0, %v778
    %780 = vmatmul.f32.gmra.mxu0 %v684
    %v781 = vpop.f32.mrf.mxu0
    %v782 = vadd.f32 0.0, %v781
    %783 = vmatmul.f32.gmra.mxu0 %v685
    %v784 = vpop.f32.mrf.mxu0
    %v785 = vadd.f32 0.0, %v784
    %786 = vmatmul.f32.gmra.mxu0 %v686
    %v787 = vpop.f32.mrf.mxu0
    %v788 = vadd.f32 0.0, %v787
    %789 = vmatmul.f32.gmra.mxu0 %v687
    %v790 = vpop.f32.mrf.mxu0
    %v791 = vadd.f32 0.0, %v790
    %792 = vmatmul.f32.gmra.mxu0 %v688
    %v793 = vpop.f32.mrf.mxu0
    %v794 = vadd.f32 0.0, %v793
    %795 = vmatmul.f32.gmra.mxu0 %v689
    %v796 = vpop.f32.mrf.mxu0
    %v797 = vadd.f32 0.0, %v796
    %798 = vmatmul.f32.gmra.mxu0 %v690
    %v799 = vpop.f32.mrf.mxu0
    %v800 = vadd.f32 0.0, %v799
    %801 = vmatmul.f32.gmra.mxu0 %v691
    %v802 = vpop.f32.mrf.mxu0
    %v803 = vadd.f32 0.0, %v802
    %804 = vmatmul.f32.gmra.mxu0 %v692
    %v805 = vpop.f32.mrf.mxu0
    %v806 = vadd.f32 0.0, %v805
    %807 = vmatmul.f32.gmra.mxu0 %v693
    %v808 = vpop.f32.mrf.mxu0
    %v809 = vadd.f32 0.0, %v808
    %810 = vmatmul.f32.gmra.mxu0 %v694
    %v811 = vpop.f32.mrf.mxu0
    %v812 = vadd.f32 0.0, %v811
    %813 = vmatmul.f32.gmra.mxu0 %v695
    %v814 = vpop.f32.mrf.mxu0
    %v815 = vadd.f32 0.0, %v814
    %816 = vmatmul.f32.gmra.mxu0 %v696
    %v817 = vpop.f32.mrf.mxu0
    %v818 = vadd.f32 0.0, %v817
    %819 = vmatmul.f32.gmra.mxu0 %v697
    %v820 = vpop.f32.mrf.mxu0
    %v821 = vadd.f32 0.0, %v820
    %822 = vmatmul.f32.gmra.mxu0 %v698
    %v823 = vpop.f32.mrf.mxu0
    %v824 = vadd.f32 0.0, %v823
    %825 = vmatmul.f32.gmra.mxu0 %v699
    %v826 = vpop.f32.mrf.mxu0
    %v827 = vadd.f32 0.0, %v826
    %828 = vdwg.mxu0
    %v829 = vmul.f32 %v734, %v734
    %v830 = vmul.f32 %v737, %v737
    %v831 = vmul.f32 %v740, %v740
    %v832 = vmul.f32 %v743, %v743
    %v833 = vmul.f32 %v746, %v746
    %v834 = vmul.f32 %v749, %v749
    %v835 = vmul.f32 %v752, %v752
    %v836 = vmul.f32 %v755, %v755
    %v837 = vmul.f32 %v758, %v758
    %v838 = vmul.f32 %v761, %v761
    %v839 = vmul.f32 %v764, %v764
    %v840 = vmul.f32 %v767, %v767
    %v841 = vmul.f32 %v770, %v770
    %v842 = vmul.f32 %v773, %v773
    %v843 = vmul.f32 %v776, %v776
    %v844 = vmul.f32 %v779, %v779
    %v845 = vmul.f32 %v782, %v782
    %v846 = vmul.f32 %v785, %v785
    %v847 = vmul.f32 %v788, %v788
    %v848 = vmul.f32 %v791, %v791
    %v849 = vmul.f32 %v794, %v794
    %v850 = vmul.f32 %v797, %v797
    %v851 = vmul.f32 %v800, %v800
    %v852 = vmul.f32 %v803, %v803
    %v853 = vmul.f32 %v806, %v806
    %v854 = vmul.f32 %v809, %v809
    %v855 = vmul.f32 %v812, %v812
    %v856 = vmul.f32 %v815, %v815
    %v857 = vmul.f32 %v818, %v818
    %v858 = vmul.f32 %v821, %v821
    %v859 = vmul.f32 %v824, %v824
    %v860 = vmul.f32 %v827, %v827
    %v861 = vsel %vm389, %v829, 0.0
    %862 = vadd.xlane.f32.xlu0 %v861
    %v863 = vpop.xlane.xlu0 %862
    %v864 = vsel %vm389, %v830, 0.0
    %865 = vadd.xlane.f32.xlu0 %v864
    %v866 = vpop.xlane.xlu0 %865
    %v867 = vsel %vm389, %v831, 0.0
    %868 = vadd.xlane.f32.xlu0 %v867
    %v869 = vpop.xlane.xlu0 %868
    %v870 = vsel %vm389, %v832, 0.0
    %871 = vadd.xlane.f32.xlu0 %v870
    %v872 = vpop.xlane.xlu0 %871
    %v873 = vsel %vm389, %v833, 0.0
    %874 = vadd.xlane.f32.xlu0 %v873
    %v875 = vpop.xlane.xlu0 %874
    %v876 = vsel %vm389, %v834, 0.0
    %877 = vadd.xlane.f32.xlu0 %v876
    %v878 = vpop.xlane.xlu0 %877
    %v879 = vsel %vm389, %v835, 0.0
    %880 = vadd.xlane.f32.xlu0 %v879
    %v881 = vpop.xlane.xlu0 %880
    %v882 = vsel %vm389, %v836, 0.0
    %883 = vadd.xlane.f32.xlu0 %v882
    %v884 = vpop.xlane.xlu0 %883
    %v885 = vsel %vm389, %v837, 0.0
    %886 = vadd.xlane.f32.xlu0 %v885
    %v887 = vpop.xlane.xlu0 %886
    %v888 = vsel %vm389, %v838, 0.0
    %889 = vadd.xlane.f32.xlu0 %v888
    %v890 = vpop.xlane.xlu0 %889
    %v891 = vsel %vm389, %v839, 0.0
    %892 = vadd.xlane.f32.xlu0 %v891
    %v893 = vpop.xlane.xlu0 %892
    %v894 = vsel %vm389, %v840, 0.0
    %895 = vadd.xlane.f32.xlu0 %v894
    %v896 = vpop.xlane.xlu0 %895
    %v897 = vsel %vm389, %v841, 0.0
    %898 = vadd.xlane.f32.xlu0 %v897
    %v899 = vpop.xlane.xlu0 %898
    %v900 = vsel %vm389, %v842, 0.0
    %901 = vadd.xlane.f32.xlu0 %v900
    %v902 = vpop.xlane.xlu0 %901
    %v903 = vsel %vm389, %v843, 0.0
    %904 = vadd.xlane.f32.xlu0 %v903
    %v905 = vpop.xlane.xlu0 %904
    %v906 = vsel %vm389, %v844, 0.0
    %907 = vadd.xlane.f32.xlu0 %v906
    %v908 = vpop.xlane.xlu0 %907
    %v909 = vsel %vm389, %v845, 0.0
    %910 = vadd.xlane.f32.xlu0 %v909
    %v911 = vpop.xlane.xlu0 %910
    %v912 = vsel %vm389, %v846, 0.0
    %913 = vadd.xlane.f32.xlu0 %v912
    %v914 = vpop.xlane.xlu0 %913
    %v915 = vsel %vm389, %v847, 0.0
    %916 = vadd.xlane.f32.xlu0 %v915
    %v917 = vpop.xlane.xlu0 %916
    %v918 = vsel %vm389, %v848, 0.0
    %919 = vadd.xlane.f32.xlu0 %v918
    %v920 = vpop.xlane.xlu0 %919
    %v921 = vsel %vm389, %v849, 0.0
    %922 = vadd.xlane.f32.xlu0 %v921
    %v923 = vpop.xlane.xlu0 %922
    %v924 = vsel %vm389, %v850, 0.0
    %925 = vadd.xlane.f32.xlu0 %v924
    %v926 = vpop.xlane.xlu0 %925
    %v927 = vsel %vm389, %v851, 0.0
    %928 = vadd.xlane.f32.xlu0 %v927
    %v929 = vpop.xlane.xlu0 %928
    %v930 = vsel %vm389, %v852, 0.0
    %931 = vadd.xlane.f32.xlu0 %v930
    %v932 = vpop.xlane.xlu0 %931
    %v933 = vsel %vm389, %v853, 0.0
    %934 = vadd.xlane.f32.xlu0 %v933
    %v935 = vpop.xlane.xlu0 %934
    %v936 = vsel %vm389, %v854, 0.0
    %937 = vadd.xlane.f32.xlu0 %v936
    %v938 = vpop.xlane.xlu0 %937
    %v939 = vsel %vm389, %v855, 0.0
    %940 = vadd.xlane.f32.xlu0 %v939
    %v941 = vpop.xlane.xlu0 %940
    %v942 = vsel %vm389, %v856, 0.0
    %943 = vadd.xlane.f32.xlu0 %v942
    %v944 = vpop.xlane.xlu0 %943
    %v945 = vsel %vm389, %v857, 0.0
    %946 = vadd.xlane.f32.xlu0 %v945
    %v947 = vpop.xlane.xlu0 %946
    %v948 = vsel %vm389, %v858, 0.0
    %949 = vadd.xlane.f32.xlu0 %v948
    %v950 = vpop.xlane.xlu0 %949
    %v951 = vsel %vm389, %v859, 0.0
    %952 = vadd.xlane.f32.xlu0 %v951
    %v953 = vpop.xlane.xlu0 %952
    %v954 = vsel %vm389, %v860, 0.0
    %955 = vadd.xlane.f32.xlu0 %v954
    %v956 = vpop.xlane.xlu0 %955
    %v957 = vmax.f32 %v863, 0.0001
    %v958 = vmax.f32 %v866, 0.0001
    %v959 = vmax.f32 %v869, 0.0001
    %v960 = vmax.f32 %v872, 0.0001
    %v961 = vmax.f32 %v875, 0.0001
    %v962 = vmax.f32 %v878, 0.0001
    %v963 = vmax.f32 %v881, 0.0001
    %v964 = vmax.f32 %v884, 0.0001
    %v965 = vmax.f32 %v887, 0.0001
    %v966 = vmax.f32 %v890, 0.0001
    %v967 = vmax.f32 %v893, 0.0001
    %v968 = vmax.f32 %v896, 0.0001
    %v969 = vmax.f32 %v899, 0.0001
    %v970 = vmax.f32 %v902, 0.0001
    %v971 = vmax.f32 %v905, 0.0001
    %v972 = vmax.f32 %v908, 0.0001
    %v973 = vmax.f32 %v911, 0.0001
    %v974 = vmax.f32 %v914, 0.0001
    %v975 = vmax.f32 %v917, 0.0001
    %v976 = vmax.f32 %v920, 0.0001
    %v977 = vmax.f32 %v923, 0.0001
    %v978 = vmax.f32 %v926, 0.0001
    %v979 = vmax.f32 %v929, 0.0001
    %v980 = vmax.f32 %v932, 0.0001
    %v981 = vmax.f32 %v935, 0.0001
    %v982 = vmax.f32 %v938, 0.0001
    %v983 = vmax.f32 %v941, 0.0001
    %v984 = vmax.f32 %v944, 0.0001
    %v985 = vmax.f32 %v947, 0.0001
    %v986 = vmax.f32 %v950, 0.0001
    %v987 = vmax.f32 %v953, 0.0001
    %v988 = vmax.f32 %v956, 0.0001
    %v989 = vrsqrt.pop %v957
    %v990 = vmul.f32 %v989, %v957
    %v991 = vmul.f32 %v990, %v989
    %v992 = vmul.f32 0.5, %v991
    %v993 = vsub.f32 1.5, %v992
    %v994 = vmul.f32 %v989, %v993
    %vm995 = vweird.f32 %v957
    %vm996 = vweird.f32 %v989
    %vm997 = vmor %vm995, %vm996
    %v998 = vsel %vm997, %v989, %v994
    %v999 = vrsqrt.pop %v958
    %v1000 = vmul.f32 %v999, %v958
    %v1001 = vmul.f32 %v1000, %v999
    %v1002 = vmul.f32 0.5, %v1001
    %v1003 = vsub.f32 1.5, %v1002
    %v1004 = vmul.f32 %v999, %v1003
    %vm1005 = vweird.f32 %v958
    %vm1006 = vweird.f32 %v999
    %vm1007 = vmor %vm1005, %vm1006
    %v1008 = vsel %vm1007, %v999, %v1004
    %v1009 = vrsqrt.pop %v959
    %v1010 = vmul.f32 %v1009, %v959
    %v1011 = vmul.f32 %v1010, %v1009
    %v1012 = vmul.f32 0.5, %v1011
    %v1013 = vsub.f32 1.5, %v1012
    %v1014 = vmul.f32 %v1009, %v1013
    %vm1015 = vweird.f32 %v959
    %vm1016 = vweird.f32 %v1009
    %vm1017 = vmor %vm1015, %vm1016
    %v1018 = vsel %vm1017, %v1009, %v1014
    %v1019 = vrsqrt.pop %v960
    %v1020 = vmul.f32 %v1019, %v960
    %v1021 = vmul.f32 %v1020, %v1019
    %v1022 = vmul.f32 0.5, %v1021
    %v1023 = vsub.f32 1.5, %v1022
    %v1024 = vmul.f32 %v1019, %v1023
    %vm1025 = vweird.f32 %v960
    %vm1026 = vweird.f32 %v1019
    %vm1027 = vmor %vm1025, %vm1026
    %v1028 = vsel %vm1027, %v1019, %v1024
    %v1029 = vrsqrt.pop %v961
    %v1030 = vmul.f32 %v1029, %v961
    %v1031 = vmul.f32 %v1030, %v1029
    %v1032 = vmul.f32 0.5, %v1031
    %v1033 = vsub.f32 1.5, %v1032
    %v1034 = vmul.f32 %v1029, %v1033
    %vm1035 = vweird.f32 %v961
    %vm1036 = vweird.f32 %v1029
    %vm1037 = vmor %vm1035, %vm1036
    %v1038 = vsel %vm1037, %v1029, %v1034
    %v1039 = vrsqrt.pop %v962
    %v1040 = vmul.f32 %v1039, %v962
    %v1041 = vmul.f32 %v1040, %v1039
    %v1042 = vmul.f32 0.5, %v1041
    %v1043 = vsub.f32 1.5, %v1042
    %v1044 = vmul.f32 %v1039, %v1043
    %vm1045 = vweird.f32 %v962
    %vm1046 = vweird.f32 %v1039
    %vm1047 = vmor %vm1045, %vm1046
    %v1048 = vsel %vm1047, %v1039, %v1044
    %v1049 = vrsqrt.pop %v963
    %v1050 = vmul.f32 %v1049, %v963
    %v1051 = vmul.f32 %v1050, %v1049
    %v1052 = vmul.f32 0.5, %v1051
    %v1053 = vsub.f32 1.5, %v1052
    %v1054 = vmul.f32 %v1049, %v1053
    %vm1055 = vweird.f32 %v963
    %vm1056 = vweird.f32 %v1049
    %vm1057 = vmor %vm1055, %vm1056
    %v1058 = vsel %vm1057, %v1049, %v1054
    %v1059 = vrsqrt.pop %v964
    %v1060 = vmul.f32 %v1059, %v964
    %v1061 = vmul.f32 %v1060, %v1059
    %v1062 = vmul.f32 0.5, %v1061
    %v1063 = vsub.f32 1.5, %v1062
    %v1064 = vmul.f32 %v1059, %v1063
    %vm1065 = vweird.f32 %v964
    %vm1066 = vweird.f32 %v1059
    %vm1067 = vmor %vm1065, %vm1066
    %v1068 = vsel %vm1067, %v1059, %v1064
    %v1069 = vrsqrt.pop %v965
    %v1070 = vmul.f32 %v1069, %v965
    %v1071 = vmul.f32 %v1070, %v1069
    %v1072 = vmul.f32 0.5, %v1071
    %v1073 = vsub.f32 1.5, %v1072
    %v1074 = vmul.f32 %v1069, %v1073
    %vm1075 = vweird.f32 %v965
    %vm1076 = vweird.f32 %v1069
    %vm1077 = vmor %vm1075, %vm1076
    %v1078 = vsel %vm1077, %v1069, %v1074
    %v1079 = vrsqrt.pop %v966
    %v1080 = vmul.f32 %v1079, %v966
    %v1081 = vmul.f32 %v1080, %v1079
    %v1082 = vmul.f32 0.5, %v1081
    %v1083 = vsub.f32 1.5, %v1082
    %v1084 = vmul.f32 %v1079, %v1083
    %vm1085 = vweird.f32 %v966
    %vm1086 = vweird.f32 %v1079
    %vm1087 = vmor %vm1085, %vm1086
    %v1088 = vsel %vm1087, %v1079, %v1084
    %v1089 = vrsqrt.pop %v967
    %v1090 = vmul.f32 %v1089, %v967
    %v1091 = vmul.f32 %v1090, %v1089
    %v1092 = vmul.f32 0.5, %v1091
    %v1093 = vsub.f32 1.5, %v1092
    %v1094 = vmul.f32 %v1089, %v1093
    %vm1095 = vweird.f32 %v967
    %vm1096 = vweird.f32 %v1089
    %vm1097 = vmor %vm1095, %vm1096
    %v1098 = vsel %vm1097, %v1089, %v1094
    %v1099 = vrsqrt.pop %v968
    %v1100 = vmul.f32 %v1099, %v968
    %v1101 = vmul.f32 %v1100, %v1099
    %v1102 = vmul.f32 0.5, %v1101
    %v1103 = vsub.f32 1.5, %v1102
    %v1104 = vmul.f32 %v1099, %v1103
    %vm1105 = vweird.f32 %v968
    %vm1106 = vweird.f32 %v1099
    %vm1107 = vmor %vm1105, %vm1106
    %v1108 = vsel %vm1107, %v1099, %v1104
    %v1109 = vrsqrt.pop %v969
    %v1110 = vmul.f32 %v1109, %v969
    %v1111 = vmul.f32 %v1110, %v1109
    %v1112 = vmul.f32 0.5, %v1111
    %v1113 = vsub.f32 1.5, %v1112
    %v1114 = vmul.f32 %v1109, %v1113
    %vm1115 = vweird.f32 %v969
    %vm1116 = vweird.f32 %v1109
    %vm1117 = vmor %vm1115, %vm1116
    %v1118 = vsel %vm1117, %v1109, %v1114
    %v1119 = vrsqrt.pop %v970
    %v1120 = vmul.f32 %v1119, %v970
    %v1121 = vmul.f32 %v1120, %v1119
    %v1122 = vmul.f32 0.5, %v1121
    %v1123 = vsub.f32 1.5, %v1122
    %v1124 = vmul.f32 %v1119, %v1123
    %vm1125 = vweird.f32 %v970
    %vm1126 = vweird.f32 %v1119
    %vm1127 = vmor %vm1125, %vm1126
    %v1128 = vsel %vm1127, %v1119, %v1124
    %v1129 = vrsqrt.pop %v971
    %v1130 = vmul.f32 %v1129, %v971
    %v1131 = vmul.f32 %v1130, %v1129
    %v1132 = vmul.f32 0.5, %v1131
    %v1133 = vsub.f32 1.5, %v1132
    %v1134 = vmul.f32 %v1129, %v1133
    %vm1135 = vweird.f32 %v971
    %vm1136 = vweird.f32 %v1129
    %vm1137 = vmor %vm1135, %vm1136
    %v1138 = vsel %vm1137, %v1129, %v1134
    %v1139 = vrsqrt.pop %v972
    %v1140 = vmul.f32 %v1139, %v972
    %v1141 = vmul.f32 %v1140, %v1139
    %v1142 = vmul.f32 0.5, %v1141
    %v1143 = vsub.f32 1.5, %v1142
    %v1144 = vmul.f32 %v1139, %v1143
    %vm1145 = vweird.f32 %v972
    %vm1146 = vweird.f32 %v1139
    %vm1147 = vmor %vm1145, %vm1146
    %v1148 = vsel %vm1147, %v1139, %v1144
    %v1149 = vrsqrt.pop %v973
    %v1150 = vmul.f32 %v1149, %v973
    %v1151 = vmul.f32 %v1150, %v1149
    %v1152 = vmul.f32 0.5, %v1151
    %v1153 = vsub.f32 1.5, %v1152
    %v1154 = vmul.f32 %v1149, %v1153
    %vm1155 = vweird.f32 %v973
    %vm1156 = vweird.f32 %v1149
    %vm1157 = vmor %vm1155, %vm1156
    %v1158 = vsel %vm1157, %v1149, %v1154
    %v1159 = vrsqrt.pop %v974
    %v1160 = vmul.f32 %v1159, %v974
    %v1161 = vmul.f32 %v1160, %v1159
    %v1162 = vmul.f32 0.5, %v1161
    %v1163 = vsub.f32 1.5, %v1162
    %v1164 = vmul.f32 %v1159, %v1163
    %vm1165 = vweird.f32 %v974
    %vm1166 = vweird.f32 %v1159
    %vm1167 = vmor %vm1165, %vm1166
    %v1168 = vsel %vm1167, %v1159, %v1164
    %v1169 = vrsqrt.pop %v975
    %v1170 = vmul.f32 %v1169, %v975
    %v1171 = vmul.f32 %v1170, %v1169
    %v1172 = vmul.f32 0.5, %v1171
    %v1173 = vsub.f32 1.5, %v1172
    %v1174 = vmul.f32 %v1169, %v1173
    %vm1175 = vweird.f32 %v975
    %vm1176 = vweird.f32 %v1169
    %vm1177 = vmor %vm1175, %vm1176
    %v1178 = vsel %vm1177, %v1169, %v1174
    %v1179 = vrsqrt.pop %v976
    %v1180 = vmul.f32 %v1179, %v976
    %v1181 = vmul.f32 %v1180, %v1179
    %v1182 = vmul.f32 0.5, %v1181
    %v1183 = vsub.f32 1.5, %v1182
    %v1184 = vmul.f32 %v1179, %v1183
    %vm1185 = vweird.f32 %v976
    %vm1186 = vweird.f32 %v1179
    %vm1187 = vmor %vm1185, %vm1186
    %v1188 = vsel %vm1187, %v1179, %v1184
    %v1189 = vrsqrt.pop %v977
    %v1190 = vmul.f32 %v1189, %v977
    %v1191 = vmul.f32 %v1190, %v1189
    %v1192 = vmul.f32 0.5, %v1191
    %v1193 = vsub.f32 1.5, %v1192
    %v1194 = vmul.f32 %v1189, %v1193
    %vm1195 = vweird.f32 %v977
    %vm1196 = vweird.f32 %v1189
    %vm1197 = vmor %vm1195, %vm1196
    %v1198 = vsel %vm1197, %v1189, %v1194
    %v1199 = vrsqrt.pop %v978
    %v1200 = vmul.f32 %v1199, %v978
    %v1201 = vmul.f32 %v1200, %v1199
    %v1202 = vmul.f32 0.5, %v1201
    %v1203 = vsub.f32 1.5, %v1202
    %v1204 = vmul.f32 %v1199, %v1203
    %vm1205 = vweird.f32 %v978
    %vm1206 = vweird.f32 %v1199
    %vm1207 = vmor %vm1205, %vm1206
    %v1208 = vsel %vm1207, %v1199, %v1204
    %v1209 = vrsqrt.pop %v979
    %v1210 = vmul.f32 %v1209, %v979
    %v1211 = vmul.f32 %v1210, %v1209
    %v1212 = vmul.f32 0.5, %v1211
    %v1213 = vsub.f32 1.5, %v1212
    %v1214 = vmul.f32 %v1209, %v1213
    %vm1215 = vweird.f32 %v979
    %vm1216 = vweird.f32 %v1209
    %vm1217 = vmor %vm1215, %vm1216
    %v1218 = vsel %vm1217, %v1209, %v1214
    %v1219 = vrsqrt.pop %v980
    %v1220 = vmul.f32 %v1219, %v980
    %v1221 = vmul.f32 %v1220, %v1219
    %v1222 = vmul.f32 0.5, %v1221
    %v1223 = vsub.f32 1.5, %v1222
    %v1224 = vmul.f32 %v1219, %v1223
    %vm1225 = vweird.f32 %v980
    %vm1226 = vweird.f32 %v1219
    %vm1227 = vmor %vm1225, %vm1226
    %v1228 = vsel %vm1227, %v1219, %v1224
    %v1229 = vrsqrt.pop %v981
    %v1230 = vmul.f32 %v1229, %v981
    %v1231 = vmul.f32 %v1230, %v1229
    %v1232 = vmul.f32 0.5, %v1231
    %v1233 = vsub.f32 1.5, %v1232
    %v1234 = vmul.f32 %v1229, %v1233
    %vm1235 = vweird.f32 %v981
    %vm1236 = vweird.f32 %v1229
    %vm1237 = vmor %vm1235, %vm1236
    %v1238 = vsel %vm1237, %v1229, %v1234
    %v1239 = vrsqrt.pop %v982
    %v1240 = vmul.f32 %v1239, %v982
    %v1241 = vmul.f32 %v1240, %v1239
    %v1242 = vmul.f32 0.5, %v1241
    %v1243 = vsub.f32 1.5, %v1242
    %v1244 = vmul.f32 %v1239, %v1243
    %vm1245 = vweird.f32 %v982
    %vm1246 = vweird.f32 %v1239
    %vm1247 = vmor %vm1245, %vm1246
    %v1248 = vsel %vm1247, %v1239, %v1244
    %v1249 = vrsqrt.pop %v983
    %v1250 = vmul.f32 %v1249, %v983
    %v1251 = vmul.f32 %v1250, %v1249
    %v1252 = vmul.f32 0.5, %v1251
    %v1253 = vsub.f32 1.5, %v1252
    %v1254 = vmul.f32 %v1249, %v1253
    %vm1255 = vweird.f32 %v983
    %vm1256 = vweird.f32 %v1249
    %vm1257 = vmor %vm1255, %vm1256
    %v1258 = vsel %vm1257, %v1249, %v1254
    %v1259 = vrsqrt.pop %v984
    %v1260 = vmul.f32 %v1259, %v984
    %v1261 = vmul.f32 %v1260, %v1259
    %v1262 = vmul.f32 0.5, %v1261
    %v1263 = vsub.f32 1.5, %v1262
    %v1264 = vmul.f32 %v1259, %v1263
    %vm1265 = vweird.f32 %v984
    %vm1266 = vweird.f32 %v1259
    %vm1267 = vmor %vm1265, %vm1266
    %v1268 = vsel %vm1267, %v1259, %v1264
    %v1269 = vrsqrt.pop %v985
    %v1270 = vmul.f32 %v1269, %v985
    %v1271 = vmul.f32 %v1270, %v1269
    %v1272 = vmul.f32 0.5, %v1271
    %v1273 = vsub.f32 1.5, %v1272
    %v1274 = vmul.f32 %v1269, %v1273
    %vm1275 = vweird.f32 %v985
    %vm1276 = vweird.f32 %v1269
    %vm1277 = vmor %vm1275, %vm1276
    %v1278 = vsel %vm1277, %v1269, %v1274
    %v1279 = vrsqrt.pop %v986
    %v1280 = vmul.f32 %v1279, %v986
    %v1281 = vmul.f32 %v1280, %v1279
    %v1282 = vmul.f32 0.5, %v1281
    %v1283 = vsub.f32 1.5, %v1282
    %v1284 = vmul.f32 %v1279, %v1283
    %vm1285 = vweird.f32 %v986
    %vm1286 = vweird.f32 %v1279
    %vm1287 = vmor %vm1285, %vm1286
    %v1288 = vsel %vm1287, %v1279, %v1284
    %v1289 = vrsqrt.pop %v987
    %v1290 = vmul.f32 %v1289, %v987
    %v1291 = vmul.f32 %v1290, %v1289
    %v1292 = vmul.f32 0.5, %v1291
    %v1293 = vsub.f32 1.5, %v1292
    %v1294 = vmul.f32 %v1289, %v1293
    %vm1295 = vweird.f32 %v987
    %vm1296 = vweird.f32 %v1289
    %vm1297 = vmor %vm1295, %vm1296
    %v1298 = vsel %vm1297, %v1289, %v1294
    %v1299 = vrsqrt.pop %v988
    %v1300 = vmul.f32 %v1299, %v988
    %v1301 = vmul.f32 %v1300, %v1299
    %v1302 = vmul.f32 0.5, %v1301
    %v1303 = vsub.f32 1.5, %v1302
    %v1304 = vmul.f32 %v1299, %v1303
    %vm1305 = vweird.f32 %v988
    %vm1306 = vweird.f32 %v1299
    %vm1307 = vmor %vm1305, %vm1306
    %v1308 = vsel %vm1307, %v1299, %v1304
    %v1309 = vmul.f32 %v734, %v998
    %v1310 = vmul.f32 %v737, %v1008
    %v1311 = vmul.f32 %v740, %v1018
    %v1312 = vmul.f32 %v743, %v1028
    %v1313 = vmul.f32 %v746, %v1038
    %v1314 = vmul.f32 %v749, %v1048
    %v1315 = vmul.f32 %v752, %v1058
    %v1316 = vmul.f32 %v755, %v1068
    %v1317 = vmul.f32 %v758, %v1078
    %v1318 = vmul.f32 %v761, %v1088
    %v1319 = vmul.f32 %v764, %v1098
    %v1320 = vmul.f32 %v767, %v1108
    %v1321 = vmul.f32 %v770, %v1118
    %v1322 = vmul.f32 %v773, %v1128
    %v1323 = vmul.f32 %v776, %v1138
    %v1324 = vmul.f32 %v779, %v1148
    %v1325 = vmul.f32 %v782, %v1158
    %v1326 = vmul.f32 %v785, %v1168
    %v1327 = vmul.f32 %v788, %v1178
    %v1328 = vmul.f32 %v791, %v1188
    %v1329 = vmul.f32 %v794, %v1198
    %v1330 = vmul.f32 %v797, %v1208
    %v1331 = vmul.f32 %v800, %v1218
    %v1332 = vmul.f32 %v803, %v1228
    %v1333 = vmul.f32 %v806, %v1238
    %v1334 = vmul.f32 %v809, %v1248
    %v1335 = vmul.f32 %v812, %v1258
    %v1336 = vmul.f32 %v815, %v1268
    %v1337 = vmul.f32 %v818, %v1278
    %v1338 = vmul.f32 %v821, %v1288
    %v1339 = vmul.f32 %v824, %v1298
    %v1340 = vmul.f32 %v827, %v1308
    %1341 = vst.msk [vmem:[#allocation6] sm:$0xff] %vm389, %v1309
    %1342 = vst.msk [vmem:[#allocation6 + $0x8] sm:$0xff] %vm389, %v1310
    %1343 = vst.msk [vmem:[#allocation6 + $0x10] sm:$0xff] %vm389, %v1311
    %1344 = vst.msk [vmem:[#allocation6 + $0x18] sm:$0xff] %vm389, %v1312
    %1345 = vst.msk [vmem:[#allocation6 + $0x20] sm:$0xff] %vm389, %v1313
    %1346 = vst.msk [vmem:[#allocation6 + $0x28] sm:$0xff] %vm389, %v1314
    %1347 = vst.msk [vmem:[#allocation6 + $0x30] sm:$0xff] %vm389, %v1315
    %1348 = vst.msk [vmem:[#allocation6 + $0x38] sm:$0xff] %vm389, %v1316
    %1349 = vst.msk [vmem:[#allocation6 + $0x40] sm:$0xff] %vm389, %v1317
    %1350 = vst.msk [vmem:[#allocation6 + $0x48] sm:$0xff] %vm389, %v1318
    %1351 = vst.msk [vmem:[#allocation6 + $0x50] sm:$0xff] %vm389, %v1319
    %1352 = vst.msk [vmem:[#allocation6 + $0x58] sm:$0xff] %vm389, %v1320
    %1353 = vst.msk [vmem:[#allocation6 + $0x60] sm:$0xff] %vm389, %v1321
    %1354 = vst.msk [vmem:[#allocation6 + $0x68] sm:$0xff] %vm389, %v1322
    %1355 = vst.msk [vmem:[#allocation6 + $0x70] sm:$0xff] %vm389, %v1323
    %1356 = vst.msk [vmem:[#allocation6 + $0x78] sm:$0xff] %vm389, %v1324
    %1357 = vst.msk [vmem:[#allocation6 + $0x80] sm:$0xff] %vm389, %v1325
    %1358 = vst.msk [vmem:[#allocation6 + $0x88] sm:$0xff] %vm389, %v1326
    %1359 = vst.msk [vmem:[#allocation6 + $0x90] sm:$0xff] %vm389, %v1327
    %1360 = vst.msk [vmem:[#allocation6 + $0x98] sm:$0xff] %vm389, %v1328
    %1361 = vst.msk [vmem:[#allocation6 + $0xa0] sm:$0xff] %vm389, %v1329
    %1362 = vst.msk [vmem:[#allocation6 + $0xa8] sm:$0xff] %vm389, %v1330
    %1363 = vst.msk [vmem:[#allocation6 + $0xb0] sm:$0xff] %vm389, %v1331
    %1364 = vst.msk [vmem:[#allocation6 + $0xb8] sm:$0xff] %vm389, %v1332
    %1365 = vst.msk [vmem:[#allocation6 + $0xc0] sm:$0xff] %vm389, %v1333
    %1366 = vst.msk [vmem:[#allocation6 + $0xc8] sm:$0xff] %vm389, %v1334
    %1367 = vst.msk [vmem:[#allocation6 + $0xd0] sm:$0xff] %vm389, %v1335
    %1368 = vst.msk [vmem:[#allocation6 + $0xd8] sm:$0xff] %vm389, %v1336
    %1369 = vst.msk [vmem:[#allocation6 + $0xe0] sm:$0xff] %vm389, %v1337
    %1370 = vst.msk [vmem:[#allocation6 + $0xe8] sm:$0xff] %vm389, %v1338
    %1371 = vst.msk [vmem:[#allocation6 + $0xf0] sm:$0xff] %vm389, %v1339
    %1372 = vst.msk [vmem:[#allocation6 + $0xf8] sm:$0xff] %vm389, %v1340
    %v1373 = vld [vmem:[%s3] sm:$0xff]
    %v1374 = vld [vmem:[%s3 + $0x8] sm:$0xff]
    %v1375 = vld [vmem:[%s3 + $0x10] sm:$0xff]
    %v1376 = vld [vmem:[%s3 + $0x18] sm:$0xff]
    %v1377 = vld [vmem:[%s3 + $0x20] sm:$0xff]
    %v1378 = vld [vmem:[%s3 + $0x28] sm:$0xff]
    %v1379 = vld [vmem:[%s3 + $0x30] sm:$0xff]
    %v1380 = vld [vmem:[%s3 + $0x38] sm:$0xff]
    %v1381 = vld [vmem:[%s3 + $0x40] sm:$0xff]
    %v1382 = vld [vmem:[%s3 + $0x48] sm:$0xff]
    %v1383 = vld [vmem:[%s3 + $0x50] sm:$0xff]
    %v1384 = vld [vmem:[%s3 + $0x58] sm:$0xff]
    %v1385 = vld [vmem:[%s3 + $0x60] sm:$0xff]
    %v1386 = vld [vmem:[%s3 + $0x68] sm:$0xff]
    %v1387 = vld [vmem:[%s3 + $0x70] sm:$0xff]
    %v1388 = vld [vmem:[%s3 + $0x78] sm:$0xff]
    %v1389 = vld [vmem:[%s3 + $0x80] sm:$0xff]
    %v1390 = vld [vmem:[%s3 + $0x88] sm:$0xff]
    %v1391 = vld [vmem:[%s3 + $0x90] sm:$0xff]
    %v1392 = vld [vmem:[%s3 + $0x98] sm:$0xff]
    %v1393 = vld [vmem:[%s3 + $0xa0] sm:$0xff]
    %v1394 = vld [vmem:[%s3 + $0xa8] sm:$0xff]
    %v1395 = vld [vmem:[%s3 + $0xb0] sm:$0xff]
    %v1396 = vld [vmem:[%s3 + $0xb8] sm:$0xff]
    %v1397 = vld [vmem:[%s3 + $0xc0] sm:$0xff]
    %v1398 = vld [vmem:[%s3 + $0xc8] sm:$0xff]
    %v1399 = vld [vmem:[%s3 + $0xd0] sm:$0xff]
    %v1400 = vld [vmem:[%s3 + $0xd8] sm:$0xff]
    %v1401 = vld [vmem:[%s3 + $0xe0] sm:$0xff]
    %v1402 = vld [vmem:[%s3 + $0xe8] sm:$0xff]
    %v1403 = vld [vmem:[%s3 + $0xf0] sm:$0xff]
    %v1404 = vld [vmem:[%s3 + $0xf8] sm:$0xff]
    %v1405 = vld [vmem:[#allocation4] sm:$0xff]
    %v1406 = vld [vmem:[#allocation4 + $0x8] sm:$0xff]
    %v1407 = vld [vmem:[#allocation4 + $0x10] sm:$0xff]
    %v1408 = vld [vmem:[#allocation4 + $0x18] sm:$0xff]
    %v1409 = vld [vmem:[#allocation4 + $0x20] sm:$0xff]
    %v1410 = vld [vmem:[#allocation4 + $0x28] sm:$0xff]
    %v1411 = vld [vmem:[#allocation4 + $0x30] sm:$0xff]
    %v1412 = vld [vmem:[#allocation4 + $0x38] sm:$0xff]
    %v1413 = vld [vmem:[#allocation4 + $0x40] sm:$0xff]
    %v1414 = vld [vmem:[#allocation4 + $0x48] sm:$0xff]
    %v1415 = vld [vmem:[#allocation4 + $0x50] sm:$0xff]
    %v1416 = vld [vmem:[#allocation4 + $0x58] sm:$0xff]
    %v1417 = vld [vmem:[#allocation4 + $0x60] sm:$0xff]
    %v1418 = vld [vmem:[#allocation4 + $0x68] sm:$0xff]
    %v1419 = vld [vmem:[#allocation4 + $0x70] sm:$0xff]
    %v1420 = vld [vmem:[#allocation4 + $0x78] sm:$0xff]
    %1421 = vmatpush.msra.mxu0 %v1420
    %1422 = vmatpush.msra.mxu0 %v1419
    %1423 = vmatpush.msra.mxu0 %v1418
    %1424 = vmatpush.msra.mxu0 %v1417
    %1425 = vmatpush.msra.mxu0 %v1416
    %1426 = vmatpush.msra.mxu0 %v1415
    %1427 = vmatpush.msra.mxu0 %v1414
    %1428 = vmatpush.msra.mxu0 %v1413
    %1429 = vmatpush.msra.mxu0 %v1412
    %1430 = vmatpush.msra.mxu0 %v1411
    %1431 = vmatpush.msra.mxu0 %v1410
    %1432 = vmatpush.msra.mxu0 %v1409
    %1433 = vmatpush.msra.mxu0 %v1408
    %1434 = vmatpush.msra.mxu0 %v1407
    %1435 = vmatpush.msra.mxu0 %v1406
    %1436 = vmatpush.msra.mxu0 %v1405
    %1437 = vmatmul.f32.gmra.mxu0 %v1373
    %v1438 = vpop.f32.mrf.mxu0
    %v1439 = vadd.f32 0.0, %v1438
    %1440 = vmatmul.f32.gmra.mxu0 %v1374
    %v1441 = vpop.f32.mrf.mxu0
    %v1442 = vadd.f32 0.0, %v1441
    %1443 = vmatmul.f32.gmra.mxu0 %v1375
    %v1444 = vpop.f32.mrf.mxu0
    %v1445 = vadd.f32 0.0, %v1444
    %1446 = vmatmul.f32.gmra.mxu0 %v1376
    %v1447 = vpop.f32.mrf.mxu0
    %v1448 = vadd.f32 0.0, %v1447
    %1449 = vmatmul.f32.gmra.mxu0 %v1377
    %v1450 = vpop.f32.mrf.mxu0
    %v1451 = vadd.f32 0.0, %v1450
    %1452 = vmatmul.f32.gmra.mxu0 %v1378
    %v1453 = vpop.f32.mrf.mxu0
    %v1454 = vadd.f32 0.0, %v1453
    %1455 = vmatmul.f32.gmra.mxu0 %v1379
    %v1456 = vpop.f32.mrf.mxu0
    %v1457 = vadd.f32 0.0, %v1456
    %1458 = vmatmul.f32.gmra.mxu0 %v1380
    %v1459 = vpop.f32.mrf.mxu0
    %v1460 = vadd.f32 0.0, %v1459
    %1461 = vmatmul.f32.gmra.mxu0 %v1381
    %v1462 = vpop.f32.mrf.mxu0
    %v1463 = vadd.f32 0.0, %v1462
    %1464 = vmatmul.f32.gmra.mxu0 %v1382
    %v1465 = vpop.f32.mrf.mxu0
    %v1466 = vadd.f32 0.0, %v1465
    %1467 = vmatmul.f32.gmra.mxu0 %v1383
    %v1468 = vpop.f32.mrf.mxu0
    %v1469 = vadd.f32 0.0, %v1468
    %1470 = vmatmul.f32.gmra.mxu0 %v1384
    %v1471 = vpop.f32.mrf.mxu0
    %v1472 = vadd.f32 0.0, %v1471
    %1473 = vmatmul.f32.gmra.mxu0 %v1385
    %v1474 = vpop.f32.mrf.mxu0
    %v1475 = vadd.f32 0.0, %v1474
    %1476 = vmatmul.f32.gmra.mxu0 %v1386
    %v1477 = vpop.f32.mrf.mxu0
    %v1478 = vadd.f32 0.0, %v1477
    %1479 = vmatmul.f32.gmra.mxu0 %v1387
    %v1480 = vpop.f32.mrf.mxu0
    %v1481 = vadd.f32 0.0, %v1480
    %1482 = vmatmul.f32.gmra.mxu0 %v1388
    %v1483 = vpop.f32.mrf.mxu0
    %v1484 = vadd.f32 0.0, %v1483
    %1485 = vmatmul.f32.gmra.mxu0 %v1389
    %v1486 = vpop.f32.mrf.mxu0
    %v1487 = vadd.f32 0.0, %v1486
    %1488 = vmatmul.f32.gmra.mxu0 %v1390
    %v1489 = vpop.f32.mrf.mxu0
    %v1490 = vadd.f32 0.0, %v1489
    %1491 = vmatmul.f32.gmra.mxu0 %v1391
    %v1492 = vpop.f32.mrf.mxu0
    %v1493 = vadd.f32 0.0, %v1492
    %1494 = vmatmul.f32.gmra.mxu0 %v1392
    %v1495 = vpop.f32.mrf.mxu0
    %v1496 = vadd.f32 0.0, %v1495
    %1497 = vmatmul.f32.gmra.mxu0 %v1393
    %v1498 = vpop.f32.mrf.mxu0
    %v1499 = vadd.f32 0.0, %v1498
    %1500 = vmatmul.f32.gmra.mxu0 %v1394
    %v1501 = vpop.f32.mrf.mxu0
    %v1502 = vadd.f32 0.0, %v1501
    %1503 = vmatmul.f32.gmra.mxu0 %v1395
    %v1504 = vpop.f32.mrf.mxu0
    %v1505 = vadd.f32 0.0, %v1504
    %1506 = vmatmul.f32.gmra.mxu0 %v1396
    %v1507 = vpop.f32.mrf.mxu0
    %v1508 = vadd.f32 0.0, %v1507
    %1509 = vmatmul.f32.gmra.mxu0 %v1397
    %v1510 = vpop.f32.mrf.mxu0
    %v1511 = vadd.f32 0.0, %v1510
    %1512 = vmatmul.f32.gmra.mxu0 %v1398
    %v1513 = vpop.f32.mrf.mxu0
    %v1514 = vadd.f32 0.0, %v1513
    %1515 = vmatmul.f32.gmra.mxu0 %v1399
    %v1516 = vpop.f32.mrf.mxu0
    %v1517 = vadd.f32 0.0, %v1516
    %1518 = vmatmul.f32.gmra.mxu0 %v1400
    %v1519 = vpop.f32.mrf.mxu0
    %v1520 = vadd.f32 0.0, %v1519
    %1521 = vmatmul.f32.gmra.mxu0 %v1401
    %v1522 = vpop.f32.mrf.mxu0
    %v1523 = vadd.f32 0.0, %v1522
    %1524 = vmatmul.f32.gmra.mxu0 %v1402
    %v1525 = vpop.f32.mrf.mxu0
    %v1526 = vadd.f32 0.0, %v1525
    %1527 = vmatmul.f32.gmra.mxu0 %v1403
    %v1528 = vpop.f32.mrf.mxu0
    %v1529 = vadd.f32 0.0, %v1528
    %1530 = vmatmul.f32.gmra.mxu0 %v1404
    %v1531 = vpop.f32.mrf.mxu0
    %v1532 = vadd.f32 0.0, %v1531
    %1533 = vdwg.mxu0
    %v1534 = vmul.f32 %v1439, %v1439
    %v1535 = vmul.f32 %v1442, %v1442
    %v1536 = vmul.f32 %v1445, %v1445
    %v1537 = vmul.f32 %v1448, %v1448
    %v1538 = vmul.f32 %v1451, %v1451
    %v1539 = vmul.f32 %v1454, %v1454
    %v1540 = vmul.f32 %v1457, %v1457
    %v1541 = vmul.f32 %v1460, %v1460
    %v1542 = vmul.f32 %v1463, %v1463
    %v1543 = vmul.f32 %v1466, %v1466
    %v1544 = vmul.f32 %v1469, %v1469
    %v1545 = vmul.f32 %v1472, %v1472
    %v1546 = vmul.f32 %v1475, %v1475
    %v1547 = vmul.f32 %v1478, %v1478
    %v1548 = vmul.f32 %v1481, %v1481
    %v1549 = vmul.f32 %v1484, %v1484
    %v1550 = vmul.f32 %v1487, %v1487
    %v1551 = vmul.f32 %v1490, %v1490
    %v1552 = vmul.f32 %v1493, %v1493
    %v1553 = vmul.f32 %v1496, %v1496
    %v1554 = vmul.f32 %v1499, %v1499
    %v1555 = vmul.f32 %v1502, %v1502
    %v1556 = vmul.f32 %v1505, %v1505
    %v1557 = vmul.f32 %v1508, %v1508
    %v1558 = vmul.f32 %v1511, %v1511
    %v1559 = vmul.f32 %v1514, %v1514
    %v1560 = vmul.f32 %v1517, %v1517
    %v1561 = vmul.f32 %v1520, %v1520
    %v1562 = vmul.f32 %v1523, %v1523
    %v1563 = vmul.f32 %v1526, %v1526
    %v1564 = vmul.f32 %v1529, %v1529
    %v1565 = vmul.f32 %v1532, %v1532
    %v1566 = vsel %vm389, %v1534, 0.0
    %1567 = vadd.xlane.f32.xlu0 %v1566
    %v1568 = vpop.xlane.xlu0 %1567
    %v1569 = vsel %vm389, %v1535, 0.0
    %1570 = vadd.xlane.f32.xlu0 %v1569
    %v1571 = vpop.xlane.xlu0 %1570
    %v1572 = vsel %vm389, %v1536, 0.0
    %1573 = vadd.xlane.f32.xlu0 %v1572
    %v1574 = vpop.xlane.xlu0 %1573
    %v1575 = vsel %vm389, %v1537, 0.0
    %1576 = vadd.xlane.f32.xlu0 %v1575
    %v1577 = vpop.xlane.xlu0 %1576
    %v1578 = vsel %vm389, %v1538, 0.0
    %1579 = vadd.xlane.f32.xlu0 %v1578
    %v1580 = vpop.xlane.xlu0 %1579
    %v1581 = vsel %vm389, %v1539, 0.0
    %1582 = vadd.xlane.f32.xlu0 %v1581
    %v1583 = vpop.xlane.xlu0 %1582
    %v1584 = vsel %vm389, %v1540, 0.0
    %1585 = vadd.xlane.f32.xlu0 %v1584
    %v1586 = vpop.xlane.xlu0 %1585
    %v1587 = vsel %vm389, %v1541, 0.0
    %1588 = vadd.xlane.f32.xlu0 %v1587
    %v1589 = vpop.xlane.xlu0 %1588
    %v1590 = vsel %vm389, %v1542, 0.0
    %1591 = vadd.xlane.f32.xlu0 %v1590
    %v1592 = vpop.xlane.xlu0 %1591
    %v1593 = vsel %vm389, %v1543, 0.0
    %1594 = vadd.xlane.f32.xlu0 %v1593
    %v1595 = vpop.xlane.xlu0 %1594
    %v1596 = vsel %vm389, %v1544, 0.0
    %1597 = vadd.xlane.f32.xlu0 %v1596
    %v1598 = vpop.xlane.xlu0 %1597
    %v1599 = vsel %vm389, %v1545, 0.0
    %1600 = vadd.xlane.f32.xlu0 %v1599
    %v1601 = vpop.xlane.xlu0 %1600
    %v1602 = vsel %vm389, %v1546, 0.0
    %1603 = vadd.xlane.f32.xlu0 %v1602
    %v1604 = vpop.xlane.xlu0 %1603
    %v1605 = vsel %vm389, %v1547, 0.0
    %1606 = vadd.xlane.f32.xlu0 %v1605
    %v1607 = vpop.xlane.xlu0 %1606
    %v1608 = vsel %vm389, %v1548, 0.0
    %1609 = vadd.xlane.f32.xlu0 %v1608
    %v1610 = vpop.xlane.xlu0 %1609
    %v1611 = vsel %vm389, %v1549, 0.0
    %1612 = vadd.xlane.f32.xlu0 %v1611
    %v1613 = vpop.xlane.xlu0 %1612
    %v1614 = vsel %vm389, %v1550, 0.0
    %1615 = vadd.xlane.f32.xlu0 %v1614
    %v1616 = vpop.xlane.xlu0 %1615
    %v1617 = vsel %vm389, %v1551, 0.0
    %1618 = vadd.xlane.f32.xlu0 %v1617
    %v1619 = vpop.xlane.xlu0 %1618
    %v1620 = vsel %vm389, %v1552, 0.0
    %1621 = vadd.xlane.f32.xlu0 %v1620
    %v1622 = vpop.xlane.xlu0 %1621
    %v1623 = vsel %vm389, %v1553, 0.0
    %1624 = vadd.xlane.f32.xlu0 %v1623
    %v1625 = vpop.xlane.xlu0 %1624
    %v1626 = vsel %vm389, %v1554, 0.0
    %1627 = vadd.xlane.f32.xlu0 %v1626
    %v1628 = vpop.xlane.xlu0 %1627
    %v1629 = vsel %vm389, %v1555, 0.0
    %1630 = vadd.xlane.f32.xlu0 %v1629
    %v1631 = vpop.xlane.xlu0 %1630
    %v1632 = vsel %vm389, %v1556, 0.0
    %1633 = vadd.xlane.f32.xlu0 %v1632
    %v1634 = vpop.xlane.xlu0 %1633
    %v1635 = vsel %vm389, %v1557, 0.0
    %1636 = vadd.xlane.f32.xlu0 %v1635
    %v1637 = vpop.xlane.xlu0 %1636
    %v1638 = vsel %vm389, %v1558, 0.0
    %1639 = vadd.xlane.f32.xlu0 %v1638
    %v1640 = vpop.xlane.xlu0 %1639
    %v1641 = vsel %vm389, %v1559, 0.0
    %1642 = vadd.xlane.f32.xlu0 %v1641
    %v1643 = vpop.xlane.xlu0 %1642
    %v1644 = vsel %vm389, %v1560, 0.0
    %1645 = vadd.xlane.f32.xlu0 %v1644
    %v1646 = vpop.xlane.xlu0 %1645
    %v1647 = vsel %vm389, %v1561, 0.0
    %1648 = vadd.xlane.f32.xlu0 %v1647
    %v1649 = vpop.xlane.xlu0 %1648
    %v1650 = vsel %vm389, %v1562, 0.0
    %1651 = vadd.xlane.f32.xlu0 %v1650
    %v1652 = vpop.xlane.xlu0 %1651
    %v1653 = vsel %vm389, %v1563, 0.0
    %1654 = vadd.xlane.f32.xlu0 %v1653
    %v1655 = vpop.xlane.xlu0 %1654
    %v1656 = vsel %vm389, %v1564, 0.0
    %1657 = vadd.xlane.f32.xlu0 %v1656
    %v1658 = vpop.xlane.xlu0 %1657
    %v1659 = vsel %vm389, %v1565, 0.0
    %1660 = vadd.xlane.f32.xlu0 %v1659
    %v1661 = vpop.xlane.xlu0 %1660
    %v1662 = vmax.f32 %v1568, 0.0001
    %v1663 = vmax.f32 %v1571, 0.0001
    %v1664 = vmax.f32 %v1574, 0.0001
    %v1665 = vmax.f32 %v1577, 0.0001
    %v1666 = vmax.f32 %v1580, 0.0001
    %v1667 = vmax.f32 %v1583, 0.0001
    %v1668 = vmax.f32 %v1586, 0.0001
    %v1669 = vmax.f32 %v1589, 0.0001
    %v1670 = vmax.f32 %v1592, 0.0001
    %v1671 = vmax.f32 %v1595, 0.0001
    %v1672 = vmax.f32 %v1598, 0.0001
    %v1673 = vmax.f32 %v1601, 0.0001
    %v1674 = vmax.f32 %v1604, 0.0001
    %v1675 = vmax.f32 %v1607, 0.0001
    %v1676 = vmax.f32 %v1610, 0.0001
    %v1677 = vmax.f32 %v1613, 0.0001
    %v1678 = vmax.f32 %v1616, 0.0001
    %v1679 = vmax.f32 %v1619, 0.0001
    %v1680 = vmax.f32 %v1622, 0.0001
    %v1681 = vmax.f32 %v1625, 0.0001
    %v1682 = vmax.f32 %v1628, 0.0001
    %v1683 = vmax.f32 %v1631, 0.0001
    %v1684 = vmax.f32 %v1634, 0.0001
    %v1685 = vmax.f32 %v1637, 0.0001
    %v1686 = vmax.f32 %v1640, 0.0001
    %v1687 = vmax.f32 %v1643, 0.0001
    %v1688 = vmax.f32 %v1646, 0.0001
    %v1689 = vmax.f32 %v1649, 0.0001
    %v1690 = vmax.f32 %v1652, 0.0001
    %v1691 = vmax.f32 %v1655, 0.0001
    %v1692 = vmax.f32 %v1658, 0.0001
    %v1693 = vmax.f32 %v1661, 0.0001
    %v1694 = vrsqrt.pop %v1662
    %v1695 = vmul.f32 %v1694, %v1662
    %v1696 = vmul.f32 %v1695, %v1694
    %v1697 = vmul.f32 0.5, %v1696
    %v1698 = vsub.f32 1.5, %v1697
    %v1699 = vmul.f32 %v1694, %v1698
    %vm1700 = vweird.f32 %v1662
    %vm1701 = vweird.f32 %v1694
    %vm1702 = vmor %vm1700, %vm1701
    %v1703 = vsel %vm1702, %v1694, %v1699
    %v1704 = vrsqrt.pop %v1663
    %v1705 = vmul.f32 %v1704, %v1663
    %v1706 = vmul.f32 %v1705, %v1704
    %v1707 = vmul.f32 0.5, %v1706
    %v1708 = vsub.f32 1.5, %v1707
    %v1709 = vmul.f32 %v1704, %v1708
    %vm1710 = vweird.f32 %v1663
    %vm1711 = vweird.f32 %v1704
    %vm1712 = vmor %vm1710, %vm1711
    %v1713 = vsel %vm1712, %v1704, %v1709
    %v1714 = vrsqrt.pop %v1664
    %v1715 = vmul.f32 %v1714, %v1664
    %v1716 = vmul.f32 %v1715, %v1714
    %v1717 = vmul.f32 0.5, %v1716
    %v1718 = vsub.f32 1.5, %v1717
    %v1719 = vmul.f32 %v1714, %v1718
    %vm1720 = vweird.f32 %v1664
    %vm1721 = vweird.f32 %v1714
    %vm1722 = vmor %vm1720, %vm1721
    %v1723 = vsel %vm1722, %v1714, %v1719
    %v1724 = vrsqrt.pop %v1665
    %v1725 = vmul.f32 %v1724, %v1665
    %v1726 = vmul.f32 %v1725, %v1724
    %v1727 = vmul.f32 0.5, %v1726
    %v1728 = vsub.f32 1.5, %v1727
    %v1729 = vmul.f32 %v1724, %v1728
    %vm1730 = vweird.f32 %v1665
    %vm1731 = vweird.f32 %v1724
    %vm1732 = vmor %vm1730, %vm1731
    %v1733 = vsel %vm1732, %v1724, %v1729
    %v1734 = vrsqrt.pop %v1666
    %v1735 = vmul.f32 %v1734, %v1666
    %v1736 = vmul.f32 %v1735, %v1734
    %v1737 = vmul.f32 0.5, %v1736
    %v1738 = vsub.f32 1.5, %v1737
    %v1739 = vmul.f32 %v1734, %v1738
    %vm1740 = vweird.f32 %v1666
    %vm1741 = vweird.f32 %v1734
    %vm1742 = vmor %vm1740, %vm1741
    %v1743 = vsel %vm1742, %v1734, %v1739
    %v1744 = vrsqrt.pop %v1667
    %v1745 = vmul.f32 %v1744, %v1667
    %v1746 = vmul.f32 %v1745, %v1744
    %v1747 = vmul.f32 0.5, %v1746
    %v1748 = vsub.f32 1.5, %v1747
    %v1749 = vmul.f32 %v1744, %v1748
    %vm1750 = vweird.f32 %v1667
    %vm1751 = vweird.f32 %v1744
    %vm1752 = vmor %vm1750, %vm1751
    %v1753 = vsel %vm1752, %v1744, %v1749
    %v1754 = vrsqrt.pop %v1668
    %v1755 = vmul.f32 %v1754, %v1668
    %v1756 = vmul.f32 %v1755, %v1754
    %v1757 = vmul.f32 0.5, %v1756
    %v1758 = vsub.f32 1.5, %v1757
    %v1759 = vmul.f32 %v1754, %v1758
    %vm1760 = vweird.f32 %v1668
    %vm1761 = vweird.f32 %v1754
    %vm1762 = vmor %vm1760, %vm1761
    %v1763 = vsel %vm1762, %v1754, %v1759
    %v1764 = vrsqrt.pop %v1669
    %v1765 = vmul.f32 %v1764, %v1669
    %v1766 = vmul.f32 %v1765, %v1764
    %v1767 = vmul.f32 0.5, %v1766
    %v1768 = vsub.f32 1.5, %v1767
    %v1769 = vmul.f32 %v1764, %v1768
    %vm1770 = vweird.f32 %v1669
    %vm1771 = vweird.f32 %v1764
    %vm1772 = vmor %vm1770, %vm1771
    %v1773 = vsel %vm1772, %v1764, %v1769
    %v1774 = vrsqrt.pop %v1670
    %v1775 = vmul.f32 %v1774, %v1670
    %v1776 = vmul.f32 %v1775, %v1774
    %v1777 = vmul.f32 0.5, %v1776
    %v1778 = vsub.f32 1.5, %v1777
    %v1779 = vmul.f32 %v1774, %v1778
    %vm1780 = vweird.f32 %v1670
    %vm1781 = vweird.f32 %v1774
    %vm1782 = vmor %vm1780, %vm1781
    %v1783 = vsel %vm1782, %v1774, %v1779
    %v1784 = vrsqrt.pop %v1671
    %v1785 = vmul.f32 %v1784, %v1671
    %v1786 = vmul.f32 %v1785, %v1784
    %v1787 = vmul.f32 0.5, %v1786
    %v1788 = vsub.f32 1.5, %v1787
    %v1789 = vmul.f32 %v1784, %v1788
    %vm1790 = vweird.f32 %v1671
    %vm1791 = vweird.f32 %v1784
    %vm1792 = vmor %vm1790, %vm1791
    %v1793 = vsel %vm1792, %v1784, %v1789
    %v1794 = vrsqrt.pop %v1672
    %v1795 = vmul.f32 %v1794, %v1672
    %v1796 = vmul.f32 %v1795, %v1794
    %v1797 = vmul.f32 0.5, %v1796
    %v1798 = vsub.f32 1.5, %v1797
    %v1799 = vmul.f32 %v1794, %v1798
    %vm1800 = vweird.f32 %v1672
    %vm1801 = vweird.f32 %v1794
    %vm1802 = vmor %vm1800, %vm1801
    %v1803 = vsel %vm1802, %v1794, %v1799
    %v1804 = vrsqrt.pop %v1673
    %v1805 = vmul.f32 %v1804, %v1673
    %v1806 = vmul.f32 %v1805, %v1804
    %v1807 = vmul.f32 0.5, %v1806
    %v1808 = vsub.f32 1.5, %v1807
    %v1809 = vmul.f32 %v1804, %v1808
    %vm1810 = vweird.f32 %v1673
    %vm1811 = vweird.f32 %v1804
    %vm1812 = vmor %vm1810, %vm1811
    %v1813 = vsel %vm1812, %v1804, %v1809
    %v1814 = vrsqrt.pop %v1674
    %v1815 = vmul.f32 %v1814, %v1674
    %v1816 = vmul.f32 %v1815, %v1814
    %v1817 = vmul.f32 0.5, %v1816
    %v1818 = vsub.f32 1.5, %v1817
    %v1819 = vmul.f32 %v1814, %v1818
    %vm1820 = vweird.f32 %v1674
    %vm1821 = vweird.f32 %v1814
    %vm1822 = vmor %vm1820, %vm1821
    %v1823 = vsel %vm1822, %v1814, %v1819
    %v1824 = vrsqrt.pop %v1675
    %v1825 = vmul.f32 %v1824, %v1675
    %v1826 = vmul.f32 %v1825, %v1824
    %v1827 = vmul.f32 0.5, %v1826
    %v1828 = vsub.f32 1.5, %v1827
    %v1829 = vmul.f32 %v1824, %v1828
    %vm1830 = vweird.f32 %v1675
    %vm1831 = vweird.f32 %v1824
    %vm1832 = vmor %vm1830, %vm1831
    %v1833 = vsel %vm1832, %v1824, %v1829
    %v1834 = vrsqrt.pop %v1676
    %v1835 = vmul.f32 %v1834, %v1676
    %v1836 = vmul.f32 %v1835, %v1834
    %v1837 = vmul.f32 0.5, %v1836
    %v1838 = vsub.f32 1.5, %v1837
    %v1839 = vmul.f32 %v1834, %v1838
    %vm1840 = vweird.f32 %v1676
    %vm1841 = vweird.f32 %v1834
    %vm1842 = vmor %vm1840, %vm1841
    %v1843 = vsel %vm1842, %v1834, %v1839
    %v1844 = vrsqrt.pop %v1677
    %v1845 = vmul.f32 %v1844, %v1677
    %v1846 = vmul.f32 %v1845, %v1844
    %v1847 = vmul.f32 0.5, %v1846
    %v1848 = vsub.f32 1.5, %v1847
    %v1849 = vmul.f32 %v1844, %v1848
    %vm1850 = vweird.f32 %v1677
    %vm1851 = vweird.f32 %v1844
    %vm1852 = vmor %vm1850, %vm1851
    %v1853 = vsel %vm1852, %v1844, %v1849
    %v1854 = vrsqrt.pop %v1678
    %v1855 = vmul.f32 %v1854, %v1678
    %v1856 = vmul.f32 %v1855, %v1854
    %v1857 = vmul.f32 0.5, %v1856
    %v1858 = vsub.f32 1.5, %v1857
    %v1859 = vmul.f32 %v1854, %v1858
    %vm1860 = vweird.f32 %v1678
    %vm1861 = vweird.f32 %v1854
    %vm1862 = vmor %vm1860, %vm1861
    %v1863 = vsel %vm1862, %v1854, %v1859
    %v1864 = vrsqrt.pop %v1679
    %v1865 = vmul.f32 %v1864, %v1679
    %v1866 = vmul.f32 %v1865, %v1864
    %v1867 = vmul.f32 0.5, %v1866
    %v1868 = vsub.f32 1.5, %v1867
    %v1869 = vmul.f32 %v1864, %v1868
    %vm1870 = vweird.f32 %v1679
    %vm1871 = vweird.f32 %v1864
    %vm1872 = vmor %vm1870, %vm1871
    %v1873 = vsel %vm1872, %v1864, %v1869
    %v1874 = vrsqrt.pop %v1680
    %v1875 = vmul.f32 %v1874, %v1680
    %v1876 = vmul.f32 %v1875, %v1874
    %v1877 = vmul.f32 0.5, %v1876
    %v1878 = vsub.f32 1.5, %v1877
    %v1879 = vmul.f32 %v1874, %v1878
    %vm1880 = vweird.f32 %v1680
    %vm1881 = vweird.f32 %v1874
    %vm1882 = vmor %vm1880, %vm1881
    %v1883 = vsel %vm1882, %v1874, %v1879
    %v1884 = vrsqrt.pop %v1681
    %v1885 = vmul.f32 %v1884, %v1681
    %v1886 = vmul.f32 %v1885, %v1884
    %v1887 = vmul.f32 0.5, %v1886
    %v1888 = vsub.f32 1.5, %v1887
    %v1889 = vmul.f32 %v1884, %v1888
    %vm1890 = vweird.f32 %v1681
    %vm1891 = vweird.f32 %v1884
    %vm1892 = vmor %vm1890, %vm1891
    %v1893 = vsel %vm1892, %v1884, %v1889
    %v1894 = vrsqrt.pop %v1682
    %v1895 = vmul.f32 %v1894, %v1682
    %v1896 = vmul.f32 %v1895, %v1894
    %v1897 = vmul.f32 0.5, %v1896
    %v1898 = vsub.f32 1.5, %v1897
    %v1899 = vmul.f32 %v1894, %v1898
    %vm1900 = vweird.f32 %v1682
    %vm1901 = vweird.f32 %v1894
    %vm1902 = vmor %vm1900, %vm1901
    %v1903 = vsel %vm1902, %v1894, %v1899
    %v1904 = vrsqrt.pop %v1683
    %v1905 = vmul.f32 %v1904, %v1683
    %v1906 = vmul.f32 %v1905, %v1904
    %v1907 = vmul.f32 0.5, %v1906
    %v1908 = vsub.f32 1.5, %v1907
    %v1909 = vmul.f32 %v1904, %v1908
    %vm1910 = vweird.f32 %v1683
    %vm1911 = vweird.f32 %v1904
    %vm1912 = vmor %vm1910, %vm1911
    %v1913 = vsel %vm1912, %v1904, %v1909
    %v1914 = vrsqrt.pop %v1684
    %v1915 = vmul.f32 %v1914, %v1684
    %v1916 = vmul.f32 %v1915, %v1914
    %v1917 = vmul.f32 0.5, %v1916
    %v1918 = vsub.f32 1.5, %v1917
    %v1919 = vmul.f32 %v1914, %v1918
    %vm1920 = vweird.f32 %v1684
    %vm1921 = vweird.f32 %v1914
    %vm1922 = vmor %vm1920, %vm1921
    %v1923 = vsel %vm1922, %v1914, %v1919
    %v1924 = vrsqrt.pop %v1685
    %v1925 = vmul.f32 %v1924, %v1685
    %v1926 = vmul.f32 %v1925, %v1924
    %v1927 = vmul.f32 0.5, %v1926
    %v1928 = vsub.f32 1.5, %v1927
    %v1929 = vmul.f32 %v1924, %v1928
    %vm1930 = vweird.f32 %v1685
    %vm1931 = vweird.f32 %v1924
    %vm1932 = vmor %vm1930, %vm1931
    %v1933 = vsel %vm1932, %v1924, %v1929
    %v1934 = vrsqrt.pop %v1686
    %v1935 = vmul.f32 %v1934, %v1686
    %v1936 = vmul.f32 %v1935, %v1934
    %v1937 = vmul.f32 0.5, %v1936
    %v1938 = vsub.f32 1.5, %v1937
    %v1939 = vmul.f32 %v1934, %v1938
    %vm1940 = vweird.f32 %v1686
    %vm1941 = vweird.f32 %v1934
    %vm1942 = vmor %vm1940, %vm1941
    %v1943 = vsel %vm1942, %v1934, %v1939
    %v1944 = vrsqrt.pop %v1687
    %v1945 = vmul.f32 %v1944, %v1687
    %v1946 = vmul.f32 %v1945, %v1944
    %v1947 = vmul.f32 0.5, %v1946
    %v1948 = vsub.f32 1.5, %v1947
    %v1949 = vmul.f32 %v1944, %v1948
    %vm1950 = vweird.f32 %v1687
    %vm1951 = vweird.f32 %v1944
    %vm1952 = vmor %vm1950, %vm1951
    %v1953 = vsel %vm1952, %v1944, %v1949
    %v1954 = vrsqrt.pop %v1688
    %v1955 = vmul.f32 %v1954, %v1688
    %v1956 = vmul.f32 %v1955, %v1954
    %v1957 = vmul.f32 0.5, %v1956
    %v1958 = vsub.f32 1.5, %v1957
    %v1959 = vmul.f32 %v1954, %v1958
    %vm1960 = vweird.f32 %v1688
    %vm1961 = vweird.f32 %v1954
    %vm1962 = vmor %vm1960, %vm1961
    %v1963 = vsel %vm1962, %v1954, %v1959
    %v1964 = vrsqrt.pop %v1689
    %v1965 = vmul.f32 %v1964, %v1689
    %v1966 = vmul.f32 %v1965, %v1964
    %v1967 = vmul.f32 0.5, %v1966
    %v1968 = vsub.f32 1.5, %v1967
    %v1969 = vmul.f32 %v1964, %v1968
    %vm1970 = vweird.f32 %v1689
    %vm1971 = vweird.f32 %v1964
    %vm1972 = vmor %vm1970, %vm1971
    %v1973 = vsel %vm1972, %v1964, %v1969
    %v1974 = vrsqrt.pop %v1690
    %v1975 = vmul.f32 %v1974, %v1690
    %v1976 = vmul.f32 %v1975, %v1974
    %v1977 = vmul.f32 0.5, %v1976
    %v1978 = vsub.f32 1.5, %v1977
    %v1979 = vmul.f32 %v1974, %v1978
    %vm1980 = vweird.f32 %v1690
    %vm1981 = vweird.f32 %v1974
    %vm1982 = vmor %vm1980, %vm1981
    %v1983 = vsel %vm1982, %v1974, %v1979
    %v1984 = vrsqrt.pop %v1691
    %v1985 = vmul.f32 %v1984, %v1691
    %v1986 = vmul.f32 %v1985, %v1984
    %v1987 = vmul.f32 0.5, %v1986
    %v1988 = vsub.f32 1.5, %v1987
    %v1989 = vmul.f32 %v1984, %v1988
    %vm1990 = vweird.f32 %v1691
    %vm1991 = vweird.f32 %v1984
    %vm1992 = vmor %vm1990, %vm1991
    %v1993 = vsel %vm1992, %v1984, %v1989
    %v1994 = vrsqrt.pop %v1692
    %v1995 = vmul.f32 %v1994, %v1692
    %v1996 = vmul.f32 %v1995, %v1994
    %v1997 = vmul.f32 0.5, %v1996
    %v1998 = vsub.f32 1.5, %v1997
    %v1999 = vmul.f32 %v1994, %v1998
    %vm2000 = vweird.f32 %v1692
    %vm2001 = vweird.f32 %v1994
    %vm2002 = vmor %vm2000, %vm2001
    %v2003 = vsel %vm2002, %v1994, %v1999
    %v2004 = vrsqrt.pop %v1693
    %v2005 = vmul.f32 %v2004, %v1693
    %v2006 = vmul.f32 %v2005, %v2004
    %v2007 = vmul.f32 0.5, %v2006
    %v2008 = vsub.f32 1.5, %v2007
    %v2009 = vmul.f32 %v2004, %v2008
    %vm2010 = vweird.f32 %v1693
    %vm2011 = vweird.f32 %v2004
    %vm2012 = vmor %vm2010, %vm2011
    %v2013 = vsel %vm2012, %v2004, %v2009
    %v2014 = vmul.f32 %v1439, %v1703
    %v2015 = vmul.f32 %v1442, %v1713
    %v2016 = vmul.f32 %v1445, %v1723
    %v2017 = vmul.f32 %v1448, %v1733
    %v2018 = vmul.f32 %v1451, %v1743
    %v2019 = vmul.f32 %v1454, %v1753
    %v2020 = vmul.f32 %v1457, %v1763
    %v2021 = vmul.f32 %v1460, %v1773
    %v2022 = vmul.f32 %v1463, %v1783
    %v2023 = vmul.f32 %v1466, %v1793
    %v2024 = vmul.f32 %v1469, %v1803
    %v2025 = vmul.f32 %v1472, %v1813
    %v2026 = vmul.f32 %v1475, %v1823
    %v2027 = vmul.f32 %v1478, %v1833
    %v2028 = vmul.f32 %v1481, %v1843
    %v2029 = vmul.f32 %v1484, %v1853
    %v2030 = vmul.f32 %v1487, %v1863
    %v2031 = vmul.f32 %v1490, %v1873
    %v2032 = vmul.f32 %v1493, %v1883
    %v2033 = vmul.f32 %v1496, %v1893
    %v2034 = vmul.f32 %v1499, %v1903
    %v2035 = vmul.f32 %v1502, %v1913
    %v2036 = vmul.f32 %v1505, %v1923
    %v2037 = vmul.f32 %v1508, %v1933
    %v2038 = vmul.f32 %v1511, %v1943
    %v2039 = vmul.f32 %v1514, %v1953
    %v2040 = vmul.f32 %v1517, %v1963
    %v2041 = vmul.f32 %v1520, %v1973
    %v2042 = vmul.f32 %v1523, %v1983
    %v2043 = vmul.f32 %v1526, %v1993
    %v2044 = vmul.f32 %v1529, %v2003
    %v2045 = vmul.f32 %v1532, %v2013
    %2046 = vst.msk [vmem:[#allocation7] sm:$0xff] %vm389, %v2014
    %2047 = vst.msk [vmem:[#allocation7 + $0x8] sm:$0xff] %vm389, %v2015
    %2048 = vst.msk [vmem:[#allocation7 + $0x10] sm:$0xff] %vm389, %v2016
    %2049 = vst.msk [vmem:[#allocation7 + $0x18] sm:$0xff] %vm389, %v2017
    %2050 = vst.msk [vmem:[#allocation7 + $0x20] sm:$0xff] %vm389, %v2018
    %2051 = vst.msk [vmem:[#allocation7 + $0x28] sm:$0xff] %vm389, %v2019
    %2052 = vst.msk [vmem:[#allocation7 + $0x30] sm:$0xff] %vm389, %v2020
    %2053 = vst.msk [vmem:[#allocation7 + $0x38] sm:$0xff] %vm389, %v2021
    %2054 = vst.msk [vmem:[#allocation7 + $0x40] sm:$0xff] %vm389, %v2022
    %2055 = vst.msk [vmem:[#allocation7 + $0x48] sm:$0xff] %vm389, %v2023
    %2056 = vst.msk [vmem:[#allocation7 + $0x50] sm:$0xff] %vm389, %v2024
    %2057 = vst.msk [vmem:[#allocation7 + $0x58] sm:$0xff] %vm389, %v2025
    %2058 = vst.msk [vmem:[#allocation7 + $0x60] sm:$0xff] %vm389, %v2026
    %2059 = vst.msk [vmem:[#allocation7 + $0x68] sm:$0xff] %vm389, %v2027
    %2060 = vst.msk [vmem:[#allocation7 + $0x70] sm:$0xff] %vm389, %v2028
    %2061 = vst.msk [vmem:[#allocation7 + $0x78] sm:$0xff] %vm389, %v2029
    %2062 = vst.msk [vmem:[#allocation7 + $0x80] sm:$0xff] %vm389, %v2030
    %2063 = vst.msk [vmem:[#allocation7 + $0x88] sm:$0xff] %vm389, %v2031
    %2064 = vst.msk [vmem:[#allocation7 + $0x90] sm:$0xff] %vm389, %v2032
    %2065 = vst.msk [vmem:[#allocation7 + $0x98] sm:$0xff] %vm389, %v2033
    %2066 = vst.msk [vmem:[#allocation7 + $0xa0] sm:$0xff] %vm389, %v2034
    %2067 = vst.msk [vmem:[#allocation7 + $0xa8] sm:$0xff] %vm389, %v2035
    %2068 = vst.msk [vmem:[#allocation7 + $0xb0] sm:$0xff] %vm389, %v2036
    %2069 = vst.msk [vmem:[#allocation7 + $0xb8] sm:$0xff] %vm389, %v2037
    %2070 = vst.msk [vmem:[#allocation7 + $0xc0] sm:$0xff] %vm389, %v2038
    %2071 = vst.msk [vmem:[#allocation7 + $0xc8] sm:$0xff] %vm389, %v2039
    %2072 = vst.msk [vmem:[#allocation7 + $0xd0] sm:$0xff] %vm389, %v2040
    %2073 = vst.msk [vmem:[#allocation7 + $0xd8] sm:$0xff] %vm389, %v2041
    %2074 = vst.msk [vmem:[#allocation7 + $0xe0] sm:$0xff] %vm389, %v2042
    %2075 = vst.msk [vmem:[#allocation7 + $0xe8] sm:$0xff] %vm389, %v2043
    %2076 = vst.msk [vmem:[#allocation7 + $0xf0] sm:$0xff] %vm389, %v2044
    %2077 = vst.msk [vmem:[#allocation7 + $0xf8] sm:$0xff] %vm389, %v2045
    %v2078 = vld [vmem:[#allocation6] sm:$0xff]
    %v2079 = vld [vmem:[#allocation6 + $0x8] sm:$0xff]
    %v2080 = vld [vmem:[#allocation6 + $0x10] sm:$0xff]
    %v2081 = vld [vmem:[#allocation6 + $0x18] sm:$0xff]
    %v2082 = vld [vmem:[#allocation6 + $0x20] sm:$0xff]
    %v2083 = vld [vmem:[#allocation6 + $0x28] sm:$0xff]
    %v2084 = vld [vmem:[#allocation6 + $0x30] sm:$0xff]
    %v2085 = vld [vmem:[#allocation6 + $0x38] sm:$0xff]
    %v2086 = vld [vmem:[#allocation6 + $0x40] sm:$0xff]
    %v2087 = vld [vmem:[#allocation6 + $0x48] sm:$0xff]
    %v2088 = vld [vmem:[#allocation6 + $0x50] sm:$0xff]
    %v2089 = vld [vmem:[#allocation6 + $0x58] sm:$0xff]
    %v2090 = vld [vmem:[#allocation6 + $0x60] sm:$0xff]
    %v2091 = vld [vmem:[#allocation6 + $0x68] sm:$0xff]
    %v2092 = vld [vmem:[#allocation6 + $0x70] sm:$0xff]
    %v2093 = vld [vmem:[#allocation6 + $0x78] sm:$0xff]
    %s2094 = sadd.s32 0, 128
    %s2095 = scalar_lea.vmem [#allocation6], %s2094
    %v2096 = vld [vmem:[%s2095] sm:$0xff]
    %v2097 = vld [vmem:[%s2095 + $0x8] sm:$0xff]
    %v2098 = vld [vmem:[%s2095 + $0x10] sm:$0xff]
    %v2099 = vld [vmem:[%s2095 + $0x18] sm:$0xff]
    %v2100 = vld [vmem:[%s2095 + $0x20] sm:$0xff]
    %v2101 = vld [vmem:[%s2095 + $0x28] sm:$0xff]
    %v2102 = vld [vmem:[%s2095 + $0x30] sm:$0xff]
    %v2103 = vld [vmem:[%s2095 + $0x38] sm:$0xff]
    %v2104 = vld [vmem:[%s2095 + $0x40] sm:$0xff]
    %v2105 = vld [vmem:[%s2095 + $0x48] sm:$0xff]
    %v2106 = vld [vmem:[%s2095 + $0x50] sm:$0xff]
    %v2107 = vld [vmem:[%s2095 + $0x58] sm:$0xff]
    %v2108 = vld [vmem:[%s2095 + $0x60] sm:$0xff]
    %v2109 = vld [vmem:[%s2095 + $0x68] sm:$0xff]
    %v2110 = vld [vmem:[%s2095 + $0x70] sm:$0xff]
    %v2111 = vld [vmem:[%s2095 + $0x78] sm:$0xff]
    %v2112 = vld [vmem:[%s8] sm:$0xf]
    %v2113 = vpack.c.bf16 %v2079, %v2078
    %v2114 = vpack.c.bf16 %v2081, %v2080
    %v2115 = vpack.c.bf16 %v2083, %v2082
    %v2116 = vpack.c.bf16 %v2085, %v2084
    %v2117 = vpack.c.bf16 %v2087, %v2086
    %v2118 = vpack.c.bf16 %v2089, %v2088
    %v2119 = vpack.c.bf16 %v2091, %v2090
    %v2120 = vpack.c.bf16 %v2093, %v2092
    %v2121 = vld [vmem:[%s9] sm:$0xf]
    %v2122 = vpack.c.bf16 %v2097, %v2096
    %v2123 = vpack.c.bf16 %v2099, %v2098
    %v2124 = vpack.c.bf16 %v2101, %v2100
    %v2125 = vpack.c.bf16 %v2103, %v2102
    %v2126 = vpack.c.bf16 %v2105, %v2104
    %v2127 = vpack.c.bf16 %v2107, %v2106
    %v2128 = vpack.c.bf16 %v2109, %v2108
    %v2129 = vpack.c.bf16 %v2111, %v2110
    %v2131 = vsel %vm389, %v2122, 0
    %v2134 = vsel %vm389, %v2123, 0
    %v2137 = vsel %vm389, %v2124, 0
    %v2140 = vsel %vm389, %v2125, 0
    %v2143 = vsel %vm389, %v2126, 0
    %v2146 = vsel %vm389, %v2127, 0
    %v2149 = vsel %vm389, %v2128, 0
    %v2152 = vsel %vm389, %v2129, 0
    %vm2154 = vcmask 1043456
    %v2156 = vsel %vm2154, %v2121, 0
    %2158 = vmatpush.bf16.msra.mxu0 0
    %2159 = vmatpush.bf16.msra.mxu0 0
    %2160 = vmatpush.bf16.msra.mxu0 0
    %2161 = vmatpush.bf16.msra.mxu0 0
    %2162 = vmatpush.bf16.msra.mxu0 0
    %2163 = vmatpush.bf16.msra.mxu0 0
    %2164 = vmatpush.bf16.msra.mxu0 0
    %2165 = vmatpush.bf16.msra.mxu0 %v2156
    %2166 = vmatmul.bf16.gmra.mxu0 %v2131
    %v2167 = vpop.f32.mrf.mxu0
    %v2168 = vadd.f32 0.0, %v2167
    %v2169 = vpop.f32.mrf.mxu0
    %v2170 = vadd.f32 0.0, %v2169
    %2171 = vmatmul.bf16.gmra.mxu0 %v2134
    %v2172 = vpop.f32.mrf.mxu0
    %v2173 = vadd.f32 0.0, %v2172
    %v2174 = vpop.f32.mrf.mxu0
    %v2175 = vadd.f32 0.0, %v2174
    %2176 = vmatmul.bf16.gmra.mxu0 %v2137
    %v2177 = vpop.f32.mrf.mxu0
    %v2178 = vadd.f32 0.0, %v2177
    %v2179 = vpop.f32.mrf.mxu0
    %v2180 = vadd.f32 0.0, %v2179
    %2181 = vmatmul.bf16.gmra.mxu0 %v2140
    %v2182 = vpop.f32.mrf.mxu0
    %v2183 = vadd.f32 0.0, %v2182
    %v2184 = vpop.f32.mrf.mxu0
    %v2185 = vadd.f32 0.0, %v2184
    %2186 = vmatmul.bf16.gmra.mxu0 %v2143
    %v2187 = vpop.f32.mrf.mxu0
    %v2188 = vadd.f32 0.0, %v2187
    %v2189 = vpop.f32.mrf.mxu0
    %v2190 = vadd.f32 0.0, %v2189
    %2191 = vmatmul.bf16.gmra.mxu0 %v2146
    %v2192 = vpop.f32.mrf.mxu0
    %v2193 = vadd.f32 0.0, %v2192
    %v2194 = vpop.f32.mrf.mxu0
    %v2195 = vadd.f32 0.0, %v2194
    %2196 = vmatmul.bf16.gmra.mxu0 %v2149
    %v2197 = vpop.f32.mrf.mxu0
    %v2198 = vadd.f32 0.0, %v2197
    %v2199 = vpop.f32.mrf.mxu0
    %v2200 = vadd.f32 0.0, %v2199
    %2201 = vmatmul.bf16.gmra.mxu0 %v2152
    %v2202 = vpop.f32.mrf.mxu0
    %v2203 = vadd.f32 0.0, %v2202
    %v2204 = vpop.f32.mrf.mxu0
    %v2205 = vadd.f32 0.0, %v2204
    %2206 = vdwg.mxu0
    %v2208 = vsel %vm389, %v2113, 0
    %v2211 = vsel %vm389, %v2114, 0
    %v2214 = vsel %vm389, %v2115, 0
    %v2217 = vsel %vm389, %v2116, 0
    %v2220 = vsel %vm389, %v2117, 0
    %v2223 = vsel %vm389, %v2118, 0
    %v2226 = vsel %vm389, %v2119, 0
    %v2229 = vsel %vm389, %v2120, 0
    %v2232 = vsel %vm2154, %v2112, 0
    %2234 = vmatpush.bf16.msra.mxu0 0
    %2235 = vmatpush.bf16.msra.mxu0 0
    %2236 = vmatpush.bf16.msra.mxu0 0
    %2237 = vmatpush.bf16.msra.mxu0 0
    %2238 = vmatpush.bf16.msra.mxu0 0
    %2239 = vmatpush.bf16.msra.mxu0 0
    %2240 = vmatpush.bf16.msra.mxu0 0
    %2241 = vmatpush.bf16.msra.mxu0 %v2232
    %2242 = vmatmul.bf16.gmra.mxu0 %v2208
    %v2243 = vpop.f32.mrf.mxu0
    %v2244 = vadd.f32 %v2168, %v2243
    %v2245 = vpop.f32.mrf.mxu0
    %v2246 = vadd.f32 %v2170, %v2245
    %2247 = vmatmul.bf16.gmra.mxu0 %v2211
    %v2248 = vpop.f32.mrf.mxu0
    %v2249 = vadd.f32 %v2173, %v2248
    %v2250 = vpop.f32.mrf.mxu0
    %v2251 = vadd.f32 %v2175, %v2250
    %2252 = vmatmul.bf16.gmra.mxu0 %v2214
    %v2253 = vpop.f32.mrf.mxu0
    %v2254 = vadd.f32 %v2178, %v2253
    %v2255 = vpop.f32.mrf.mxu0
    %v2256 = vadd.f32 %v2180, %v2255
    %2257 = vmatmul.bf16.gmra.mxu0 %v2217
    %v2258 = vpop.f32.mrf.mxu0
    %v2259 = vadd.f32 %v2183, %v2258
    %v2260 = vpop.f32.mrf.mxu0
    %v2261 = vadd.f32 %v2185, %v2260
    %2262 = vmatmul.bf16.gmra.mxu0 %v2220
    %v2263 = vpop.f32.mrf.mxu0
    %v2264 = vadd.f32 %v2188, %v2263
    %v2265 = vpop.f32.mrf.mxu0
    %v2266 = vadd.f32 %v2190, %v2265
    %2267 = vmatmul.bf16.gmra.mxu0 %v2223
    %v2268 = vpop.f32.mrf.mxu0
    %v2269 = vadd.f32 %v2193, %v2268
    %v2270 = vpop.f32.mrf.mxu0
    %v2271 = vadd.f32 %v2195, %v2270
    %2272 = vmatmul.bf16.gmra.mxu0 %v2226
    %v2273 = vpop.f32.mrf.mxu0
    %v2274 = vadd.f32 %v2198, %v2273
    %v2275 = vpop.f32.mrf.mxu0
    %v2276 = vadd.f32 %v2200, %v2275
    %2277 = vmatmul.bf16.gmra.mxu0 %v2229
    %v2278 = vpop.f32.mrf.mxu0
    %v2279 = vadd.f32 %v2203, %v2278
    %v2280 = vpop.f32.mrf.mxu0
    %v2281 = vadd.f32 %v2205, %v2280
    %2282 = vdwg.mxu0
    %v2283 = vld [vmem:[%s10] sm:$0x1]
    %v2285 = vperm.slane %v2283, 0
    %v2287 = vadd.f32 %v2244, %v2285
    %v2288 = vadd.f32 %v2246, %v2285
    %v2289 = vadd.f32 %v2249, %v2285
    %v2290 = vadd.f32 %v2251, %v2285
    %v2291 = vadd.f32 %v2254, %v2285
    %v2292 = vadd.f32 %v2256, %v2285
    %v2293 = vadd.f32 %v2259, %v2285
    %v2294 = vadd.f32 %v2261, %v2285
    %v2295 = vadd.f32 %v2264, %v2285
    %v2296 = vadd.f32 %v2266, %v2285
    %v2297 = vadd.f32 %v2269, %v2285
    %v2298 = vadd.f32 %v2271, %v2285
    %v2299 = vadd.f32 %v2274, %v2285
    %v2300 = vadd.f32 %v2276, %v2285
    %v2301 = vadd.f32 %v2279, %v2285
    %v2302 = vadd.f32 %v2281, %v2285
    %v2303 = vmax.f32 %v2287, 0.0
    %v2304 = vmax.f32 %v2288, 0.0
    %v2305 = vmax.f32 %v2289, 0.0
    %v2306 = vmax.f32 %v2290, 0.0
    %v2307 = vmax.f32 %v2291, 0.0
    %v2308 = vmax.f32 %v2292, 0.0
    %v2309 = vmax.f32 %v2293, 0.0
    %v2310 = vmax.f32 %v2294, 0.0
    %v2311 = vmax.f32 %v2295, 0.0
    %v2312 = vmax.f32 %v2296, 0.0
    %v2313 = vmax.f32 %v2297, 0.0
    %v2314 = vmax.f32 %v2298, 0.0
    %v2315 = vmax.f32 %v2299, 0.0
    %v2316 = vmax.f32 %v2300, 0.0
    %v2317 = vmax.f32 %v2301, 0.0
    %v2318 = vmax.f32 %v2302, 0.0
    %v2319 = vld [vmem:[%s11] sm:$0xf]
    %v2320 = vld [vmem:[%s11 + $0x4] sm:$0xf]
    %v2321 = vld [vmem:[%s11 + $0x8] sm:$0xf]
    %v2322 = vpack.c.bf16 %v2304, %v2303
    %v2323 = vpack.c.bf16 %v2306, %v2305
    %v2324 = vpack.c.bf16 %v2308, %v2307
    %v2325 = vpack.c.bf16 %v2310, %v2309
    %v2326 = vpack.c.bf16 %v2312, %v2311
    %v2327 = vpack.c.bf16 %v2314, %v2313
    %v2328 = vpack.c.bf16 %v2316, %v2315
    %v2329 = vpack.c.bf16 %v2318, %v2317
    %v2330 = vld [vmem:[%s12] sm:$0x1]
    %v2332 = vperm.slane %v2330, 0
    %v2337 = vunpack.c.l.b16 %v2319
    %v2338 = vunpack.c.l.b16 %v2320
    %v2339 = vunpack.c.l.b16 %v2321
    %v2340 = vpack.c.b16 %v2338, %v2337
    %v2341 = vpack.c.b16 %v2339, %v2339
    %vm2343 = vcmask 195584
    %v2345 = vsel %vm2343, %v2322, 0
    %v2348 = vsel %vm2343, %v2323, 0
    %v2351 = vsel %vm2343, %v2324, 0
    %v2354 = vsel %vm2343, %v2325, 0
    %v2357 = vsel %vm2343, %v2326, 0
    %v2360 = vsel %vm2343, %v2327, 0
    %v2363 = vsel %vm2343, %v2328, 0
    %v2366 = vsel %vm2343, %v2329, 0
    %v2369 = vsel %vm2154, %v2341, 0
    %2371 = vmatpush.bf16.msra.mxu0 0
    %2372 = vmatpush.bf16.msra.mxu0 0
    %2373 = vmatpush.bf16.msra.mxu0 0
    %2374 = vmatpush.bf16.msra.mxu0 0
    %2375 = vmatpush.bf16.msra.mxu0 0
    %2376 = vmatpush.bf16.msra.mxu0 0
    %2377 = vmatpush.bf16.msra.mxu0 %v2369
    %2378 = vmatpush.bf16.msra.mxu0 %v2340
    %2379 = vmatmul.bf16.gmra.mxu0 %v2345
    %v2380 = vpop.f32.mrf.mxu0
    %v2381 = vadd.f32 %v2332, %v2380
    %v2382 = vpop.f32.mrf.mxu0
    %v2383 = vadd.f32 %v2332, %v2382
    %2384 = vmatmul.bf16.gmra.mxu0 %v2348
    %v2385 = vpop.f32.mrf.mxu0
    %v2386 = vadd.f32 %v2332, %v2385
    %v2387 = vpop.f32.mrf.mxu0
    %v2388 = vadd.f32 %v2332, %v2387
    %2389 = vmatmul.bf16.gmra.mxu0 %v2351
    %v2390 = vpop.f32.mrf.mxu0
    %v2391 = vadd.f32 %v2332, %v2390
    %v2392 = vpop.f32.mrf.mxu0
    %v2393 = vadd.f32 %v2332, %v2392
    %2394 = vmatmul.bf16.gmra.mxu0 %v2354
    %v2395 = vpop.f32.mrf.mxu0
    %v2396 = vadd.f32 %v2332, %v2395
    %v2397 = vpop.f32.mrf.mxu0
    %v2398 = vadd.f32 %v2332, %v2397
    %2399 = vmatmul.bf16.gmra.mxu0 %v2357
    %v2400 = vpop.f32.mrf.mxu0
    %v2401 = vadd.f32 %v2332, %v2400
    %v2402 = vpop.f32.mrf.mxu0
    %v2403 = vadd.f32 %v2332, %v2402
    %2404 = vmatmul.bf16.gmra.mxu0 %v2360
    %v2405 = vpop.f32.mrf.mxu0
    %v2406 = vadd.f32 %v2332, %v2405
    %v2407 = vpop.f32.mrf.mxu0
    %v2408 = vadd.f32 %v2332, %v2407
    %2409 = vmatmul.bf16.gmra.mxu0 %v2363
    %v2410 = vpop.f32.mrf.mxu0
    %v2411 = vadd.f32 %v2332, %v2410
    %v2412 = vpop.f32.mrf.mxu0
    %v2413 = vadd.f32 %v2332, %v2412
    %2414 = vmatmul.bf16.gmra.mxu0 %v2366
    %v2415 = vpop.f32.mrf.mxu0
    %v2416 = vadd.f32 %v2332, %v2415
    %v2417 = vpop.f32.mrf.mxu0
    %v2418 = vadd.f32 %v2332, %v2417
    %2419 = vdwg.mxu0
    %v2420 = vmax.f32 %v2381, 0.0
    %v2421 = vmax.f32 %v2383, 0.0
    %v2422 = vmax.f32 %v2386, 0.0
    %v2423 = vmax.f32 %v2388, 0.0
    %v2424 = vmax.f32 %v2391, 0.0
    %v2425 = vmax.f32 %v2393, 0.0
    %v2426 = vmax.f32 %v2396, 0.0
    %v2427 = vmax.f32 %v2398, 0.0
    %v2428 = vmax.f32 %v2401, 0.0
    %v2429 = vmax.f32 %v2403, 0.0
    %v2430 = vmax.f32 %v2406, 0.0
    %v2431 = vmax.f32 %v2408, 0.0
    %v2432 = vmax.f32 %v2411, 0.0
    %v2433 = vmax.f32 %v2413, 0.0
    %v2434 = vmax.f32 %v2416, 0.0
    %v2435 = vmax.f32 %v2418, 0.0
    %v2436 = vld [vmem:[#allocation2] sm:$0xff]
    %v2437 = vld [vmem:[#allocation2 + $0x8] sm:$0xff]
    %v2438 = vld [vmem:[#allocation2 + $0x10] sm:$0xff]
    %v2439 = vld [vmem:[#allocation2 + $0x18] sm:$0xff]
    %v2440 = vld [vmem:[#allocation2 + $0x20] sm:$0xff]
    %v2441 = vld [vmem:[#allocation2 + $0x28] sm:$0xff]
    %v2442 = vld [vmem:[#allocation2 + $0x30] sm:$0xff]
    %v2443 = vld [vmem:[#allocation2 + $0x38] sm:$0xff]
    %v2444 = vld [vmem:[#allocation2 + $0x40] sm:$0xff]
    %v2445 = vld [vmem:[#allocation2 + $0x48] sm:$0xff]
    %v2446 = vld [vmem:[#allocation2 + $0x50] sm:$0xff]
    %v2447 = vld [vmem:[#allocation2 + $0x58] sm:$0xff]
    %v2448 = vld [vmem:[#allocation2 + $0x60] sm:$0xff]
    %v2449 = vld [vmem:[#allocation2 + $0x68] sm:$0xff]
    %v2450 = vld [vmem:[#allocation2 + $0x70] sm:$0xff]
    %v2451 = vld [vmem:[#allocation2 + $0x78] sm:$0xff]
    %v2452 = vld [vmem:[%s13] sm:$0xf]
    %v2453 = vld [vmem:[%s13 + $0x4] sm:$0xf]
    %v2454 = vld [vmem:[%s13 + $0x8] sm:$0xf]
    %v2455 = vld [vmem:[%s13 + $0xc] sm:$0xf]
    %v2456 = vpack.c.bf16 %v2421, %v2420
    %v2457 = vpack.c.bf16 %v2423, %v2422
    %v2458 = vpack.c.bf16 %v2425, %v2424
    %v2459 = vpack.c.bf16 %v2427, %v2426
    %v2460 = vpack.c.bf16 %v2429, %v2428
    %v2461 = vpack.c.bf16 %v2431, %v2430
    %v2462 = vpack.c.bf16 %v2433, %v2432
    %v2463 = vpack.c.bf16 %v2435, %v2434
    %v2464 = vld [vmem:[%s14] sm:$0x1]
    %v2466 = vperm.slane %v2464, 0
    %v2472 = vunpack.c.l.b16 %v2452
    %v2473 = vunpack.c.l.b16 %v2453
    %v2474 = vunpack.c.l.b16 %v2454
    %v2475 = vunpack.c.l.b16 %v2455
    %v2476 = vpack.c.b16 %v2473, %v2472
    %v2477 = vpack.c.b16 %v2475, %v2474
    %v2481 = vsel %vm91, %v2456, 0
    %v2484 = vsel %vm91, %v2457, 0
    %v2487 = vsel %vm91, %v2458, 0
    %v2490 = vsel %vm91, %v2459, 0
    %v2493 = vsel %vm91, %v2460, 0
    %v2496 = vsel %vm91, %v2461, 0
    %v2499 = vsel %vm91, %v2462, 0
    %v2502 = vsel %vm91, %v2463, 0
    %2504 = vmatpush.bf16.msra.mxu0 0
    %2505 = vmatpush.bf16.msra.mxu0 0
    %2506 = vmatpush.bf16.msra.mxu0 0
    %2507 = vmatpush.bf16.msra.mxu0 0
    %2508 = vmatpush.bf16.msra.mxu0 0
    %2509 = vmatpush.bf16.msra.mxu0 0
    %2510 = vmatpush.bf16.msra.mxu0 %v2477
    %2511 = vmatpush.bf16.msra.mxu0 %v2476
    %2512 = vmatmul.bf16.gmra.mxu0 %v2481
    %v2513 = vpop.f32.mrf.mxu0
    %v2514 = vadd.f32 %v2466, %v2513
    %v2515 = vpop.f32.mrf.mxu0
    %v2516 = vadd.f32 %v2466, %v2515
    %2517 = vmatmul.bf16.gmra.mxu0 %v2484
    %v2518 = vpop.f32.mrf.mxu0
    %v2519 = vadd.f32 %v2466, %v2518
    %v2520 = vpop.f32.mrf.mxu0
    %v2521 = vadd.f32 %v2466, %v2520
    %2522 = vmatmul.bf16.gmra.mxu0 %v2487
    %v2523 = vpop.f32.mrf.mxu0
    %v2524 = vadd.f32 %v2466, %v2523
    %v2525 = vpop.f32.mrf.mxu0
    %v2526 = vadd.f32 %v2466, %v2525
    %2527 = vmatmul.bf16.gmra.mxu0 %v2490
    %v2528 = vpop.f32.mrf.mxu0
    %v2529 = vadd.f32 %v2466, %v2528
    %v2530 = vpop.f32.mrf.mxu0
    %v2531 = vadd.f32 %v2466, %v2530
    %2532 = vmatmul.bf16.gmra.mxu0 %v2493
    %v2533 = vpop.f32.mrf.mxu0
    %v2534 = vadd.f32 %v2466, %v2533
    %v2535 = vpop.f32.mrf.mxu0
    %v2536 = vadd.f32 %v2466, %v2535
    %2537 = vmatmul.bf16.gmra.mxu0 %v2496
    %v2538 = vpop.f32.mrf.mxu0
    %v2539 = vadd.f32 %v2466, %v2538
    %v2540 = vpop.f32.mrf.mxu0
    %v2541 = vadd.f32 %v2466, %v2540
    %2542 = vmatmul.bf16.gmra.mxu0 %v2499
    %v2543 = vpop.f32.mrf.mxu0
    %v2544 = vadd.f32 %v2466, %v2543
    %v2545 = vpop.f32.mrf.mxu0
    %v2546 = vadd.f32 %v2466, %v2545
    %2547 = vmatmul.bf16.gmra.mxu0 %v2502
    %v2548 = vpop.f32.mrf.mxu0
    %v2549 = vadd.f32 %v2466, %v2548
    %v2550 = vpop.f32.mrf.mxu0
    %v2551 = vadd.f32 %v2466, %v2550
    %2552 = vdwg.mxu0
    %v2553 = vld [vmem:[%s15] sm:$0xf]
    %v2554 = vld [vmem:[%s15 + $0x4] sm:$0xf]
    %v2555 = vld [vmem:[%s15 + $0x8] sm:$0xf]
    %v2556 = vld [vmem:[%s15 + $0xc] sm:$0xf]
    %v2557 = vpack.c.bf16 %v2437, %v2436
    %v2558 = vpack.c.bf16 %v2439, %v2438
    %v2559 = vpack.c.bf16 %v2441, %v2440
    %v2560 = vpack.c.bf16 %v2443, %v2442
    %v2561 = vpack.c.bf16 %v2445, %v2444
    %v2562 = vpack.c.bf16 %v2447, %v2446
    %v2563 = vpack.c.bf16 %v2449, %v2448
    %v2564 = vpack.c.bf16 %v2451, %v2450
    %v2565 = vld [vmem:[%s16] sm:$0x1]
    %v2567 = vperm.slane %v2565, 0
    %v2573 = vunpack.c.l.b16 %v2553
    %v2574 = vunpack.c.l.b16 %v2554
    %v2575 = vunpack.c.l.b16 %v2555
    %v2576 = vunpack.c.l.b16 %v2556
    %v2577 = vpack.c.b16 %v2574, %v2573
    %v2578 = vpack.c.b16 %v2576, %v2575
    %v2582 = vsel %vm91, %v2557, 0
    %v2585 = vsel %vm91, %v2558, 0
    %v2588 = vsel %vm91, %v2559, 0
    %v2591 = vsel %vm91, %v2560, 0
    %v2594 = vsel %vm91, %v2561, 0
    %v2597 = vsel %vm91, %v2562, 0
    %v2600 = vsel %vm91, %v2563, 0
    %v2603 = vsel %vm91, %v2564, 0
    %2605 = vmatpush.bf16.msra.mxu0 0
    %2606 = vmatpush.bf16.msra.mxu0 0
    %2607 = vmatpush.bf16.msra.mxu0 0
    %2608 = vmatpush.bf16.msra.mxu0 0
    %2609 = vmatpush.bf16.msra.mxu0 0
    %2610 = vmatpush.bf16.msra.mxu0 0
    %2611 = vmatpush.bf16.msra.mxu0 %v2578
    %2612 = vmatpush.bf16.msra.mxu0 %v2577
    %2613 = vmatmul.bf16.gmra.mxu0 %v2582
    %v2614 = vpop.f32.mrf.mxu0
    %v2615 = vadd.f32 %v2567, %v2614
    %v2616 = vpop.f32.mrf.mxu0
    %v2617 = vadd.f32 %v2567, %v2616
    %2618 = vmatmul.bf16.gmra.mxu0 %v2585
    %v2619 = vpop.f32.mrf.mxu0
    %v2620 = vadd.f32 %v2567, %v2619
    %v2621 = vpop.f32.mrf.mxu0
    %v2622 = vadd.f32 %v2567, %v2621
    %2623 = vmatmul.bf16.gmra.mxu0 %v2588
    %v2624 = vpop.f32.mrf.mxu0
    %v2625 = vadd.f32 %v2567, %v2624
    %v2626 = vpop.f32.mrf.mxu0
    %v2627 = vadd.f32 %v2567, %v2626
    %2628 = vmatmul.bf16.gmra.mxu0 %v2591
    %v2629 = vpop.f32.mrf.mxu0
    %v2630 = vadd.f32 %v2567, %v2629
    %v2631 = vpop.f32.mrf.mxu0
    %v2632 = vadd.f32 %v2567, %v2631
    %2633 = vmatmul.bf16.gmra.mxu0 %v2594
    %v2634 = vpop.f32.mrf.mxu0
    %v2635 = vadd.f32 %v2567, %v2634
    %v2636 = vpop.f32.mrf.mxu0
    %v2637 = vadd.f32 %v2567, %v2636
    %2638 = vmatmul.bf16.gmra.mxu0 %v2597
    %v2639 = vpop.f32.mrf.mxu0
    %v2640 = vadd.f32 %v2567, %v2639
    %v2641 = vpop.f32.mrf.mxu0
    %v2642 = vadd.f32 %v2567, %v2641
    %2643 = vmatmul.bf16.gmra.mxu0 %v2600
    %v2644 = vpop.f32.mrf.mxu0
    %v2645 = vadd.f32 %v2567, %v2644
    %v2646 = vpop.f32.mrf.mxu0
    %v2647 = vadd.f32 %v2567, %v2646
    %2648 = vmatmul.bf16.gmra.mxu0 %v2603
    %v2649 = vpop.f32.mrf.mxu0
    %v2650 = vadd.f32 %v2567, %v2649
    %v2651 = vpop.f32.mrf.mxu0
    %v2652 = vadd.f32 %v2567, %v2651
    %2653 = vdwg.mxu0
    %v2654 = vadd.f32 %v2514, %v2615
    %v2655 = vadd.f32 %v2516, %v2617
    %v2656 = vadd.f32 %v2519, %v2620
    %v2657 = vadd.f32 %v2521, %v2622
    %v2658 = vadd.f32 %v2524, %v2625
    %v2659 = vadd.f32 %v2526, %v2627
    %v2660 = vadd.f32 %v2529, %v2630
    %v2661 = vadd.f32 %v2531, %v2632
    %v2662 = vadd.f32 %v2534, %v2635
    %v2663 = vadd.f32 %v2536, %v2637
    %v2664 = vadd.f32 %v2539, %v2640
    %v2665 = vadd.f32 %v2541, %v2642
    %v2666 = vadd.f32 %v2544, %v2645
    %v2667 = vadd.f32 %v2546, %v2647
    %v2668 = vadd.f32 %v2549, %v2650
    %v2669 = vadd.f32 %v2551, %v2652
    %v2670 = vxor.u32 %v2654, 2147483648
    %v2671 = vxor.u32 %v2655, 2147483648
    %v2672 = vxor.u32 %v2656, 2147483648
    %v2673 = vxor.u32 %v2657, 2147483648
    %v2674 = vxor.u32 %v2658, 2147483648
    %v2675 = vxor.u32 %v2659, 2147483648
    %v2676 = vxor.u32 %v2660, 2147483648
    %v2677 = vxor.u32 %v2661, 2147483648
    %v2678 = vxor.u32 %v2662, 2147483648
    %v2679 = vxor.u32 %v2663, 2147483648
    %v2680 = vxor.u32 %v2664, 2147483648
    %v2681 = vxor.u32 %v2665, 2147483648
    %v2682 = vxor.u32 %v2666, 2147483648
    %v2683 = vxor.u32 %v2667, 2147483648
    %v2684 = vxor.u32 %v2668, 2147483648
    %v2685 = vxor.u32 %v2669, 2147483648
    %v2686 = vmul.f32 %v2670, 1.442695
    %v2687 = vpow.pop %v2686
    %v2688 = vmul.f32 %v2671, 1.442695
    %v2689 = vpow.pop %v2688
    %v2690 = vmul.f32 %v2672, 1.442695
    %v2691 = vpow.pop %v2690
    %v2692 = vmul.f32 %v2673, 1.442695
    %v2693 = vpow.pop %v2692
    %v2694 = vmul.f32 %v2674, 1.442695
    %v2695 = vpow.pop %v2694
    %v2696 = vmul.f32 %v2675, 1.442695
    %v2697 = vpow.pop %v2696
    %v2698 = vmul.f32 %v2676, 1.442695
    %v2699 = vpow.pop %v2698
    %v2700 = vmul.f32 %v2677, 1.442695
    %v2701 = vpow.pop %v2700
    %v2702 = vmul.f32 %v2678, 1.442695
    %v2703 = vpow.pop %v2702
    %v2704 = vmul.f32 %v2679, 1.442695
    %v2705 = vpow.pop %v2704
    %v2706 = vmul.f32 %v2680, 1.442695
    %v2707 = vpow.pop %v2706
    %v2708 = vmul.f32 %v2681, 1.442695
    %v2709 = vpow.pop %v2708
    %v2710 = vmul.f32 %v2682, 1.442695
    %v2711 = vpow.pop %v2710
    %v2712 = vmul.f32 %v2683, 1.442695
    %v2713 = vpow.pop %v2712
    %v2714 = vmul.f32 %v2684, 1.442695
    %v2715 = vpow.pop %v2714
    %v2716 = vmul.f32 %v2685, 1.442695
    %v2717 = vpow.pop %v2716
    %v2718 = vadd.f32 %v2687, 1.0
    %v2719 = vadd.f32 %v2689, 1.0
    %v2720 = vadd.f32 %v2691, 1.0
    %v2721 = vadd.f32 %v2693, 1.0
    %v2722 = vadd.f32 %v2695, 1.0
    %v2723 = vadd.f32 %v2697, 1.0
    %v2724 = vadd.f32 %v2699, 1.0
    %v2725 = vadd.f32 %v2701, 1.0
    %v2726 = vadd.f32 %v2703, 1.0
    %v2727 = vadd.f32 %v2705, 1.0
    %v2728 = vadd.f32 %v2707, 1.0
    %v2729 = vadd.f32 %v2709, 1.0
    %v2730 = vadd.f32 %v2711, 1.0
    %v2731 = vadd.f32 %v2713, 1.0
    %v2732 = vadd.f32 %v2715, 1.0
    %v2733 = vadd.f32 %v2717, 1.0
    %v2734 = vrcp.pop %v2718
    %v2735 = vmul.f32 %v2718, %v2734
    %v2736 = vsub.f32 1.0, %v2735
    %v2737 = vmul.f32 %v2734, %v2736
    %v2738 = vadd.f32 %v2734, %v2737
    %vm2739 = vweird.f32 %v2718
    %vm2740 = vweird.f32 %v2734
    %vm2741 = vmor %vm2739, %vm2740
    %v2742 = vsel %vm2741, %v2734, %v2738
    %v2743 = vand.u32 2147483647, %v2718
    %vm2744 = vcmp.eq.f32.partialorder %v2743, 8.507059e+37
    %v2745 = vand.u32 %v2718, 2147483648
    %v2746 = vor.u32 1.1754944e-38, %v2745
    %v2747 = vsel %vm2744, %v2746, %v2742
    %v2748 = vmul.f32 1.0, %v2747
    %v2749 = vrcp.pop %v2719
    %v2750 = vmul.f32 %v2719, %v2749
    %v2751 = vsub.f32 1.0, %v2750
    %v2752 = vmul.f32 %v2749, %v2751
    %v2753 = vadd.f32 %v2749, %v2752
    %vm2754 = vweird.f32 %v2719
    %vm2755 = vweird.f32 %v2749
    %vm2756 = vmor %vm2754, %vm2755
    %v2757 = vsel %vm2756, %v2749, %v2753
    %v2758 = vand.u32 2147483647, %v2719
    %vm2759 = vcmp.eq.f32.partialorder %v2758, 8.507059e+37
    %v2760 = vand.u32 %v2719, 2147483648
    %v2761 = vor.u32 1.1754944e-38, %v2760
    %v2762 = vsel %vm2759, %v2761, %v2757
    %v2763 = vmul.f32 1.0, %v2762
    %v2764 = vrcp.pop %v2720
    %v2765 = vmul.f32 %v2720, %v2764
    %v2766 = vsub.f32 1.0, %v2765
    %v2767 = vmul.f32 %v2764, %v2766
    %v2768 = vadd.f32 %v2764, %v2767
    %vm2769 = vweird.f32 %v2720
    %vm2770 = vweird.f32 %v2764
    %vm2771 = vmor %vm2769, %vm2770
    %v2772 = vsel %vm2771, %v2764, %v2768
    %v2773 = vand.u32 2147483647, %v2720
    %vm2774 = vcmp.eq.f32.partialorder %v2773, 8.507059e+37
    %v2775 = vand.u32 %v2720, 2147483648
    %v2776 = vor.u32 1.1754944e-38, %v2775
    %v2777 = vsel %vm2774, %v2776, %v2772
    %v2778 = vmul.f32 1.0, %v2777
    %v2779 = vrcp.pop %v2721
    %v2780 = vmul.f32 %v2721, %v2779
    %v2781 = vsub.f32 1.0, %v2780
    %v2782 = vmul.f32 %v2779, %v2781
    %v2783 = vadd.f32 %v2779, %v2782
    %vm2784 = vweird.f32 %v2721
    %vm2785 = vweird.f32 %v2779
    %vm2786 = vmor %vm2784, %vm2785
    %v2787 = vsel %vm2786, %v2779, %v2783
    %v2788 = vand.u32 2147483647, %v2721
    %vm2789 = vcmp.eq.f32.partialorder %v2788, 8.507059e+37
    %v2790 = vand.u32 %v2721, 2147483648
    %v2791 = vor.u32 1.1754944e-38, %v2790
    %v2792 = vsel %vm2789, %v2791, %v2787
    %v2793 = vmul.f32 1.0, %v2792
    %v2794 = vrcp.pop %v2722
    %v2795 = vmul.f32 %v2722, %v2794
    %v2796 = vsub.f32 1.0, %v2795
    %v2797 = vmul.f32 %v2794, %v2796
    %v2798 = vadd.f32 %v2794, %v2797
    %vm2799 = vweird.f32 %v2722
    %vm2800 = vweird.f32 %v2794
    %vm2801 = vmor %vm2799, %vm2800
    %v2802 = vsel %vm2801, %v2794, %v2798
    %v2803 = vand.u32 2147483647, %v2722
    %vm2804 = vcmp.eq.f32.partialorder %v2803, 8.507059e+37
    %v2805 = vand.u32 %v2722, 2147483648
    %v2806 = vor.u32 1.1754944e-38, %v2805
    %v2807 = vsel %vm2804, %v2806, %v2802
    %v2808 = vmul.f32 1.0, %v2807
    %v2809 = vrcp.pop %v2723
    %v2810 = vmul.f32 %v2723, %v2809
    %v2811 = vsub.f32 1.0, %v2810
    %v2812 = vmul.f32 %v2809, %v2811
    %v2813 = vadd.f32 %v2809, %v2812
    %vm2814 = vweird.f32 %v2723
    %vm2815 = vweird.f32 %v2809
    %vm2816 = vmor %vm2814, %vm2815
    %v2817 = vsel %vm2816, %v2809, %v2813
    %v2818 = vand.u32 2147483647, %v2723
    %vm2819 = vcmp.eq.f32.partialorder %v2818, 8.507059e+37
    %v2820 = vand.u32 %v2723, 2147483648
    %v2821 = vor.u32 1.1754944e-38, %v2820
    %v2822 = vsel %vm2819, %v2821, %v2817
    %v2823 = vmul.f32 1.0, %v2822
    %v2824 = vrcp.pop %v2724
    %v2825 = vmul.f32 %v2724, %v2824
    %v2826 = vsub.f32 1.0, %v2825
    %v2827 = vmul.f32 %v2824, %v2826
    %v2828 = vadd.f32 %v2824, %v2827
    %vm2829 = vweird.f32 %v2724
    %vm2830 = vweird.f32 %v2824
    %vm2831 = vmor %vm2829, %vm2830
    %v2832 = vsel %vm2831, %v2824, %v2828
    %v2833 = vand.u32 2147483647, %v2724
    %vm2834 = vcmp.eq.f32.partialorder %v2833, 8.507059e+37
    %v2835 = vand.u32 %v2724, 2147483648
    %v2836 = vor.u32 1.1754944e-38, %v2835
    %v2837 = vsel %vm2834, %v2836, %v2832
    %v2838 = vmul.f32 1.0, %v2837
    %v2839 = vrcp.pop %v2725
    %v2840 = vmul.f32 %v2725, %v2839
    %v2841 = vsub.f32 1.0, %v2840
    %v2842 = vmul.f32 %v2839, %v2841
    %v2843 = vadd.f32 %v2839, %v2842
    %vm2844 = vweird.f32 %v2725
    %vm2845 = vweird.f32 %v2839
    %vm2846 = vmor %vm2844, %vm2845
    %v2847 = vsel %vm2846, %v2839, %v2843
    %v2848 = vand.u32 2147483647, %v2725
    %vm2849 = vcmp.eq.f32.partialorder %v2848, 8.507059e+37
    %v2850 = vand.u32 %v2725, 2147483648
    %v2851 = vor.u32 1.1754944e-38, %v2850
    %v2852 = vsel %vm2849, %v2851, %v2847
    %v2853 = vmul.f32 1.0, %v2852
    %v2854 = vrcp.pop %v2726
    %v2855 = vmul.f32 %v2726, %v2854
    %v2856 = vsub.f32 1.0, %v2855
    %v2857 = vmul.f32 %v2854, %v2856
    %v2858 = vadd.f32 %v2854, %v2857
    %vm2859 = vweird.f32 %v2726
    %vm2860 = vweird.f32 %v2854
    %vm2861 = vmor %vm2859, %vm2860
    %v2862 = vsel %vm2861, %v2854, %v2858
    %v2863 = vand.u32 2147483647, %v2726
    %vm2864 = vcmp.eq.f32.partialorder %v2863, 8.507059e+37
    %v2865 = vand.u32 %v2726, 2147483648
    %v2866 = vor.u32 1.1754944e-38, %v2865
    %v2867 = vsel %vm2864, %v2866, %v2862
    %v2868 = vmul.f32 1.0, %v2867
    %v2869 = vrcp.pop %v2727
    %v2870 = vmul.f32 %v2727, %v2869
    %v2871 = vsub.f32 1.0, %v2870
    %v2872 = vmul.f32 %v2869, %v2871
    %v2873 = vadd.f32 %v2869, %v2872
    %vm2874 = vweird.f32 %v2727
    %vm2875 = vweird.f32 %v2869
    %vm2876 = vmor %vm2874, %vm2875
    %v2877 = vsel %vm2876, %v2869, %v2873
    %v2878 = vand.u32 2147483647, %v2727
    %vm2879 = vcmp.eq.f32.partialorder %v2878, 8.507059e+37
    %v2880 = vand.u32 %v2727, 2147483648
    %v2881 = vor.u32 1.1754944e-38, %v2880
    %v2882 = vsel %vm2879, %v2881, %v2877
    %v2883 = vmul.f32 1.0, %v2882
    %v2884 = vrcp.pop %v2728
    %v2885 = vmul.f32 %v2728, %v2884
    %v2886 = vsub.f32 1.0, %v2885
    %v2887 = vmul.f32 %v2884, %v2886
    %v2888 = vadd.f32 %v2884, %v2887
    %vm2889 = vweird.f32 %v2728
    %vm2890 = vweird.f32 %v2884
    %vm2891 = vmor %vm2889, %vm2890
    %v2892 = vsel %vm2891, %v2884, %v2888
    %v2893 = vand.u32 2147483647, %v2728
    %vm2894 = vcmp.eq.f32.partialorder %v2893, 8.507059e+37
    %v2895 = vand.u32 %v2728, 2147483648
    %v2896 = vor.u32 1.1754944e-38, %v2895
    %v2897 = vsel %vm2894, %v2896, %v2892
    %v2898 = vmul.f32 1.0, %v2897
    %v2899 = vrcp.pop %v2729
    %v2900 = vmul.f32 %v2729, %v2899
    %v2901 = vsub.f32 1.0, %v2900
    %v2902 = vmul.f32 %v2899, %v2901
    %v2903 = vadd.f32 %v2899, %v2902
    %vm2904 = vweird.f32 %v2729
    %vm2905 = vweird.f32 %v2899
    %vm2906 = vmor %vm2904, %vm2905
    %v2907 = vsel %vm2906, %v2899, %v2903
    %v2908 = vand.u32 2147483647, %v2729
    %vm2909 = vcmp.eq.f32.partialorder %v2908, 8.507059e+37
    %v2910 = vand.u32 %v2729, 2147483648
    %v2911 = vor.u32 1.1754944e-38, %v2910
    %v2912 = vsel %vm2909, %v2911, %v2907
    %v2913 = vmul.f32 1.0, %v2912
    %v2914 = vrcp.pop %v2730
    %v2915 = vmul.f32 %v2730, %v2914
    %v2916 = vsub.f32 1.0, %v2915
    %v2917 = vmul.f32 %v2914, %v2916
    %v2918 = vadd.f32 %v2914, %v2917
    %vm2919 = vweird.f32 %v2730
    %vm2920 = vweird.f32 %v2914
    %vm2921 = vmor %vm2919, %vm2920
    %v2922 = vsel %vm2921, %v2914, %v2918
    %v2923 = vand.u32 2147483647, %v2730
    %vm2924 = vcmp.eq.f32.partialorder %v2923, 8.507059e+37
    %v2925 = vand.u32 %v2730, 2147483648
    %v2926 = vor.u32 1.1754944e-38, %v2925
    %v2927 = vsel %vm2924, %v2926, %v2922
    %v2928 = vmul.f32 1.0, %v2927
    %v2929 = vrcp.pop %v2731
    %v2930 = vmul.f32 %v2731, %v2929
    %v2931 = vsub.f32 1.0, %v2930
    %v2932 = vmul.f32 %v2929, %v2931
    %v2933 = vadd.f32 %v2929, %v2932
    %vm2934 = vweird.f32 %v2731
    %vm2935 = vweird.f32 %v2929
    %vm2936 = vmor %vm2934, %vm2935
    %v2937 = vsel %vm2936, %v2929, %v2933
    %v2938 = vand.u32 2147483647, %v2731
    %vm2939 = vcmp.eq.f32.partialorder %v2938, 8.507059e+37
    %v2940 = vand.u32 %v2731, 2147483648
    %v2941 = vor.u32 1.1754944e-38, %v2940
    %v2942 = vsel %vm2939, %v2941, %v2937
    %v2943 = vmul.f32 1.0, %v2942
    %v2944 = vrcp.pop %v2732
    %v2945 = vmul.f32 %v2732, %v2944
    %v2946 = vsub.f32 1.0, %v2945
    %v2947 = vmul.f32 %v2944, %v2946
    %v2948 = vadd.f32 %v2944, %v2947
    %vm2949 = vweird.f32 %v2732
    %vm2950 = vweird.f32 %v2944
    %vm2951 = vmor %vm2949, %vm2950
    %v2952 = vsel %vm2951, %v2944, %v2948
    %v2953 = vand.u32 2147483647, %v2732
    %vm2954 = vcmp.eq.f32.partialorder %v2953, 8.507059e+37
    %v2955 = vand.u32 %v2732, 2147483648
    %v2956 = vor.u32 1.1754944e-38, %v2955
    %v2957 = vsel %vm2954, %v2956, %v2952
    %v2958 = vmul.f32 1.0, %v2957
    %v2959 = vrcp.pop %v2733
    %v2960 = vmul.f32 %v2733, %v2959
    %v2961 = vsub.f32 1.0, %v2960
    %v2962 = vmul.f32 %v2959, %v2961
    %v2963 = vadd.f32 %v2959, %v2962
    %vm2964 = vweird.f32 %v2733
    %vm2965 = vweird.f32 %v2959
    %vm2966 = vmor %vm2964, %vm2965
    %v2967 = vsel %vm2966, %v2959, %v2963
    %v2968 = vand.u32 2147483647, %v2733
    %vm2969 = vcmp.eq.f32.partialorder %v2968, 8.507059e+37
    %v2970 = vand.u32 %v2733, 2147483648
    %v2971 = vor.u32 1.1754944e-38, %v2970
    %v2972 = vsel %vm2969, %v2971, %v2967
    %v2973 = vmul.f32 1.0, %v2972
    %2990 = vrot.lane.b32.xlu0 %v2436, 32
    %v2991 = vpop.permute.xlu0 %2990
    %2992 = vrot.lane.b32.xlu0 %v2437, 32
    %v2993 = vpop.permute.xlu0 %2992
    %2994 = vrot.lane.b32.xlu0 %v2438, 32
    %v2995 = vpop.permute.xlu0 %2994
    %2996 = vrot.lane.b32.xlu0 %v2439, 32
    %v2997 = vpop.permute.xlu0 %2996
    %2998 = vrot.lane.b32.xlu0 %v2440, 32
    %v2999 = vpop.permute.xlu0 %2998
    %3000 = vrot.lane.b32.xlu0 %v2441, 32
    %v3001 = vpop.permute.xlu0 %3000
    %3002 = vrot.lane.b32.xlu0 %v2442, 32
    %v3003 = vpop.permute.xlu0 %3002
    %3004 = vrot.lane.b32.xlu0 %v2443, 32
    %v3005 = vpop.permute.xlu0 %3004
    %3006 = vrot.lane.b32.xlu0 %v2444, 32
    %v3007 = vpop.permute.xlu0 %3006
    %3008 = vrot.lane.b32.xlu0 %v2445, 32
    %v3009 = vpop.permute.xlu0 %3008
    %3010 = vrot.lane.b32.xlu0 %v2446, 32
    %v3011 = vpop.permute.xlu0 %3010
    %3012 = vrot.lane.b32.xlu0 %v2447, 32
    %v3013 = vpop.permute.xlu0 %3012
    %3014 = vrot.lane.b32.xlu0 %v2448, 32
    %v3015 = vpop.permute.xlu0 %3014
    %3016 = vrot.lane.b32.xlu0 %v2449, 32
    %v3017 = vpop.permute.xlu0 %3016
    %3018 = vrot.lane.b32.xlu0 %v2450, 32
    %v3019 = vpop.permute.xlu0 %3018
    %3020 = vrot.lane.b32.xlu0 %v2451, 32
    %v3021 = vpop.permute.xlu0 %3020
    %v3038 = vmul.f32 %v2748, %v2991
    %v3039 = vmul.f32 %v2763, %v2993
    %v3040 = vmul.f32 %v2778, %v2995
    %v3041 = vmul.f32 %v2793, %v2997
    %v3042 = vmul.f32 %v2808, %v2999
    %v3043 = vmul.f32 %v2823, %v3001
    %v3044 = vmul.f32 %v2838, %v3003
    %v3045 = vmul.f32 %v2853, %v3005
    %v3046 = vmul.f32 %v2868, %v3007
    %v3047 = vmul.f32 %v2883, %v3009
    %v3048 = vmul.f32 %v2898, %v3011
    %v3049 = vmul.f32 %v2913, %v3013
    %v3050 = vmul.f32 %v2928, %v3015
    %v3051 = vmul.f32 %v2943, %v3017
    %v3052 = vmul.f32 %v2958, %v3019
    %v3053 = vmul.f32 %v2973, %v3021
    %v3054 = vld [vmem:[%s17] sm:$0xf]
    %v3055 = vld [vmem:[%s17 + $0x4] sm:$0xf]
    %v3056 = vld [vmem:[%s17 + $0x8] sm:$0xf]
    %v3057 = vld [vmem:[%s17 + $0xc] sm:$0xf]
    %v3058 = vpack.c.bf16 %v3039, %v3038
    %v3059 = vpack.c.bf16 %v3041, %v3040
    %v3060 = vpack.c.bf16 %v3043, %v3042
    %v3061 = vpack.c.bf16 %v3045, %v3044
    %v3062 = vpack.c.bf16 %v3047, %v3046
    %v3063 = vpack.c.bf16 %v3049, %v3048
    %v3064 = vpack.c.bf16 %v3051, %v3050
    %v3065 = vpack.c.bf16 %v3053, %v3052
    %3074 = vrot.lane.b32.xlu0 %v3058, 96
    %v3075 = vpop.permute.xlu0 %3074
    %3076 = vrot.lane.b32.xlu0 %v3059, 96
    %v3077 = vpop.permute.xlu0 %3076
    %3078 = vrot.lane.b32.xlu0 %v3060, 96
    %v3079 = vpop.permute.xlu0 %3078
    %3080 = vrot.lane.b32.xlu0 %v3061, 96
    %v3081 = vpop.permute.xlu0 %3080
    %3082 = vrot.lane.b32.xlu0 %v3062, 96
    %v3083 = vpop.permute.xlu0 %3082
    %3084 = vrot.lane.b32.xlu0 %v3063, 96
    %v3085 = vpop.permute.xlu0 %3084
    %3086 = vrot.lane.b32.xlu0 %v3064, 96
    %v3087 = vpop.permute.xlu0 %3086
    %3088 = vrot.lane.b32.xlu0 %v3065, 96
    %v3089 = vpop.permute.xlu0 %3088
    %v3094 = vunpack.c.l.b16 %v3054
    %v3095 = vunpack.c.l.b16 %v3055
    %v3096 = vunpack.c.l.b16 %v3056
    %v3097 = vunpack.c.l.b16 %v3057
    %v3098 = vpack.c.b16 %v3095, %v3094
    %v3099 = vpack.c.b16 %v3097, %v3096
    %v3103 = vsel %vm91, %v3075, 0
    %v3106 = vsel %vm91, %v3077, 0
    %v3109 = vsel %vm91, %v3079, 0
    %v3112 = vsel %vm91, %v3081, 0
    %v3115 = vsel %vm91, %v3083, 0
    %v3118 = vsel %vm91, %v3085, 0
    %v3121 = vsel %vm91, %v3087, 0
    %v3124 = vsel %vm91, %v3089, 0
    %3126 = vmatpush.bf16.msra.mxu0 0
    %3127 = vmatpush.bf16.msra.mxu0 0
    %3128 = vmatpush.bf16.msra.mxu0 0
    %3129 = vmatpush.bf16.msra.mxu0 0
    %3130 = vmatpush.bf16.msra.mxu0 0
    %3131 = vmatpush.bf16.msra.mxu0 0
    %3132 = vmatpush.bf16.msra.mxu0 %v3099
    %3133 = vmatpush.bf16.msra.mxu0 %v3098
    %3134 = vmatmul.bf16.gmra.mxu0 %v3103
    %v3135 = vpop.f32.mrf.mxu0
    %v3136 = vadd.f32 0.0, %v3135
    %v3137 = vpop.f32.mrf.mxu0
    %v3138 = vadd.f32 0.0, %v3137
    %3139 = vmatmul.bf16.gmra.mxu0 %v3106
    %v3140 = vpop.f32.mrf.mxu0
    %v3141 = vadd.f32 0.0, %v3140
    %v3142 = vpop.f32.mrf.mxu0
    %v3143 = vadd.f32 0.0, %v3142
    %3144 = vmatmul.bf16.gmra.mxu0 %v3109
    %v3145 = vpop.f32.mrf.mxu0
    %v3146 = vadd.f32 0.0, %v3145
    %v3147 = vpop.f32.mrf.mxu0
    %v3148 = vadd.f32 0.0, %v3147
    %3149 = vmatmul.bf16.gmra.mxu0 %v3112
    %v3150 = vpop.f32.mrf.mxu0
    %v3151 = vadd.f32 0.0, %v3150
    %v3152 = vpop.f32.mrf.mxu0
    %v3153 = vadd.f32 0.0, %v3152
    %3154 = vmatmul.bf16.gmra.mxu0 %v3115
    %v3155 = vpop.f32.mrf.mxu0
    %v3156 = vadd.f32 0.0, %v3155
    %v3157 = vpop.f32.mrf.mxu0
    %v3158 = vadd.f32 0.0, %v3157
    %3159 = vmatmul.bf16.gmra.mxu0 %v3118
    %v3160 = vpop.f32.mrf.mxu0
    %v3161 = vadd.f32 0.0, %v3160
    %v3162 = vpop.f32.mrf.mxu0
    %v3163 = vadd.f32 0.0, %v3162
    %3164 = vmatmul.bf16.gmra.mxu0 %v3121
    %v3165 = vpop.f32.mrf.mxu0
    %v3166 = vadd.f32 0.0, %v3165
    %v3167 = vpop.f32.mrf.mxu0
    %v3168 = vadd.f32 0.0, %v3167
    %3169 = vmatmul.bf16.gmra.mxu0 %v3124
    %v3170 = vpop.f32.mrf.mxu0
    %v3171 = vadd.f32 0.0, %v3170
    %v3172 = vpop.f32.mrf.mxu0
    %v3173 = vadd.f32 0.0, %v3172
    %3174 = vdwg.mxu0
    %3191 = vrot.lane.b32.xlu0 %v3136, 64
    %v3192 = vpop.permute.xlu0 %3191
    %3193 = vrot.lane.b32.xlu0 %v3138, 64
    %v3194 = vpop.permute.xlu0 %3193
    %3195 = vrot.lane.b32.xlu0 %v3141, 64
    %v3196 = vpop.permute.xlu0 %3195
    %3197 = vrot.lane.b32.xlu0 %v3143, 64
    %v3198 = vpop.permute.xlu0 %3197
    %3199 = vrot.lane.b32.xlu0 %v3146, 64
    %v3200 = vpop.permute.xlu0 %3199
    %3201 = vrot.lane.b32.xlu0 %v3148, 64
    %v3202 = vpop.permute.xlu0 %3201
    %3203 = vrot.lane.b32.xlu0 %v3151, 64
    %v3204 = vpop.permute.xlu0 %3203
    %3205 = vrot.lane.b32.xlu0 %v3153, 64
    %v3206 = vpop.permute.xlu0 %3205
    %3207 = vrot.lane.b32.xlu0 %v3156, 64
    %v3208 = vpop.permute.xlu0 %3207
    %3209 = vrot.lane.b32.xlu0 %v3158, 64
    %v3210 = vpop.permute.xlu0 %3209
    %3211 = vrot.lane.b32.xlu0 %v3161, 64
    %v3212 = vpop.permute.xlu0 %3211
    %3213 = vrot.lane.b32.xlu0 %v3163, 64
    %v3214 = vpop.permute.xlu0 %3213
    %3215 = vrot.lane.b32.xlu0 %v3166, 64
    %v3216 = vpop.permute.xlu0 %3215
    %3217 = vrot.lane.b32.xlu0 %v3168, 64
    %v3218 = vpop.permute.xlu0 %3217
    %3219 = vrot.lane.b32.xlu0 %v3171, 64
    %v3220 = vpop.permute.xlu0 %3219
    %3221 = vrot.lane.b32.xlu0 %v3173, 64
    %v3222 = vpop.permute.xlu0 %3221
    %v3239 = vadd.f32 %v2514, %v3192
    %v3240 = vadd.f32 %v2516, %v3194
    %v3241 = vadd.f32 %v2519, %v3196
    %v3242 = vadd.f32 %v2521, %v3198
    %v3243 = vadd.f32 %v2524, %v3200
    %v3244 = vadd.f32 %v2526, %v3202
    %v3245 = vadd.f32 %v2529, %v3204
    %v3246 = vadd.f32 %v2531, %v3206
    %v3247 = vadd.f32 %v2534, %v3208
    %v3248 = vadd.f32 %v2536, %v3210
    %v3249 = vadd.f32 %v2539, %v3212
    %v3250 = vadd.f32 %v2541, %v3214
    %v3251 = vadd.f32 %v2544, %v3216
    %v3252 = vadd.f32 %v2546, %v3218
    %v3253 = vadd.f32 %v2549, %v3220
    %v3254 = vadd.f32 %v2551, %v3222
    %v3255 = vld [vmem:[%s18] sm:$0x1]
    %v3257 = vperm.slane %v3255, 0
    %3258 = vrot.lane.b32.xlu0 %v3257, 64
    %v3259 = vpop.permute.xlu0 %3258
    %v3261 = vadd.f32 %v3239, %v3259
    %v3262 = vadd.f32 %v3240, %v3259
    %v3263 = vadd.f32 %v3241, %v3259
    %v3264 = vadd.f32 %v3242, %v3259
    %v3265 = vadd.f32 %v3243, %v3259
    %v3266 = vadd.f32 %v3244, %v3259
    %v3267 = vadd.f32 %v3245, %v3259
    %v3268 = vadd.f32 %v3246, %v3259
    %v3269 = vadd.f32 %v3247, %v3259
    %v3270 = vadd.f32 %v3248, %v3259
    %v3271 = vadd.f32 %v3249, %v3259
    %v3272 = vadd.f32 %v3250, %v3259
    %v3273 = vadd.f32 %v3251, %v3259
    %v3274 = vadd.f32 %v3252, %v3259
    %v3275 = vadd.f32 %v3253, %v3259
    %v3276 = vadd.f32 %v3254, %v3259
    %v3277 = vtanh.pop %v3261
    %v3278 = vtanh.pop %v3262
    %v3279 = vtanh.pop %v3263
    %v3280 = vtanh.pop %v3264
    %v3281 = vtanh.pop %v3265
    %v3282 = vtanh.pop %v3266
    %v3283 = vtanh.pop %v3267
    %v3284 = vtanh.pop %v3268
    %v3285 = vtanh.pop %v3269
    %v3286 = vtanh.pop %v3270
    %v3287 = vtanh.pop %v3271
    %v3288 = vtanh.pop %v3272
    %v3289 = vtanh.pop %v3273
    %v3290 = vtanh.pop %v3274
    %v3291 = vtanh.pop %v3275
    %v3292 = vtanh.pop %v3276
    %v3293 = vsub.f32 1.0, %v2748
    %v3294 = vsub.f32 1.0, %v2763
    %v3295 = vsub.f32 1.0, %v2778
    %v3296 = vsub.f32 1.0, %v2793
    %v3297 = vsub.f32 1.0, %v2808
    %v3298 = vsub.f32 1.0, %v2823
    %v3299 = vsub.f32 1.0, %v2838
    %v3300 = vsub.f32 1.0, %v2853
    %v3301 = vsub.f32 1.0, %v2868
    %v3302 = vsub.f32 1.0, %v2883
    %v3303 = vsub.f32 1.0, %v2898
    %v3304 = vsub.f32 1.0, %v2913
    %v3305 = vsub.f32 1.0, %v2928
    %v3306 = vsub.f32 1.0, %v2943
    %v3307 = vsub.f32 1.0, %v2958
    %v3308 = vsub.f32 1.0, %v2973
    %v3309 = vmul.f32 %v3293, %v2436
    %v3310 = vmul.f32 %v3294, %v2437
    %v3311 = vmul.f32 %v3295, %v2438
    %v3312 = vmul.f32 %v3296, %v2439
    %v3313 = vmul.f32 %v3297, %v2440
    %v3314 = vmul.f32 %v3298, %v2441
    %v3315 = vmul.f32 %v3299, %v2442
    %v3316 = vmul.f32 %v3300, %v2443
    %v3317 = vmul.f32 %v3301, %v2444
    %v3318 = vmul.f32 %v3302, %v2445
    %v3319 = vmul.f32 %v3303, %v2446
    %v3320 = vmul.f32 %v3304, %v2447
    %v3321 = vmul.f32 %v3305, %v2448
    %v3322 = vmul.f32 %v3306, %v2449
    %v3323 = vmul.f32 %v3307, %v2450
    %v3324 = vmul.f32 %v3308, %v2451
    %3341 = vrot.lane.b32.xlu0 %v3277, 64
    %v3342 = vpop.permute.xlu0 %3341
    %3343 = vrot.lane.b32.xlu0 %v3278, 64
    %v3344 = vpop.permute.xlu0 %3343
    %3345 = vrot.lane.b32.xlu0 %v3279, 64
    %v3346 = vpop.permute.xlu0 %3345
    %3347 = vrot.lane.b32.xlu0 %v3280, 64
    %v3348 = vpop.permute.xlu0 %3347
    %3349 = vrot.lane.b32.xlu0 %v3281, 64
    %v3350 = vpop.permute.xlu0 %3349
    %3351 = vrot.lane.b32.xlu0 %v3282, 64
    %v3352 = vpop.permute.xlu0 %3351
    %3353 = vrot.lane.b32.xlu0 %v3283, 64
    %v3354 = vpop.permute.xlu0 %3353
    %3355 = vrot.lane.b32.xlu0 %v3284, 64
    %v3356 = vpop.permute.xlu0 %3355
    %3357 = vrot.lane.b32.xlu0 %v3285, 64
    %v3358 = vpop.permute.xlu0 %3357
    %3359 = vrot.lane.b32.xlu0 %v3286, 64
    %v3360 = vpop.permute.xlu0 %3359
    %3361 = vrot.lane.b32.xlu0 %v3287, 64
    %v3362 = vpop.permute.xlu0 %3361
    %3363 = vrot.lane.b32.xlu0 %v3288, 64
    %v3364 = vpop.permute.xlu0 %3363
    %3365 = vrot.lane.b32.xlu0 %v3289, 64
    %v3366 = vpop.permute.xlu0 %3365
    %3367 = vrot.lane.b32.xlu0 %v3290, 64
    %v3368 = vpop.permute.xlu0 %3367
    %3369 = vrot.lane.b32.xlu0 %v3291, 64
    %v3370 = vpop.permute.xlu0 %3369
    %3371 = vrot.lane.b32.xlu0 %v3292, 64
    %v3372 = vpop.permute.xlu0 %3371
    %v3389 = vmul.f32 %v2748, %v3342
    %v3390 = vmul.f32 %v2763, %v3344
    %v3391 = vmul.f32 %v2778, %v3346
    %v3392 = vmul.f32 %v2793, %v3348
    %v3393 = vmul.f32 %v2808, %v3350
    %v3394 = vmul.f32 %v2823, %v3352
    %v3395 = vmul.f32 %v2838, %v3354
    %v3396 = vmul.f32 %v2853, %v3356
    %v3397 = vmul.f32 %v2868, %v3358
    %v3398 = vmul.f32 %v2883, %v3360
    %v3399 = vmul.f32 %v2898, %v3362
    %v3400 = vmul.f32 %v2913, %v3364
    %v3401 = vmul.f32 %v2928, %v3366
    %v3402 = vmul.f32 %v2943, %v3368
    %v3403 = vmul.f32 %v2958, %v3370
    %v3404 = vmul.f32 %v2973, %v3372
    %v3405 = vadd.f32 %v3309, %v3389
    %v3406 = vadd.f32 %v3310, %v3390
    %v3407 = vadd.f32 %v3311, %v3391
    %v3408 = vadd.f32 %v3312, %v3392
    %v3409 = vadd.f32 %v3313, %v3393
    %v3410 = vadd.f32 %v3314, %v3394
    %v3411 = vadd.f32 %v3315, %v3395
    %v3412 = vadd.f32 %v3316, %v3396
    %v3413 = vadd.f32 %v3317, %v3397
    %v3414 = vadd.f32 %v3318, %v3398
    %v3415 = vadd.f32 %v3319, %v3399
    %v3416 = vadd.f32 %v3320, %v3400
    %v3417 = vadd.f32 %v3321, %v3401
    %v3418 = vadd.f32 %v3322, %v3402
    %v3419 = vadd.f32 %v3323, %v3403
    %v3420 = vadd.f32 %v3324, %v3404
    %3421 = vst.msk [vmem:[#allocation2] sm:$0xff] %vm91, %v3405
    %3422 = vst.msk [vmem:[#allocation2 + $0x8] sm:$0xff] %vm91, %v3406
    %3423 = vst.msk [vmem:[#allocation2 + $0x10] sm:$0xff] %vm91, %v3407
    %3424 = vst.msk [vmem:[#allocation2 + $0x18] sm:$0xff] %vm91, %v3408
    %3425 = vst.msk [vmem:[#allocation2 + $0x20] sm:$0xff] %vm91, %v3409
    %3426 = vst.msk [vmem:[#allocation2 + $0x28] sm:$0xff] %vm91, %v3410
    %3427 = vst.msk [vmem:[#allocation2 + $0x30] sm:$0xff] %vm91, %v3411
    %3428 = vst.msk [vmem:[#allocation2 + $0x38] sm:$0xff] %vm91, %v3412
    %3429 = vst.msk [vmem:[#allocation2 + $0x40] sm:$0xff] %vm91, %v3413
    %3430 = vst.msk [vmem:[#allocation2 + $0x48] sm:$0xff] %vm91, %v3414
    %3431 = vst.msk [vmem:[#allocation2 + $0x50] sm:$0xff] %vm91, %v3415
    %3432 = vst.msk [vmem:[#allocation2 + $0x58] sm:$0xff] %vm91, %v3416
    %3433 = vst.msk [vmem:[#allocation2 + $0x60] sm:$0xff] %vm91, %v3417
    %3434 = vst.msk [vmem:[#allocation2 + $0x68] sm:$0xff] %vm91, %v3418
    %3435 = vst.msk [vmem:[#allocation2 + $0x70] sm:$0xff] %vm91, %v3419
    %3436 = vst.msk [vmem:[#allocation2 + $0x78] sm:$0xff] %vm91, %v3420
    %v3437 = vld [vmem:[#allocation7] sm:$0xff]
    %v3438 = vld [vmem:[#allocation7 + $0x8] sm:$0xff]
    %v3439 = vld [vmem:[#allocation7 + $0x10] sm:$0xff]
    %v3440 = vld [vmem:[#allocation7 + $0x18] sm:$0xff]
    %v3441 = vld [vmem:[#allocation7 + $0x20] sm:$0xff]
    %v3442 = vld [vmem:[#allocation7 + $0x28] sm:$0xff]
    %v3443 = vld [vmem:[#allocation7 + $0x30] sm:$0xff]
    %v3444 = vld [vmem:[#allocation7 + $0x38] sm:$0xff]
    %v3445 = vld [vmem:[#allocation7 + $0x40] sm:$0xff]
    %v3446 = vld [vmem:[#allocation7 + $0x48] sm:$0xff]
    %v3447 = vld [vmem:[#allocation7 + $0x50] sm:$0xff]
    %v3448 = vld [vmem:[#allocation7 + $0x58] sm:$0xff]
    %v3449 = vld [vmem:[#allocation7 + $0x60] sm:$0xff]
    %v3450 = vld [vmem:[#allocation7 + $0x68] sm:$0xff]
    %v3451 = vld [vmem:[#allocation7 + $0x70] sm:$0xff]
    %v3452 = vld [vmem:[#allocation7 + $0x78] sm:$0xff]
    %s3453 = scalar_lea.vmem [#allocation7], %s2094
    %v3454 = vld [vmem:[%s3453] sm:$0xff]
    %v3455 = vld [vmem:[%s3453 + $0x8] sm:$0xff]
    %v3456 = vld [vmem:[%s3453 + $0x10] sm:$0xff]
    %v3457 = vld [vmem:[%s3453 + $0x18] sm:$0xff]
    %v3458 = vld [vmem:[%s3453 + $0x20] sm:$0xff]
    %v3459 = vld [vmem:[%s3453 + $0x28] sm:$0xff]
    %v3460 = vld [vmem:[%s3453 + $0x30] sm:$0xff]
    %v3461 = vld [vmem:[%s3453 + $0x38] sm:$0xff]
    %v3462 = vld [vmem:[%s3453 + $0x40] sm:$0xff]
    %v3463 = vld [vmem:[%s3453 + $0x48] sm:$0xff]
    %v3464 = vld [vmem:[%s3453 + $0x50] sm:$0xff]
    %v3465 = vld [vmem:[%s3453 + $0x58] sm:$0xff]
    %v3466 = vld [vmem:[%s3453 + $0x60] sm:$0xff]
    %v3467 = vld [vmem:[%s3453 + $0x68] sm:$0xff]
    %v3468 = vld [vmem:[%s3453 + $0x70] sm:$0xff]
    %v3469 = vld [vmem:[%s3453 + $0x78] sm:$0xff]
    %s3470 = scalar_lea.vmem %s8, 4
    %v3471 = vld [vmem:[%s3470] sm:$0xf]
    %v3472 = vpack.c.bf16 %v3438, %v3437
    %v3473 = vpack.c.bf16 %v3440, %v3439
    %v3474 = vpack.c.bf16 %v3442, %v3441
    %v3475 = vpack.c.bf16 %v3444, %v3443
    %v3476 = vpack.c.bf16 %v3446, %v3445
    %v3477 = vpack.c.bf16 %v3448, %v3447
    %v3478 = vpack.c.bf16 %v3450, %v3449
    %v3479 = vpack.c.bf16 %v3452, %v3451
    %s3480 = scalar_lea.vmem %s9, 4
    %v3481 = vld [vmem:[%s3480] sm:$0xf]
    %v3482 = vpack.c.bf16 %v3455, %v3454
    %v3483 = vpack.c.bf16 %v3457, %v3456
    %v3484 = vpack.c.bf16 %v3459, %v3458
    %v3485 = vpack.c.bf16 %v3461, %v3460
    %v3486 = vpack.c.bf16 %v3463, %v3462
    %v3487 = vpack.c.bf16 %v3465, %v3464
    %v3488 = vpack.c.bf16 %v3467, %v3466
    %v3489 = vpack.c.bf16 %v3469, %v3468
    %v3491 = vsel %vm389, %v3482, 0
    %v3494 = vsel %vm389, %v3483, 0
    %v3497 = vsel %vm389, %v3484, 0
    %v3500 = vsel %vm389, %v3485, 0
    %v3503 = vsel %vm389, %v3486, 0
    %v3506 = vsel %vm389, %v3487, 0
    %v3509 = vsel %vm389, %v3488, 0
    %v3512 = vsel %vm389, %v3489, 0
    %v3515 = vsel %vm2154, %v3481, 0
    %3517 = vmatpush.bf16.msra.mxu0 0
    %3518 = vmatpush.bf16.msra.mxu0 0
    %3519 = vmatpush.bf16.msra.mxu0 0
    %3520 = vmatpush.bf16.msra.mxu0 0
    %3521 = vmatpush.bf16.msra.mxu0 0
    %3522 = vmatpush.bf16.msra.mxu0 0
    %3523 = vmatpush.bf16.msra.mxu0 0
    %3524 = vmatpush.bf16.msra.mxu0 %v3515
    %3525 = vmatmul.bf16.gmra.mxu0 %v3491
    %v3526 = vpop.f32.mrf.mxu0
    %v3527 = vadd.f32 0.0, %v3526
    %v3528 = vpop.f32.mrf.mxu0
    %v3529 = vadd.f32 0.0, %v3528
    %3530 = vmatmul.bf16.gmra.mxu0 %v3494
    %v3531 = vpop.f32.mrf.mxu0
    %v3532 = vadd.f32 0.0, %v3531
    %v3533 = vpop.f32.mrf.mxu0
    %v3534 = vadd.f32 0.0, %v3533
    %3535 = vmatmul.bf16.gmra.mxu0 %v3497
    %v3536 = vpop.f32.mrf.mxu0
    %v3537 = vadd.f32 0.0, %v3536
    %v3538 = vpop.f32.mrf.mxu0
    %v3539 = vadd.f32 0.0, %v3538
    %3540 = vmatmul.bf16.gmra.mxu0 %v3500
    %v3541 = vpop.f32.mrf.mxu0
    %v3542 = vadd.f32 0.0, %v3541
    %v3543 = vpop.f32.mrf.mxu0
    %v3544 = vadd.f32 0.0, %v3543
    %3545 = vmatmul.bf16.gmra.mxu0 %v3503
    %v3546 = vpop.f32.mrf.mxu0
    %v3547 = vadd.f32 0.0, %v3546
    %v3548 = vpop.f32.mrf.mxu0
    %v3549 = vadd.f32 0.0, %v3548
    %3550 = vmatmul.bf16.gmra.mxu0 %v3506
    %v3551 = vpop.f32.mrf.mxu0
    %v3552 = vadd.f32 0.0, %v3551
    %v3553 = vpop.f32.mrf.mxu0
    %v3554 = vadd.f32 0.0, %v3553
    %3555 = vmatmul.bf16.gmra.mxu0 %v3509
    %v3556 = vpop.f32.mrf.mxu0
    %v3557 = vadd.f32 0.0, %v3556
    %v3558 = vpop.f32.mrf.mxu0
    %v3559 = vadd.f32 0.0, %v3558
    %3560 = vmatmul.bf16.gmra.mxu0 %v3512
    %v3561 = vpop.f32.mrf.mxu0
    %v3562 = vadd.f32 0.0, %v3561
    %v3563 = vpop.f32.mrf.mxu0
    %v3564 = vadd.f32 0.0, %v3563
    %3565 = vdwg.mxu0
    %v3567 = vsel %vm389, %v3472, 0
    %v3570 = vsel %vm389, %v3473, 0
    %v3573 = vsel %vm389, %v3474, 0
    %v3576 = vsel %vm389, %v3475, 0
    %v3579 = vsel %vm389, %v3476, 0
    %v3582 = vsel %vm389, %v3477, 0
    %v3585 = vsel %vm389, %v3478, 0
    %v3588 = vsel %vm389, %v3479, 0
    %v3591 = vsel %vm2154, %v3471, 0
    %3593 = vmatpush.bf16.msra.mxu0 0
    %3594 = vmatpush.bf16.msra.mxu0 0
    %3595 = vmatpush.bf16.msra.mxu0 0
    %3596 = vmatpush.bf16.msra.mxu0 0
    %3597 = vmatpush.bf16.msra.mxu0 0
    %3598 = vmatpush.bf16.msra.mxu0 0
    %3599 = vmatpush.bf16.msra.mxu0 0
    %3600 = vmatpush.bf16.msra.mxu0 %v3591
    %3601 = vmatmul.bf16.gmra.mxu0 %v3567
    %v3602 = vpop.f32.mrf.mxu0
    %v3603 = vadd.f32 %v3527, %v3602
    %v3604 = vpop.f32.mrf.mxu0
    %v3605 = vadd.f32 %v3529, %v3604
    %3606 = vmatmul.bf16.gmra.mxu0 %v3570
    %v3607 = vpop.f32.mrf.mxu0
    %v3608 = vadd.f32 %v3532, %v3607
    %v3609 = vpop.f32.mrf.mxu0
    %v3610 = vadd.f32 %v3534, %v3609
    %3611 = vmatmul.bf16.gmra.mxu0 %v3573
    %v3612 = vpop.f32.mrf.mxu0
    %v3613 = vadd.f32 %v3537, %v3612
    %v3614 = vpop.f32.mrf.mxu0
    %v3615 = vadd.f32 %v3539, %v3614
    %3616 = vmatmul.bf16.gmra.mxu0 %v3576
    %v3617 = vpop.f32.mrf.mxu0
    %v3618 = vadd.f32 %v3542, %v3617
    %v3619 = vpop.f32.mrf.mxu0
    %v3620 = vadd.f32 %v3544, %v3619
    %3621 = vmatmul.bf16.gmra.mxu0 %v3579
    %v3622 = vpop.f32.mrf.mxu0
    %v3623 = vadd.f32 %v3547, %v3622
    %v3624 = vpop.f32.mrf.mxu0
    %v3625 = vadd.f32 %v3549, %v3624
    %3626 = vmatmul.bf16.gmra.mxu0 %v3582
    %v3627 = vpop.f32.mrf.mxu0
    %v3628 = vadd.f32 %v3552, %v3627
    %v3629 = vpop.f32.mrf.mxu0
    %v3630 = vadd.f32 %v3554, %v3629
    %3631 = vmatmul.bf16.gmra.mxu0 %v3585
    %v3632 = vpop.f32.mrf.mxu0
    %v3633 = vadd.f32 %v3557, %v3632
    %v3634 = vpop.f32.mrf.mxu0
    %v3635 = vadd.f32 %v3559, %v3634
    %3636 = vmatmul.bf16.gmra.mxu0 %v3588
    %v3637 = vpop.f32.mrf.mxu0
    %v3638 = vadd.f32 %v3562, %v3637
    %v3639 = vpop.f32.mrf.mxu0
    %v3640 = vadd.f32 %v3564, %v3639
    %3641 = vdwg.mxu0
    %s3642 = scalar_lea.vmem %s10, 1
    %v3643 = vld [vmem:[%s3642] sm:$0x1]
    %v3645 = vperm.slane %v3643, 0
    %v3647 = vadd.f32 %v3603, %v3645
    %v3648 = vadd.f32 %v3605, %v3645
    %v3649 = vadd.f32 %v3608, %v3645
    %v3650 = vadd.f32 %v3610, %v3645
    %v3651 = vadd.f32 %v3613, %v3645
    %v3652 = vadd.f32 %v3615, %v3645
    %v3653 = vadd.f32 %v3618, %v3645
    %v3654 = vadd.f32 %v3620, %v3645
    %v3655 = vadd.f32 %v3623, %v3645
    %v3656 = vadd.f32 %v3625, %v3645
    %v3657 = vadd.f32 %v3628, %v3645
    %v3658 = vadd.f32 %v3630, %v3645
    %v3659 = vadd.f32 %v3633, %v3645
    %v3660 = vadd.f32 %v3635, %v3645
    %v3661 = vadd.f32 %v3638, %v3645
    %v3662 = vadd.f32 %v3640, %v3645
    %v3663 = vmax.f32 %v3647, 0.0
    %v3664 = vmax.f32 %v3648, 0.0
    %v3665 = vmax.f32 %v3649, 0.0
    %v3666 = vmax.f32 %v3650, 0.0
    %v3667 = vmax.f32 %v3651, 0.0
    %v3668 = vmax.f32 %v3652, 0.0
    %v3669 = vmax.f32 %v3653, 0.0
    %v3670 = vmax.f32 %v3654, 0.0
    %v3671 = vmax.f32 %v3655, 0.0
    %v3672 = vmax.f32 %v3656, 0.0
    %v3673 = vmax.f32 %v3657, 0.0
    %v3674 = vmax.f32 %v3658, 0.0
    %v3675 = vmax.f32 %v3659, 0.0
    %v3676 = vmax.f32 %v3660, 0.0
    %v3677 = vmax.f32 %v3661, 0.0
    %v3678 = vmax.f32 %v3662, 0.0
    %s3679 = scalar_lea.vmem %s11, 12
    %v3680 = vld [vmem:[%s3679] sm:$0xf]
    %v3681 = vld [vmem:[%s3679 + $0x4] sm:$0xf]
    %v3682 = vld [vmem:[%s3679 + $0x8] sm:$0xf]
    %v3683 = vpack.c.bf16 %v3664, %v3663
    %v3684 = vpack.c.bf16 %v3666, %v3665
    %v3685 = vpack.c.bf16 %v3668, %v3667
    %v3686 = vpack.c.bf16 %v3670, %v3669
    %v3687 = vpack.c.bf16 %v3672, %v3671
    %v3688 = vpack.c.bf16 %v3674, %v3673
    %v3689 = vpack.c.bf16 %v3676, %v3675
    %v3690 = vpack.c.bf16 %v3678, %v3677
    %s3691 = scalar_lea.vmem %s12, 1
    %v3692 = vld [vmem:[%s3691] sm:$0x1]
    %v3694 = vperm.slane %v3692, 0
    %v3699 = vunpack.c.l.b16 %v3680
    %v3700 = vunpack.c.l.b16 %v3681
    %v3701 = vunpack.c.l.b16 %v3682
    %v3702 = vpack.c.b16 %v3700, %v3699
    %v3703 = vpack.c.b16 %v3701, %v3701
    %v3706 = vsel %vm2343, %v3683, 0
    %v3709 = vsel %vm2343, %v3684, 0
    %v3712 = vsel %vm2343, %v3685, 0
    %v3715 = vsel %vm2343, %v3686, 0
    %v3718 = vsel %vm2343, %v3687, 0
    %v3721 = vsel %vm2343, %v3688, 0
    %v3724 = vsel %vm2343, %v3689, 0
    %v3727 = vsel %vm2343, %v3690, 0
    %v3730 = vsel %vm2154, %v3703, 0
    %3732 = vmatpush.bf16.msra.mxu0 0
    %3733 = vmatpush.bf16.msra.mxu0 0
    %3734 = vmatpush.bf16.msra.mxu0 0
    %3735 = vmatpush.bf16.msra.mxu0 0
    %3736 = vmatpush.bf16.msra.mxu0 0
    %3737 = vmatpush.bf16.msra.mxu0 0
    %3738 = vmatpush.bf16.msra.mxu0 %v3730
    %3739 = vmatpush.bf16.msra.mxu0 %v3702
    %3740 = vmatmul.bf16.gmra.mxu0 %v3706
    %v3741 = vpop.f32.mrf.mxu0
    %v3742 = vadd.f32 %v3694, %v3741
    %v3743 = vpop.f32.mrf.mxu0
    %v3744 = vadd.f32 %v3694, %v3743
    %3745 = vmatmul.bf16.gmra.mxu0 %v3709
    %v3746 = vpop.f32.mrf.mxu0
    %v3747 = vadd.f32 %v3694, %v3746
    %v3748 = vpop.f32.mrf.mxu0
    %v3749 = vadd.f32 %v3694, %v3748
    %3750 = vmatmul.bf16.gmra.mxu0 %v3712
    %v3751 = vpop.f32.mrf.mxu0
    %v3752 = vadd.f32 %v3694, %v3751
    %v3753 = vpop.f32.mrf.mxu0
    %v3754 = vadd.f32 %v3694, %v3753
    %3755 = vmatmul.bf16.gmra.mxu0 %v3715
    %v3756 = vpop.f32.mrf.mxu0
    %v3757 = vadd.f32 %v3694, %v3756
    %v3758 = vpop.f32.mrf.mxu0
    %v3759 = vadd.f32 %v3694, %v3758
    %3760 = vmatmul.bf16.gmra.mxu0 %v3718
    %v3761 = vpop.f32.mrf.mxu0
    %v3762 = vadd.f32 %v3694, %v3761
    %v3763 = vpop.f32.mrf.mxu0
    %v3764 = vadd.f32 %v3694, %v3763
    %3765 = vmatmul.bf16.gmra.mxu0 %v3721
    %v3766 = vpop.f32.mrf.mxu0
    %v3767 = vadd.f32 %v3694, %v3766
    %v3768 = vpop.f32.mrf.mxu0
    %v3769 = vadd.f32 %v3694, %v3768
    %3770 = vmatmul.bf16.gmra.mxu0 %v3724
    %v3771 = vpop.f32.mrf.mxu0
    %v3772 = vadd.f32 %v3694, %v3771
    %v3773 = vpop.f32.mrf.mxu0
    %v3774 = vadd.f32 %v3694, %v3773
    %3775 = vmatmul.bf16.gmra.mxu0 %v3727
    %v3776 = vpop.f32.mrf.mxu0
    %v3777 = vadd.f32 %v3694, %v3776
    %v3778 = vpop.f32.mrf.mxu0
    %v3779 = vadd.f32 %v3694, %v3778
    %3780 = vdwg.mxu0
    %v3781 = vmax.f32 %v3742, 0.0
    %v3782 = vmax.f32 %v3744, 0.0
    %v3783 = vmax.f32 %v3747, 0.0
    %v3784 = vmax.f32 %v3749, 0.0
    %v3785 = vmax.f32 %v3752, 0.0
    %v3786 = vmax.f32 %v3754, 0.0
    %v3787 = vmax.f32 %v3757, 0.0
    %v3788 = vmax.f32 %v3759, 0.0
    %v3789 = vmax.f32 %v3762, 0.0
    %v3790 = vmax.f32 %v3764, 0.0
    %v3791 = vmax.f32 %v3767, 0.0
    %v3792 = vmax.f32 %v3769, 0.0
    %v3793 = vmax.f32 %v3772, 0.0
    %v3794 = vmax.f32 %v3774, 0.0
    %v3795 = vmax.f32 %v3777, 0.0
    %v3796 = vmax.f32 %v3779, 0.0
    %v3797 = vld [vmem:[#allocation3] sm:$0xff]
    %v3798 = vld [vmem:[#allocation3 + $0x8] sm:$0xff]
    %v3799 = vld [vmem:[#allocation3 + $0x10] sm:$0xff]
    %v3800 = vld [vmem:[#allocation3 + $0x18] sm:$0xff]
    %v3801 = vld [vmem:[#allocation3 + $0x20] sm:$0xff]
    %v3802 = vld [vmem:[#allocation3 + $0x28] sm:$0xff]
    %v3803 = vld [vmem:[#allocation3 + $0x30] sm:$0xff]
    %v3804 = vld [vmem:[#allocation3 + $0x38] sm:$0xff]
    %v3805 = vld [vmem:[#allocation3 + $0x40] sm:$0xff]
    %v3806 = vld [vmem:[#allocation3 + $0x48] sm:$0xff]
    %v3807 = vld [vmem:[#allocation3 + $0x50] sm:$0xff]
    %v3808 = vld [vmem:[#allocation3 + $0x58] sm:$0xff]
    %v3809 = vld [vmem:[#allocation3 + $0x60] sm:$0xff]
    %v3810 = vld [vmem:[#allocation3 + $0x68] sm:$0xff]
    %v3811 = vld [vmem:[#allocation3 + $0x70] sm:$0xff]
    %v3812 = vld [vmem:[#allocation3 + $0x78] sm:$0xff]
    %s3813 = scalar_lea.vmem %s13, 16
    %v3814 = vld [vmem:[%s3813] sm:$0xf]
    %v3815 = vld [vmem:[%s3813 + $0x4] sm:$0xf]
    %v3816 = vld [vmem:[%s3813 + $0x8] sm:$0xf]
    %v3817 = vld [vmem:[%s3813 + $0xc] sm:$0xf]
    %v3818 = vpack.c.bf16 %v3782, %v3781
    %v3819 = vpack.c.bf16 %v3784, %v3783
    %v3820 = vpack.c.bf16 %v3786, %v3785
    %v3821 = vpack.c.bf16 %v3788, %v3787
    %v3822 = vpack.c.bf16 %v3790, %v3789
    %v3823 = vpack.c.bf16 %v3792, %v3791
    %v3824 = vpack.c.bf16 %v3794, %v3793
    %v3825 = vpack.c.bf16 %v3796, %v3795
    %s3826 = scalar_lea.vmem %s14, 1
    %v3827 = vld [vmem:[%s3826] sm:$0x1]
    %v3829 = vperm.slane %v3827, 0
    %v3835 = vunpack.c.l.b16 %v3814
    %v3836 = vunpack.c.l.b16 %v3815
    %v3837 = vunpack.c.l.b16 %v3816
    %v3838 = vunpack.c.l.b16 %v3817
    %v3839 = vpack.c.b16 %v3836, %v3835
    %v3840 = vpack.c.b16 %v3838, %v3837
    %v3844 = vsel %vm91, %v3818, 0
    %v3847 = vsel %vm91, %v3819, 0
    %v3850 = vsel %vm91, %v3820, 0
    %v3853 = vsel %vm91, %v3821, 0
    %v3856 = vsel %vm91, %v3822, 0
    %v3859 = vsel %vm91, %v3823, 0
    %v3862 = vsel %vm91, %v3824, 0
    %v3865 = vsel %vm91, %v3825, 0
    %3867 = vmatpush.bf16.msra.mxu0 0
    %3868 = vmatpush.bf16.msra.mxu0 0
    %3869 = vmatpush.bf16.msra.mxu0 0
    %3870 = vmatpush.bf16.msra.mxu0 0
    %3871 = vmatpush.bf16.msra.mxu0 0
    %3872 = vmatpush.bf16.msra.mxu0 0
    %3873 = vmatpush.bf16.msra.mxu0 %v3840
    %3874 = vmatpush.bf16.msra.mxu0 %v3839
    %3875 = vmatmul.bf16.gmra.mxu0 %v3844
    %v3876 = vpop.f32.mrf.mxu0
    %v3877 = vadd.f32 %v3829, %v3876
    %v3878 = vpop.f32.mrf.mxu0
    %v3879 = vadd.f32 %v3829, %v3878
    %3880 = vmatmul.bf16.gmra.mxu0 %v3847
    %v3881 = vpop.f32.mrf.mxu0
    %v3882 = vadd.f32 %v3829, %v3881
    %v3883 = vpop.f32.mrf.mxu0
    %v3884 = vadd.f32 %v3829, %v3883
    %3885 = vmatmul.bf16.gmra.mxu0 %v3850
    %v3886 = vpop.f32.mrf.mxu0
    %v3887 = vadd.f32 %v3829, %v3886
    %v3888 = vpop.f32.mrf.mxu0
    %v3889 = vadd.f32 %v3829, %v3888
    %3890 = vmatmul.bf16.gmra.mxu0 %v3853
    %v3891 = vpop.f32.mrf.mxu0
    %v3892 = vadd.f32 %v3829, %v3891
    %v3893 = vpop.f32.mrf.mxu0
    %v3894 = vadd.f32 %v3829, %v3893
    %3895 = vmatmul.bf16.gmra.mxu0 %v3856
    %v3896 = vpop.f32.mrf.mxu0
    %v3897 = vadd.f32 %v3829, %v3896
    %v3898 = vpop.f32.mrf.mxu0
    %v3899 = vadd.f32 %v3829, %v3898
    %3900 = vmatmul.bf16.gmra.mxu0 %v3859
    %v3901 = vpop.f32.mrf.mxu0
    %v3902 = vadd.f32 %v3829, %v3901
    %v3903 = vpop.f32.mrf.mxu0
    %v3904 = vadd.f32 %v3829, %v3903
    %3905 = vmatmul.bf16.gmra.mxu0 %v3862
    %v3906 = vpop.f32.mrf.mxu0
    %v3907 = vadd.f32 %v3829, %v3906
    %v3908 = vpop.f32.mrf.mxu0
    %v3909 = vadd.f32 %v3829, %v3908
    %3910 = vmatmul.bf16.gmra.mxu0 %v3865
    %v3911 = vpop.f32.mrf.mxu0
    %v3912 = vadd.f32 %v3829, %v3911
    %v3913 = vpop.f32.mrf.mxu0
    %v3914 = vadd.f32 %v3829, %v3913
    %3915 = vdwg.mxu0
    %s3916 = scalar_lea.vmem %s15, 16
    %v3917 = vld [vmem:[%s3916] sm:$0xf]
    %v3918 = vld [vmem:[%s3916 + $0x4] sm:$0xf]
    %v3919 = vld [vmem:[%s3916 + $0x8] sm:$0xf]
    %v3920 = vld [vmem:[%s3916 + $0xc] sm:$0xf]
    %v3921 = vpack.c.bf16 %v3798, %v3797
    %v3922 = vpack.c.bf16 %v3800, %v3799
    %v3923 = vpack.c.bf16 %v3802, %v3801
    %v3924 = vpack.c.bf16 %v3804, %v3803
    %v3925 = vpack.c.bf16 %v3806, %v3805
    %v3926 = vpack.c.bf16 %v3808, %v3807
    %v3927 = vpack.c.bf16 %v3810, %v3809
    %v3928 = vpack.c.bf16 %v3812, %v3811
    %s3929 = scalar_lea.vmem %s16, 1
    %v3930 = vld [vmem:[%s3929] sm:$0x1]
    %v3932 = vperm.slane %v3930, 0
    %v3938 = vunpack.c.l.b16 %v3917
    %v3939 = vunpack.c.l.b16 %v3918
    %v3940 = vunpack.c.l.b16 %v3919
    %v3941 = vunpack.c.l.b16 %v3920
    %v3942 = vpack.c.b16 %v3939, %v3938
    %v3943 = vpack.c.b16 %v3941, %v3940
    %v3947 = vsel %vm91, %v3921, 0
    %v3950 = vsel %vm91, %v3922, 0
    %v3953 = vsel %vm91, %v3923, 0
    %v3956 = vsel %vm91, %v3924, 0
    %v3959 = vsel %vm91, %v3925, 0
    %v3962 = vsel %vm91, %v3926, 0
    %v3965 = vsel %vm91, %v3927, 0
    %v3968 = vsel %vm91, %v3928, 0
    %3970 = vmatpush.bf16.msra.mxu0 0
    %3971 = vmatpush.bf16.msra.mxu0 0
    %3972 = vmatpush.bf16.msra.mxu0 0
    %3973 = vmatpush.bf16.msra.mxu0 0
    %3974 = vmatpush.bf16.msra.mxu0 0
    %3975 = vmatpush.bf16.msra.mxu0 0
    %3976 = vmatpush.bf16.msra.mxu0 %v3943
    %3977 = vmatpush.bf16.msra.mxu0 %v3942
    %3978 = vmatmul.bf16.gmra.mxu0 %v3947
    %v3979 = vpop.f32.mrf.mxu0
    %v3980 = vadd.f32 %v3932, %v3979
    %v3981 = vpop.f32.mrf.mxu0
    %v3982 = vadd.f32 %v3932, %v3981
    %3983 = vmatmul.bf16.gmra.mxu0 %v3950
    %v3984 = vpop.f32.mrf.mxu0
    %v3985 = vadd.f32 %v3932, %v3984
    %v3986 = vpop.f32.mrf.mxu0
    %v3987 = vadd.f32 %v3932, %v3986
    %3988 = vmatmul.bf16.gmra.mxu0 %v3953
    %v3989 = vpop.f32.mrf.mxu0
    %v3990 = vadd.f32 %v3932, %v3989
    %v3991 = vpop.f32.mrf.mxu0
    %v3992 = vadd.f32 %v3932, %v3991
    %3993 = vmatmul.bf16.gmra.mxu0 %v3956
    %v3994 = vpop.f32.mrf.mxu0
    %v3995 = vadd.f32 %v3932, %v3994
    %v3996 = vpop.f32.mrf.mxu0
    %v3997 = vadd.f32 %v3932, %v3996
    %3998 = vmatmul.bf16.gmra.mxu0 %v3959
    %v3999 = vpop.f32.mrf.mxu0
    %v4000 = vadd.f32 %v3932, %v3999
    %v4001 = vpop.f32.mrf.mxu0
    %v4002 = vadd.f32 %v3932, %v4001
    %4003 = vmatmul.bf16.gmra.mxu0 %v3962
    %v4004 = vpop.f32.mrf.mxu0
    %v4005 = vadd.f32 %v3932, %v4004
    %v4006 = vpop.f32.mrf.mxu0
    %v4007 = vadd.f32 %v3932, %v4006
    %4008 = vmatmul.bf16.gmra.mxu0 %v3965
    %v4009 = vpop.f32.mrf.mxu0
    %v4010 = vadd.f32 %v3932, %v4009
    %v4011 = vpop.f32.mrf.mxu0
    %v4012 = vadd.f32 %v3932, %v4011
    %4013 = vmatmul.bf16.gmra.mxu0 %v3968
    %v4014 = vpop.f32.mrf.mxu0
    %v4015 = vadd.f32 %v3932, %v4014
    %v4016 = vpop.f32.mrf.mxu0
    %v4017 = vadd.f32 %v3932, %v4016
    %4018 = vdwg.mxu0
    %v4019 = vadd.f32 %v3877, %v3980
    %v4020 = vadd.f32 %v3879, %v3982
    %v4021 = vadd.f32 %v3882, %v3985
    %v4022 = vadd.f32 %v3884, %v3987
    %v4023 = vadd.f32 %v3887, %v3990
    %v4024 = vadd.f32 %v3889, %v3992
    %v4025 = vadd.f32 %v3892, %v3995
    %v4026 = vadd.f32 %v3894, %v3997
    %v4027 = vadd.f32 %v3897, %v4000
    %v4028 = vadd.f32 %v3899, %v4002
    %v4029 = vadd.f32 %v3902, %v4005
    %v4030 = vadd.f32 %v3904, %v4007
    %v4031 = vadd.f32 %v3907, %v4010
    %v4032 = vadd.f32 %v3909, %v4012
    %v4033 = vadd.f32 %v3912, %v4015
    %v4034 = vadd.f32 %v3914, %v4017
    %v4035 = vxor.u32 %v4019, 2147483648
    %v4036 = vxor.u32 %v4020, 2147483648
    %v4037 = vxor.u32 %v4021, 2147483648
    %v4038 = vxor.u32 %v4022, 2147483648
    %v4039 = vxor.u32 %v4023, 2147483648
    %v4040 = vxor.u32 %v4024, 2147483648
    %v4041 = vxor.u32 %v4025, 2147483648
    %v4042 = vxor.u32 %v4026, 2147483648
    %v4043 = vxor.u32 %v4027, 2147483648
    %v4044 = vxor.u32 %v4028, 2147483648
    %v4045 = vxor.u32 %v4029, 2147483648
    %v4046 = vxor.u32 %v4030, 2147483648
    %v4047 = vxor.u32 %v4031, 2147483648
    %v4048 = vxor.u32 %v4032, 2147483648
    %v4049 = vxor.u32 %v4033, 2147483648
    %v4050 = vxor.u32 %v4034, 2147483648
    %v4051 = vmul.f32 %v4035, 1.442695
    %v4052 = vpow.pop %v4051
    %v4053 = vmul.f32 %v4036, 1.442695
    %v4054 = vpow.pop %v4053
    %v4055 = vmul.f32 %v4037, 1.442695
    %v4056 = vpow.pop %v4055
    %v4057 = vmul.f32 %v4038, 1.442695
    %v4058 = vpow.pop %v4057
    %v4059 = vmul.f32 %v4039, 1.442695
    %v4060 = vpow.pop %v4059
    %v4061 = vmul.f32 %v4040, 1.442695
    %v4062 = vpow.pop %v4061
    %v4063 = vmul.f32 %v4041, 1.442695
    %v4064 = vpow.pop %v4063
    %v4065 = vmul.f32 %v4042, 1.442695
    %v4066 = vpow.pop %v4065
    %v4067 = vmul.f32 %v4043, 1.442695
    %v4068 = vpow.pop %v4067
    %v4069 = vmul.f32 %v4044, 1.442695
    %v4070 = vpow.pop %v4069
    %v4071 = vmul.f32 %v4045, 1.442695
    %v4072 = vpow.pop %v4071
    %v4073 = vmul.f32 %v4046, 1.442695
    %v4074 = vpow.pop %v4073
    %v4075 = vmul.f32 %v4047, 1.442695
    %v4076 = vpow.pop %v4075
    %v4077 = vmul.f32 %v4048, 1.442695
    %v4078 = vpow.pop %v4077
    %v4079 = vmul.f32 %v4049, 1.442695
    %v4080 = vpow.pop %v4079
    %v4081 = vmul.f32 %v4050, 1.442695
    %v4082 = vpow.pop %v4081
    %v4083 = vadd.f32 %v4052, 1.0
    %v4084 = vadd.f32 %v4054, 1.0
    %v4085 = vadd.f32 %v4056, 1.0
    %v4086 = vadd.f32 %v4058, 1.0
    %v4087 = vadd.f32 %v4060, 1.0
    %v4088 = vadd.f32 %v4062, 1.0
    %v4089 = vadd.f32 %v4064, 1.0
    %v4090 = vadd.f32 %v4066, 1.0
    %v4091 = vadd.f32 %v4068, 1.0
    %v4092 = vadd.f32 %v4070, 1.0
    %v4093 = vadd.f32 %v4072, 1.0
    %v4094 = vadd.f32 %v4074, 1.0
    %v4095 = vadd.f32 %v4076, 1.0
    %v4096 = vadd.f32 %v4078, 1.0
    %v4097 = vadd.f32 %v4080, 1.0
    %v4098 = vadd.f32 %v4082, 1.0
    %v4099 = vrcp.pop %v4083
    %v4100 = vmul.f32 %v4083, %v4099
    %v4101 = vsub.f32 1.0, %v4100
    %v4102 = vmul.f32 %v4099, %v4101
    %v4103 = vadd.f32 %v4099, %v4102
    %vm4104 = vweird.f32 %v4083
    %vm4105 = vweird.f32 %v4099
    %vm4106 = vmor %vm4104, %vm4105
    %v4107 = vsel %vm4106, %v4099, %v4103
    %v4108 = vand.u32 2147483647, %v4083
    %vm4109 = vcmp.eq.f32.partialorder %v4108, 8.507059e+37
    %v4110 = vand.u32 %v4083, 2147483648
    %v4111 = vor.u32 1.1754944e-38, %v4110
    %v4112 = vsel %vm4109, %v4111, %v4107
    %v4113 = vmul.f32 1.0, %v4112
    %v4114 = vrcp.pop %v4084
    %v4115 = vmul.f32 %v4084, %v4114
    %v4116 = vsub.f32 1.0, %v4115
    %v4117 = vmul.f32 %v4114, %v4116
    %v4118 = vadd.f32 %v4114, %v4117
    %vm4119 = vweird.f32 %v4084
    %vm4120 = vweird.f32 %v4114
    %vm4121 = vmor %vm4119, %vm4120
    %v4122 = vsel %vm4121, %v4114, %v4118
    %v4123 = vand.u32 2147483647, %v4084
    %vm4124 = vcmp.eq.f32.partialorder %v4123, 8.507059e+37
    %v4125 = vand.u32 %v4084, 2147483648
    %v4126 = vor.u32 1.1754944e-38, %v4125
    %v4127 = vsel %vm4124, %v4126, %v4122
    %v4128 = vmul.f32 1.0, %v4127
    %v4129 = vrcp.pop %v4085
    %v4130 = vmul.f32 %v4085, %v4129
    %v4131 = vsub.f32 1.0, %v4130
    %v4132 = vmul.f32 %v4129, %v4131
    %v4133 = vadd.f32 %v4129, %v4132
    %vm4134 = vweird.f32 %v4085
    %vm4135 = vweird.f32 %v4129
    %vm4136 = vmor %vm4134, %vm4135
    %v4137 = vsel %vm4136, %v4129, %v4133
    %v4138 = vand.u32 2147483647, %v4085
    %vm4139 = vcmp.eq.f32.partialorder %v4138, 8.507059e+37
    %v4140 = vand.u32 %v4085, 2147483648
    %v4141 = vor.u32 1.1754944e-38, %v4140
    %v4142 = vsel %vm4139, %v4141, %v4137
    %v4143 = vmul.f32 1.0, %v4142
    %v4144 = vrcp.pop %v4086
    %v4145 = vmul.f32 %v4086, %v4144
    %v4146 = vsub.f32 1.0, %v4145
    %v4147 = vmul.f32 %v4144, %v4146
    %v4148 = vadd.f32 %v4144, %v4147
    %vm4149 = vweird.f32 %v4086
    %vm4150 = vweird.f32 %v4144
    %vm4151 = vmor %vm4149, %vm4150
    %v4152 = vsel %vm4151, %v4144, %v4148
    %v4153 = vand.u32 2147483647, %v4086
    %vm4154 = vcmp.eq.f32.partialorder %v4153, 8.507059e+37
    %v4155 = vand.u32 %v4086, 2147483648
    %v4156 = vor.u32 1.1754944e-38, %v4155
    %v4157 = vsel %vm4154, %v4156, %v4152
    %v4158 = vmul.f32 1.0, %v4157
    %v4159 = vrcp.pop %v4087
    %v4160 = vmul.f32 %v4087, %v4159
    %v4161 = vsub.f32 1.0, %v4160
    %v4162 = vmul.f32 %v4159, %v4161
    %v4163 = vadd.f32 %v4159, %v4162
    %vm4164 = vweird.f32 %v4087
    %vm4165 = vweird.f32 %v4159
    %vm4166 = vmor %vm4164, %vm4165
    %v4167 = vsel %vm4166, %v4159, %v4163
    %v4168 = vand.u32 2147483647, %v4087
    %vm4169 = vcmp.eq.f32.partialorder %v4168, 8.507059e+37
    %v4170 = vand.u32 %v4087, 2147483648
    %v4171 = vor.u32 1.1754944e-38, %v4170
    %v4172 = vsel %vm4169, %v4171, %v4167
    %v4173 = vmul.f32 1.0, %v4172
    %v4174 = vrcp.pop %v4088
    %v4175 = vmul.f32 %v4088, %v4174
    %v4176 = vsub.f32 1.0, %v4175
    %v4177 = vmul.f32 %v4174, %v4176
    %v4178 = vadd.f32 %v4174, %v4177
    %vm4179 = vweird.f32 %v4088
    %vm4180 = vweird.f32 %v4174
    %vm4181 = vmor %vm4179, %vm4180
    %v4182 = vsel %vm4181, %v4174, %v4178
    %v4183 = vand.u32 2147483647, %v4088
    %vm4184 = vcmp.eq.f32.partialorder %v4183, 8.507059e+37
    %v4185 = vand.u32 %v4088, 2147483648
    %v4186 = vor.u32 1.1754944e-38, %v4185
    %v4187 = vsel %vm4184, %v4186, %v4182
    %v4188 = vmul.f32 1.0, %v4187
    %v4189 = vrcp.pop %v4089
    %v4190 = vmul.f32 %v4089, %v4189
    %v4191 = vsub.f32 1.0, %v4190
    %v4192 = vmul.f32 %v4189, %v4191
    %v4193 = vadd.f32 %v4189, %v4192
    %vm4194 = vweird.f32 %v4089
    %vm4195 = vweird.f32 %v4189
    %vm4196 = vmor %vm4194, %vm4195
    %v4197 = vsel %vm4196, %v4189, %v4193
    %v4198 = vand.u32 2147483647, %v4089
    %vm4199 = vcmp.eq.f32.partialorder %v4198, 8.507059e+37
    %v4200 = vand.u32 %v4089, 2147483648
    %v4201 = vor.u32 1.1754944e-38, %v4200
    %v4202 = vsel %vm4199, %v4201, %v4197
    %v4203 = vmul.f32 1.0, %v4202
    %v4204 = vrcp.pop %v4090
    %v4205 = vmul.f32 %v4090, %v4204
    %v4206 = vsub.f32 1.0, %v4205
    %v4207 = vmul.f32 %v4204, %v4206
    %v4208 = vadd.f32 %v4204, %v4207
    %vm4209 = vweird.f32 %v4090
    %vm4210 = vweird.f32 %v4204
    %vm4211 = vmor %vm4209, %vm4210
    %v4212 = vsel %vm4211, %v4204, %v4208
    %v4213 = vand.u32 2147483647, %v4090
    %vm4214 = vcmp.eq.f32.partialorder %v4213, 8.507059e+37
    %v4215 = vand.u32 %v4090, 2147483648
    %v4216 = vor.u32 1.1754944e-38, %v4215
    %v4217 = vsel %vm4214, %v4216, %v4212
    %v4218 = vmul.f32 1.0, %v4217
    %v4219 = vrcp.pop %v4091
    %v4220 = vmul.f32 %v4091, %v4219
    %v4221 = vsub.f32 1.0, %v4220
    %v4222 = vmul.f32 %v4219, %v4221
    %v4223 = vadd.f32 %v4219, %v4222
    %vm4224 = vweird.f32 %v4091
    %vm4225 = vweird.f32 %v4219
    %vm4226 = vmor %vm4224, %vm4225
    %v4227 = vsel %vm4226, %v4219, %v4223
    %v4228 = vand.u32 2147483647, %v4091
    %vm4229 = vcmp.eq.f32.partialorder %v4228, 8.507059e+37
    %v4230 = vand.u32 %v4091, 2147483648
    %v4231 = vor.u32 1.1754944e-38, %v4230
    %v4232 = vsel %vm4229, %v4231, %v4227
    %v4233 = vmul.f32 1.0, %v4232
    %v4234 = vrcp.pop %v4092
    %v4235 = vmul.f32 %v4092, %v4234
    %v4236 = vsub.f32 1.0, %v4235
    %v4237 = vmul.f32 %v4234, %v4236
    %v4238 = vadd.f32 %v4234, %v4237
    %vm4239 = vweird.f32 %v4092
    %vm4240 = vweird.f32 %v4234
    %vm4241 = vmor %vm4239, %vm4240
    %v4242 = vsel %vm4241, %v4234, %v4238
    %v4243 = vand.u32 2147483647, %v4092
    %vm4244 = vcmp.eq.f32.partialorder %v4243, 8.507059e+37
    %v4245 = vand.u32 %v4092, 2147483648
    %v4246 = vor.u32 1.1754944e-38, %v4245
    %v4247 = vsel %vm4244, %v4246, %v4242
    %v4248 = vmul.f32 1.0, %v4247
    %v4249 = vrcp.pop %v4093
    %v4250 = vmul.f32 %v4093, %v4249
    %v4251 = vsub.f32 1.0, %v4250
    %v4252 = vmul.f32 %v4249, %v4251
    %v4253 = vadd.f32 %v4249, %v4252
    %vm4254 = vweird.f32 %v4093
    %vm4255 = vweird.f32 %v4249
    %vm4256 = vmor %vm4254, %vm4255
    %v4257 = vsel %vm4256, %v4249, %v4253
    %v4258 = vand.u32 2147483647, %v4093
    %vm4259 = vcmp.eq.f32.partialorder %v4258, 8.507059e+37
    %v4260 = vand.u32 %v4093, 2147483648
    %v4261 = vor.u32 1.1754944e-38, %v4260
    %v4262 = vsel %vm4259, %v4261, %v4257
    %v4263 = vmul.f32 1.0, %v4262
    %v4264 = vrcp.pop %v4094
    %v4265 = vmul.f32 %v4094, %v4264
    %v4266 = vsub.f32 1.0, %v4265
    %v4267 = vmul.f32 %v4264, %v4266
    %v4268 = vadd.f32 %v4264, %v4267
    %vm4269 = vweird.f32 %v4094
    %vm4270 = vweird.f32 %v4264
    %vm4271 = vmor %vm4269, %vm4270
    %v4272 = vsel %vm4271, %v4264, %v4268
    %v4273 = vand.u32 2147483647, %v4094
    %vm4274 = vcmp.eq.f32.partialorder %v4273, 8.507059e+37
    %v4275 = vand.u32 %v4094, 2147483648
    %v4276 = vor.u32 1.1754944e-38, %v4275
    %v4277 = vsel %vm4274, %v4276, %v4272
    %v4278 = vmul.f32 1.0, %v4277
    %v4279 = vrcp.pop %v4095
    %v4280 = vmul.f32 %v4095, %v4279
    %v4281 = vsub.f32 1.0, %v4280
    %v4282 = vmul.f32 %v4279, %v4281
    %v4283 = vadd.f32 %v4279, %v4282
    %vm4284 = vweird.f32 %v4095
    %vm4285 = vweird.f32 %v4279
    %vm4286 = vmor %vm4284, %vm4285
    %v4287 = vsel %vm4286, %v4279, %v4283
    %v4288 = vand.u32 2147483647, %v4095
    %vm4289 = vcmp.eq.f32.partialorder %v4288, 8.507059e+37
    %v4290 = vand.u32 %v4095, 2147483648
    %v4291 = vor.u32 1.1754944e-38, %v4290
    %v4292 = vsel %vm4289, %v4291, %v4287
    %v4293 = vmul.f32 1.0, %v4292
    %v4294 = vrcp.pop %v4096
    %v4295 = vmul.f32 %v4096, %v4294
    %v4296 = vsub.f32 1.0, %v4295
    %v4297 = vmul.f32 %v4294, %v4296
    %v4298 = vadd.f32 %v4294, %v4297
    %vm4299 = vweird.f32 %v4096
    %vm4300 = vweird.f32 %v4294
    %vm4301 = vmor %vm4299, %vm4300
    %v4302 = vsel %vm4301, %v4294, %v4298
    %v4303 = vand.u32 2147483647, %v4096
    %vm4304 = vcmp.eq.f32.partialorder %v4303, 8.507059e+37
    %v4305 = vand.u32 %v4096, 2147483648
    %v4306 = vor.u32 1.1754944e-38, %v4305
    %v4307 = vsel %vm4304, %v4306, %v4302
    %v4308 = vmul.f32 1.0, %v4307
    %v4309 = vrcp.pop %v4097
    %v4310 = vmul.f32 %v4097, %v4309
    %v4311 = vsub.f32 1.0, %v4310
    %v4312 = vmul.f32 %v4309, %v4311
    %v4313 = vadd.f32 %v4309, %v4312
    %vm4314 = vweird.f32 %v4097
    %vm4315 = vweird.f32 %v4309
    %vm4316 = vmor %vm4314, %vm4315
    %v4317 = vsel %vm4316, %v4309, %v4313
    %v4318 = vand.u32 2147483647, %v4097
    %vm4319 = vcmp.eq.f32.partialorder %v4318, 8.507059e+37
    %v4320 = vand.u32 %v4097, 2147483648
    %v4321 = vor.u32 1.1754944e-38, %v4320
    %v4322 = vsel %vm4319, %v4321, %v4317
    %v4323 = vmul.f32 1.0, %v4322
    %v4324 = vrcp.pop %v4098
    %v4325 = vmul.f32 %v4098, %v4324
    %v4326 = vsub.f32 1.0, %v4325
    %v4327 = vmul.f32 %v4324, %v4326
    %v4328 = vadd.f32 %v4324, %v4327
    %vm4329 = vweird.f32 %v4098
    %vm4330 = vweird.f32 %v4324
    %vm4331 = vmor %vm4329, %vm4330
    %v4332 = vsel %vm4331, %v4324, %v4328
    %v4333 = vand.u32 2147483647, %v4098
    %vm4334 = vcmp.eq.f32.partialorder %v4333, 8.507059e+37
    %v4335 = vand.u32 %v4098, 2147483648
    %v4336 = vor.u32 1.1754944e-38, %v4335
    %v4337 = vsel %vm4334, %v4336, %v4332
    %v4338 = vmul.f32 1.0, %v4337
    %4355 = vrot.lane.b32.xlu0 %v3797, 32
    %v4356 = vpop.permute.xlu0 %4355
    %4357 = vrot.lane.b32.xlu0 %v3798, 32
    %v4358 = vpop.permute.xlu0 %4357
    %4359 = vrot.lane.b32.xlu0 %v3799, 32
    %v4360 = vpop.permute.xlu0 %4359
    %4361 = vrot.lane.b32.xlu0 %v3800, 32
    %v4362 = vpop.permute.xlu0 %4361
    %4363 = vrot.lane.b32.xlu0 %v3801, 32
    %v4364 = vpop.permute.xlu0 %4363
    %4365 = vrot.lane.b32.xlu0 %v3802, 32
    %v4366 = vpop.permute.xlu0 %4365
    %4367 = vrot.lane.b32.xlu0 %v3803, 32
    %v4368 = vpop.permute.xlu0 %4367
    %4369 = vrot.lane.b32.xlu0 %v3804, 32
    %v4370 = vpop.permute.xlu0 %4369
    %4371 = vrot.lane.b32.xlu0 %v3805, 32
    %v4372 = vpop.permute.xlu0 %4371
    %4373 = vrot.lane.b32.xlu0 %v3806, 32
    %v4374 = vpop.permute.xlu0 %4373
    %4375 = vrot.lane.b32.xlu0 %v3807, 32
    %v4376 = vpop.permute.xlu0 %4375
    %4377 = vrot.lane.b32.xlu0 %v3808, 32
    %v4378 = vpop.permute.xlu0 %4377
    %4379 = vrot.lane.b32.xlu0 %v3809, 32
    %v4380 = vpop.permute.xlu0 %4379
    %4381 = vrot.lane.b32.xlu0 %v3810, 32
    %v4382 = vpop.permute.xlu0 %4381
    %4383 = vrot.lane.b32.xlu0 %v3811, 32
    %v4384 = vpop.permute.xlu0 %4383
    %4385 = vrot.lane.b32.xlu0 %v3812, 32
    %v4386 = vpop.permute.xlu0 %4385
    %v4403 = vmul.f32 %v4113, %v4356
    %v4404 = vmul.f32 %v4128, %v4358
    %v4405 = vmul.f32 %v4143, %v4360
    %v4406 = vmul.f32 %v4158, %v4362
    %v4407 = vmul.f32 %v4173, %v4364
    %v4408 = vmul.f32 %v4188, %v4366
    %v4409 = vmul.f32 %v4203, %v4368
    %v4410 = vmul.f32 %v4218, %v4370
    %v4411 = vmul.f32 %v4233, %v4372
    %v4412 = vmul.f32 %v4248, %v4374
    %v4413 = vmul.f32 %v4263, %v4376
    %v4414 = vmul.f32 %v4278, %v4378
    %v4415 = vmul.f32 %v4293, %v4380
    %v4416 = vmul.f32 %v4308, %v4382
    %v4417 = vmul.f32 %v4323, %v4384
    %v4418 = vmul.f32 %v4338, %v4386
    %s4419 = scalar_lea.vmem %s17, 16
    %v4420 = vld [vmem:[%s4419] sm:$0xf]
    %v4421 = vld [vmem:[%s4419 + $0x4] sm:$0xf]
    %v4422 = vld [vmem:[%s4419 + $0x8] sm:$0xf]
    %v4423 = vld [vmem:[%s4419 + $0xc] sm:$0xf]
    %v4424 = vpack.c.bf16 %v4404, %v4403
    %v4425 = vpack.c.bf16 %v4406, %v4405
    %v4426 = vpack.c.bf16 %v4408, %v4407
    %v4427 = vpack.c.bf16 %v4410, %v4409
    %v4428 = vpack.c.bf16 %v4412, %v4411
    %v4429 = vpack.c.bf16 %v4414, %v4413
    %v4430 = vpack.c.bf16 %v4416, %v4415
    %v4431 = vpack.c.bf16 %v4418, %v4417
    %4440 = vrot.lane.b32.xlu0 %v4424, 96
    %v4441 = vpop.permute.xlu0 %4440
    %4442 = vrot.lane.b32.xlu0 %v4425, 96
    %v4443 = vpop.permute.xlu0 %4442
    %4444 = vrot.lane.b32.xlu0 %v4426, 96
    %v4445 = vpop.permute.xlu0 %4444
    %4446 = vrot.lane.b32.xlu0 %v4427, 96
    %v4447 = vpop.permute.xlu0 %4446
    %4448 = vrot.lane.b32.xlu0 %v4428, 96
    %v4449 = vpop.permute.xlu0 %4448
    %4450 = vrot.lane.b32.xlu0 %v4429, 96
    %v4451 = vpop.permute.xlu0 %4450
    %4452 = vrot.lane.b32.xlu0 %v4430, 96
    %v4453 = vpop.permute.xlu0 %4452
    %4454 = vrot.lane.b32.xlu0 %v4431, 96
    %v4455 = vpop.permute.xlu0 %4454
    %v4460 = vunpack.c.l.b16 %v4420
    %v4461 = vunpack.c.l.b16 %v4421
    %v4462 = vunpack.c.l.b16 %v4422
    %v4463 = vunpack.c.l.b16 %v4423
    %v4464 = vpack.c.b16 %v4461, %v4460
    %v4465 = vpack.c.b16 %v4463, %v4462
    %v4469 = vsel %vm91, %v4441, 0
    %v4472 = vsel %vm91, %v4443, 0
    %v4475 = vsel %vm91, %v4445, 0
    %v4478 = vsel %vm91, %v4447, 0
    %v4481 = vsel %vm91, %v4449, 0
    %v4484 = vsel %vm91, %v4451, 0
    %v4487 = vsel %vm91, %v4453, 0
    %v4490 = vsel %vm91, %v4455, 0
    %4492 = vmatpush.bf16.msra.mxu0 0
    %4493 = vmatpush.bf16.msra.mxu0 0
    %4494 = vmatpush.bf16.msra.mxu0 0
    %4495 = vmatpush.bf16.msra.mxu0 0
    %4496 = vmatpush.bf16.msra.mxu0 0
    %4497 = vmatpush.bf16.msra.mxu0 0
    %4498 = vmatpush.bf16.msra.mxu0 %v4465
    %4499 = vmatpush.bf16.msra.mxu0 %v4464
    %4500 = vmatmul.bf16.gmra.mxu0 %v4469
    %v4501 = vpop.f32.mrf.mxu0
    %v4502 = vadd.f32 0.0, %v4501
    %v4503 = vpop.f32.mrf.mxu0
    %v4504 = vadd.f32 0.0, %v4503
    %4505 = vmatmul.bf16.gmra.mxu0 %v4472
    %v4506 = vpop.f32.mrf.mxu0
    %v4507 = vadd.f32 0.0, %v4506
    %v4508 = vpop.f32.mrf.mxu0
    %v4509 = vadd.f32 0.0, %v4508
    %4510 = vmatmul.bf16.gmra.mxu0 %v4475
    %v4511 = vpop.f32.mrf.mxu0
    %v4512 = vadd.f32 0.0, %v4511
    %v4513 = vpop.f32.mrf.mxu0
    %v4514 = vadd.f32 0.0, %v4513
    %4515 = vmatmul.bf16.gmra.mxu0 %v4478
    %v4516 = vpop.f32.mrf.mxu0
    %v4517 = vadd.f32 0.0, %v4516
    %v4518 = vpop.f32.mrf.mxu0
    %v4519 = vadd.f32 0.0, %v4518
    %4520 = vmatmul.bf16.gmra.mxu0 %v4481
    %v4521 = vpop.f32.mrf.mxu0
    %v4522 = vadd.f32 0.0, %v4521
    %v4523 = vpop.f32.mrf.mxu0
    %v4524 = vadd.f32 0.0, %v4523
    %4525 = vmatmul.bf16.gmra.mxu0 %v4484
    %v4526 = vpop.f32.mrf.mxu0
    %v4527 = vadd.f32 0.0, %v4526
    %v4528 = vpop.f32.mrf.mxu0
    %v4529 = vadd.f32 0.0, %v4528
    %4530 = vmatmul.bf16.gmra.mxu0 %v4487
    %v4531 = vpop.f32.mrf.mxu0
    %v4532 = vadd.f32 0.0, %v4531
    %v4533 = vpop.f32.mrf.mxu0
    %v4534 = vadd.f32 0.0, %v4533
    %4535 = vmatmul.bf16.gmra.mxu0 %v4490
    %v4536 = vpop.f32.mrf.mxu0
    %v4537 = vadd.f32 0.0, %v4536
    %v4538 = vpop.f32.mrf.mxu0
    %v4539 = vadd.f32 0.0, %v4538
    %4540 = vdwg.mxu0
    %4557 = vrot.lane.b32.xlu0 %v4502, 64
    %v4558 = vpop.permute.xlu0 %4557
    %4559 = vrot.lane.b32.xlu0 %v4504, 64
    %v4560 = vpop.permute.xlu0 %4559
    %4561 = vrot.lane.b32.xlu0 %v4507, 64
    %v4562 = vpop.permute.xlu0 %4561
    %4563 = vrot.lane.b32.xlu0 %v4509, 64
    %v4564 = vpop.permute.xlu0 %4563
    %4565 = vrot.lane.b32.xlu0 %v4512, 64
    %v4566 = vpop.permute.xlu0 %4565
    %4567 = vrot.lane.b32.xlu0 %v4514, 64
    %v4568 = vpop.permute.xlu0 %4567
    %4569 = vrot.lane.b32.xlu0 %v4517, 64
    %v4570 = vpop.permute.xlu0 %4569
    %4571 = vrot.lane.b32.xlu0 %v4519, 64
    %v4572 = vpop.permute.xlu0 %4571
    %4573 = vrot.lane.b32.xlu0 %v4522, 64
    %v4574 = vpop.permute.xlu0 %4573
    %4575 = vrot.lane.b32.xlu0 %v4524, 64
    %v4576 = vpop.permute.xlu0 %4575
    %4577 = vrot.lane.b32.xlu0 %v4527, 64
    %v4578 = vpop.permute.xlu0 %4577
    %4579 = vrot.lane.b32.xlu0 %v4529, 64
    %v4580 = vpop.permute.xlu0 %4579
    %4581 = vrot.lane.b32.xlu0 %v4532, 64
    %v4582 = vpop.permute.xlu0 %4581
    %4583 = vrot.lane.b32.xlu0 %v4534, 64
    %v4584 = vpop.permute.xlu0 %4583
    %4585 = vrot.lane.b32.xlu0 %v4537, 64
    %v4586 = vpop.permute.xlu0 %4585
    %4587 = vrot.lane.b32.xlu0 %v4539, 64
    %v4588 = vpop.permute.xlu0 %4587
    %v4605 = vadd.f32 %v3877, %v4558
    %v4606 = vadd.f32 %v3879, %v4560
    %v4607 = vadd.f32 %v3882, %v4562
    %v4608 = vadd.f32 %v3884, %v4564
    %v4609 = vadd.f32 %v3887, %v4566
    %v4610 = vadd.f32 %v3889, %v4568
    %v4611 = vadd.f32 %v3892, %v4570
    %v4612 = vadd.f32 %v3894, %v4572
    %v4613 = vadd.f32 %v3897, %v4574
    %v4614 = vadd.f32 %v3899, %v4576
    %v4615 = vadd.f32 %v3902, %v4578
    %v4616 = vadd.f32 %v3904, %v4580
    %v4617 = vadd.f32 %v3907, %v4582
    %v4618 = vadd.f32 %v3909, %v4584
    %v4619 = vadd.f32 %v3912, %v4586
    %v4620 = vadd.f32 %v3914, %v4588
    %s4621 = scalar_lea.vmem %s18, 1
    %v4622 = vld [vmem:[%s4621] sm:$0x1]
    %v4624 = vperm.slane %v4622, 0
    %4625 = vrot.lane.b32.xlu0 %v4624, 64
    %v4626 = vpop.permute.xlu0 %4625
    %v4628 = vadd.f32 %v4605, %v4626
    %v4629 = vadd.f32 %v4606, %v4626
    %v4630 = vadd.f32 %v4607, %v4626
    %v4631 = vadd.f32 %v4608, %v4626
    %v4632 = vadd.f32 %v4609, %v4626
    %v4633 = vadd.f32 %v4610, %v4626
    %v4634 = vadd.f32 %v4611, %v4626
    %v4635 = vadd.f32 %v4612, %v4626
    %v4636 = vadd.f32 %v4613, %v4626
    %v4637 = vadd.f32 %v4614, %v4626
    %v4638 = vadd.f32 %v4615, %v4626
    %v4639 = vadd.f32 %v4616, %v4626
    %v4640 = vadd.f32 %v4617, %v4626
    %v4641 = vadd.f32 %v4618, %v4626
    %v4642 = vadd.f32 %v4619, %v4626
    %v4643 = vadd.f32 %v4620, %v4626
    %v4644 = vtanh.pop %v4628
    %v4645 = vtanh.pop %v4629
    %v4646 = vtanh.pop %v4630
    %v4647 = vtanh.pop %v4631
    %v4648 = vtanh.pop %v4632
    %v4649 = vtanh.pop %v4633
    %v4650 = vtanh.pop %v4634
    %v4651 = vtanh.pop %v4635
    %v4652 = vtanh.pop %v4636
    %v4653 = vtanh.pop %v4637
    %v4654 = vtanh.pop %v4638
    %v4655 = vtanh.pop %v4639
    %v4656 = vtanh.pop %v4640
    %v4657 = vtanh.pop %v4641
    %v4658 = vtanh.pop %v4642
    %v4659 = vtanh.pop %v4643
    %v4660 = vsub.f32 1.0, %v4113
    %v4661 = vsub.f32 1.0, %v4128
    %v4662 = vsub.f32 1.0, %v4143
    %v4663 = vsub.f32 1.0, %v4158
    %v4664 = vsub.f32 1.0, %v4173
    %v4665 = vsub.f32 1.0, %v4188
    %v4666 = vsub.f32 1.0, %v4203
    %v4667 = vsub.f32 1.0, %v4218
    %v4668 = vsub.f32 1.0, %v4233
    %v4669 = vsub.f32 1.0, %v4248
    %v4670 = vsub.f32 1.0, %v4263
    %v4671 = vsub.f32 1.0, %v4278
    %v4672 = vsub.f32 1.0, %v4293
    %v4673 = vsub.f32 1.0, %v4308
    %v4674 = vsub.f32 1.0, %v4323
    %v4675 = vsub.f32 1.0, %v4338
    %v4676 = vmul.f32 %v4660, %v3797
    %v4677 = vmul.f32 %v4661, %v3798
    %v4678 = vmul.f32 %v4662, %v3799
    %v4679 = vmul.f32 %v4663, %v3800
    %v4680 = vmul.f32 %v4664, %v3801
    %v4681 = vmul.f32 %v4665, %v3802
    %v4682 = vmul.f32 %v4666, %v3803
    %v4683 = vmul.f32 %v4667, %v3804
    %v4684 = vmul.f32 %v4668, %v3805
    %v4685 = vmul.f32 %v4669, %v3806
    %v4686 = vmul.f32 %v4670, %v3807
    %v4687 = vmul.f32 %v4671, %v3808
    %v4688 = vmul.f32 %v4672, %v3809
    %v4689 = vmul.f32 %v4673, %v3810
    %v4690 = vmul.f32 %v4674, %v3811
    %v4691 = vmul.f32 %v4675, %v3812
    %4708 = vrot.lane.b32.xlu0 %v4644, 64
    %v4709 = vpop.permute.xlu0 %4708
    %4710 = vrot.lane.b32.xlu0 %v4645, 64
    %v4711 = vpop.permute.xlu0 %4710
    %4712 = vrot.lane.b32.xlu0 %v4646, 64
    %v4713 = vpop.permute.xlu0 %4712
    %4714 = vrot.lane.b32.xlu0 %v4647, 64
    %v4715 = vpop.permute.xlu0 %4714
    %4716 = vrot.lane.b32.xlu0 %v4648, 64
    %v4717 = vpop.permute.xlu0 %4716
    %4718 = vrot.lane.b32.xlu0 %v4649, 64
    %v4719 = vpop.permute.xlu0 %4718
    %4720 = vrot.lane.b32.xlu0 %v4650, 64
    %v4721 = vpop.permute.xlu0 %4720
    %4722 = vrot.lane.b32.xlu0 %v4651, 64
    %v4723 = vpop.permute.xlu0 %4722
    %4724 = vrot.lane.b32.xlu0 %v4652, 64
    %v4725 = vpop.permute.xlu0 %4724
    %4726 = vrot.lane.b32.xlu0 %v4653, 64
    %v4727 = vpop.permute.xlu0 %4726
    %4728 = vrot.lane.b32.xlu0 %v4654, 64
    %v4729 = vpop.permute.xlu0 %4728
    %4730 = vrot.lane.b32.xlu0 %v4655, 64
    %v4731 = vpop.permute.xlu0 %4730
    %4732 = vrot.lane.b32.xlu0 %v4656, 64
    %v4733 = vpop.permute.xlu0 %4732
    %4734 = vrot.lane.b32.xlu0 %v4657, 64
    %v4735 = vpop.permute.xlu0 %4734
    %4736 = vrot.lane.b32.xlu0 %v4658, 64
    %v4737 = vpop.permute.xlu0 %4736
    %4738 = vrot.lane.b32.xlu0 %v4659, 64
    %v4739 = vpop.permute.xlu0 %4738
    %v4756 = vmul.f32 %v4113, %v4709
    %v4757 = vmul.f32 %v4128, %v4711
    %v4758 = vmul.f32 %v4143, %v4713
    %v4759 = vmul.f32 %v4158, %v4715
    %v4760 = vmul.f32 %v4173, %v4717
    %v4761 = vmul.f32 %v4188, %v4719
    %v4762 = vmul.f32 %v4203, %v4721
    %v4763 = vmul.f32 %v4218, %v4723
    %v4764 = vmul.f32 %v4233, %v4725
    %v4765 = vmul.f32 %v4248, %v4727
    %v4766 = vmul.f32 %v4263, %v4729
    %v4767 = vmul.f32 %v4278, %v4731
    %v4768 = vmul.f32 %v4293, %v4733
    %v4769 = vmul.f32 %v4308, %v4735
    %v4770 = vmul.f32 %v4323, %v4737
    %v4771 = vmul.f32 %v4338, %v4739
    %v4772 = vadd.f32 %v4676, %v4756
    %v4773 = vadd.f32 %v4677, %v4757
    %v4774 = vadd.f32 %v4678, %v4758
    %v4775 = vadd.f32 %v4679, %v4759
    %v4776 = vadd.f32 %v4680, %v4760
    %v4777 = vadd.f32 %v4681, %v4761
    %v4778 = vadd.f32 %v4682, %v4762
    %v4779 = vadd.f32 %v4683, %v4763
    %v4780 = vadd.f32 %v4684, %v4764
    %v4781 = vadd.f32 %v4685, %v4765
    %v4782 = vadd.f32 %v4686, %v4766
    %v4783 = vadd.f32 %v4687, %v4767
    %v4784 = vadd.f32 %v4688, %v4768
    %v4785 = vadd.f32 %v4689, %v4769
    %v4786 = vadd.f32 %v4690, %v4770
    %v4787 = vadd.f32 %v4691, %v4771
    %4788 = vst.msk [vmem:[#allocation3] sm:$0xff] %vm91, %v4772
    %4789 = vst.msk [vmem:[#allocation3 + $0x8] sm:$0xff] %vm91, %v4773
    %4790 = vst.msk [vmem:[#allocation3 + $0x10] sm:$0xff] %vm91, %v4774
    %4791 = vst.msk [vmem:[#allocation3 + $0x18] sm:$0xff] %vm91, %v4775
    %4792 = vst.msk [vmem:[#allocation3 + $0x20] sm:$0xff] %vm91, %v4776
    %4793 = vst.msk [vmem:[#allocation3 + $0x28] sm:$0xff] %vm91, %v4777
    %4794 = vst.msk [vmem:[#allocation3 + $0x30] sm:$0xff] %vm91, %v4778
    %4795 = vst.msk [vmem:[#allocation3 + $0x38] sm:$0xff] %vm91, %v4779
    %4796 = vst.msk [vmem:[#allocation3 + $0x40] sm:$0xff] %vm91, %v4780
    %4797 = vst.msk [vmem:[#allocation3 + $0x48] sm:$0xff] %vm91, %v4781
    %4798 = vst.msk [vmem:[#allocation3 + $0x50] sm:$0xff] %vm91, %v4782
    %4799 = vst.msk [vmem:[#allocation3 + $0x58] sm:$0xff] %vm91, %v4783
    %4800 = vst.msk [vmem:[#allocation3 + $0x60] sm:$0xff] %vm91, %v4784
    %4801 = vst.msk [vmem:[#allocation3 + $0x68] sm:$0xff] %vm91, %v4785
    %4802 = vst.msk [vmem:[#allocation3 + $0x70] sm:$0xff] %vm91, %v4786
    %4803 = vst.msk [vmem:[#allocation3 + $0x78] sm:$0xff] %vm91, %v4787
  $region98: #{ggnn_forward.1} parent=0 // loop_footer
    %s145 = sadd.s32 1, %s141
  $region99: #{ggnn_forward.1} parent=0 // loop_footer_branch
    %140 = sbr.rel target = $region95
  $region100: #{ggnn_forward.1} parent=0 // loop_exit
    _
  %v4804 = vld [vmem:[#allocation3] sm:$0xff]
  %v4805 = vld [vmem:[#allocation3 + $0x8] sm:$0xff]
  %v4806 = vld [vmem:[#allocation3 + $0x10] sm:$0xff]
  %v4807 = vld [vmem:[#allocation3 + $0x18] sm:$0xff]
  %v4808 = vld [vmem:[#allocation3 + $0x20] sm:$0xff]
  %v4809 = vld [vmem:[#allocation3 + $0x28] sm:$0xff]
  %v4810 = vld [vmem:[#allocation3 + $0x30] sm:$0xff]
  %v4811 = vld [vmem:[#allocation3 + $0x38] sm:$0xff]
  %v4812 = vld [vmem:[#allocation3 + $0x40] sm:$0xff]
  %v4813 = vld [vmem:[#allocation3 + $0x48] sm:$0xff]
  %v4814 = vld [vmem:[#allocation3 + $0x50] sm:$0xff]
  %v4815 = vld [vmem:[#allocation3 + $0x58] sm:$0xff]
  %v4816 = vld [vmem:[#allocation3 + $0x60] sm:$0xff]
  %v4817 = vld [vmem:[#allocation3 + $0x68] sm:$0xff]
  %v4818 = vld [vmem:[#allocation3 + $0x70] sm:$0xff]
  %v4819 = vld [vmem:[#allocation3 + $0x78] sm:$0xff]
  %v4820 = vld [vmem:[%s19] sm:$0xf]
  %v4821 = vld [vmem:[%s19 + $0x4] sm:$0xf]
  %v4822 = vld [vmem:[%s19 + $0x8] sm:$0xf]
  %v4823 = vld [vmem:[%s19 + $0xc] sm:$0xf]
  %v4824 = vpack.c.bf16 %v4805, %v4804
  %v4825 = vpack.c.bf16 %v4807, %v4806
  %v4826 = vpack.c.bf16 %v4809, %v4808
  %v4827 = vpack.c.bf16 %v4811, %v4810
  %v4828 = vpack.c.bf16 %v4813, %v4812
  %v4829 = vpack.c.bf16 %v4815, %v4814
  %v4830 = vpack.c.bf16 %v4817, %v4816
  %v4831 = vpack.c.bf16 %v4819, %v4818
  %v4832 = vld [vmem:[%s20] sm:$0x1]
  %v4834 = vperm.slane %v4832, 0
  %v4840 = vunpack.c.l.b16 %v4820
  %v4841 = vunpack.c.l.b16 %v4821
  %v4842 = vunpack.c.l.b16 %v4822
  %v4843 = vunpack.c.l.b16 %v4823
  %v4844 = vpack.c.b16 %v4841, %v4840
  %v4845 = vpack.c.b16 %v4843, %v4842
  %v4849 = vsel %vm91, %v4824, 0
  %v4852 = vsel %vm91, %v4825, 0
  %v4855 = vsel %vm91, %v4826, 0
  %v4858 = vsel %vm91, %v4827, 0
  %v4861 = vsel %vm91, %v4828, 0
  %v4864 = vsel %vm91, %v4829, 0
  %v4867 = vsel %vm91, %v4830, 0
  %v4870 = vsel %vm91, %v4831, 0
  %4872 = vmatpush.bf16.msra.mxu0 0
  %4873 = vmatpush.bf16.msra.mxu0 0
  %4874 = vmatpush.bf16.msra.mxu0 0
  %4875 = vmatpush.bf16.msra.mxu0 0
  %4876 = vmatpush.bf16.msra.mxu0 0
  %4877 = vmatpush.bf16.msra.mxu0 0
  %4878 = vmatpush.bf16.msra.mxu0 %v4845
  %4879 = vmatpush.bf16.msra.mxu0 %v4844
  %4880 = vmatmul.bf16.gmra.mxu0 %v4849
  %v4881 = vpop.f32.mrf.mxu0
  %v4882 = vadd.f32 %v4834, %v4881
  %v4883 = vpop.f32.mrf.mxu0
  %v4884 = vadd.f32 %v4834, %v4883
  %4885 = vmatmul.bf16.gmra.mxu0 %v4852
  %v4886 = vpop.f32.mrf.mxu0
  %v4887 = vadd.f32 %v4834, %v4886
  %v4888 = vpop.f32.mrf.mxu0
  %v4889 = vadd.f32 %v4834, %v4888
  %4890 = vmatmul.bf16.gmra.mxu0 %v4855
  %v4891 = vpop.f32.mrf.mxu0
  %v4892 = vadd.f32 %v4834, %v4891
  %v4893 = vpop.f32.mrf.mxu0
  %v4894 = vadd.f32 %v4834, %v4893
  %4895 = vmatmul.bf16.gmra.mxu0 %v4858
  %v4896 = vpop.f32.mrf.mxu0
  %v4897 = vadd.f32 %v4834, %v4896
  %v4898 = vpop.f32.mrf.mxu0
  %v4899 = vadd.f32 %v4834, %v4898
  %4900 = vmatmul.bf16.gmra.mxu0 %v4861
  %v4901 = vpop.f32.mrf.mxu0
  %v4902 = vadd.f32 %v4834, %v4901
  %v4903 = vpop.f32.mrf.mxu0
  %v4904 = vadd.f32 %v4834, %v4903
  %4905 = vmatmul.bf16.gmra.mxu0 %v4864
  %v4906 = vpop.f32.mrf.mxu0
  %v4907 = vadd.f32 %v4834, %v4906
  %v4908 = vpop.f32.mrf.mxu0
  %v4909 = vadd.f32 %v4834, %v4908
  %4910 = vmatmul.bf16.gmra.mxu0 %v4867
  %v4911 = vpop.f32.mrf.mxu0
  %v4912 = vadd.f32 %v4834, %v4911
  %v4913 = vpop.f32.mrf.mxu0
  %v4914 = vadd.f32 %v4834, %v4913
  %4915 = vmatmul.bf16.gmra.mxu0 %v4870
  %v4916 = vpop.f32.mrf.mxu0
  %v4917 = vadd.f32 %v4834, %v4916
  %v4918 = vpop.f32.mrf.mxu0
  %v4919 = vadd.f32 %v4834, %v4918
  %4920 = vdwg.mxu0
  %v4921 = vmax.f32 %v4882, 0.0
  %v4922 = vmax.f32 %v4884, 0.0
  %v4923 = vmax.f32 %v4887, 0.0
  %v4924 = vmax.f32 %v4889, 0.0
  %v4925 = vmax.f32 %v4892, 0.0
  %v4926 = vmax.f32 %v4894, 0.0
  %v4927 = vmax.f32 %v4897, 0.0
  %v4928 = vmax.f32 %v4899, 0.0
  %v4929 = vmax.f32 %v4902, 0.0
  %v4930 = vmax.f32 %v4904, 0.0
  %v4931 = vmax.f32 %v4907, 0.0
  %v4932 = vmax.f32 %v4909, 0.0
  %v4933 = vmax.f32 %v4912, 0.0
  %v4934 = vmax.f32 %v4914, 0.0
  %v4935 = vmax.f32 %v4917, 0.0
  %v4936 = vmax.f32 %v4919, 0.0
  %v4937 = vld [vmem:[%s21] sm:$0xf]
  %v4938 = vld [vmem:[%s21 + $0x4] sm:$0xf]
  %v4939 = vld [vmem:[%s21 + $0x8] sm:$0xf]
  %v4940 = vld [vmem:[%s21 + $0xc] sm:$0xf]
  %v4941 = vpack.c.bf16 %v4922, %v4921
  %v4942 = vpack.c.bf16 %v4924, %v4923
  %v4943 = vpack.c.bf16 %v4926, %v4925
  %v4944 = vpack.c.bf16 %v4928, %v4927
  %v4945 = vpack.c.bf16 %v4930, %v4929
  %v4946 = vpack.c.bf16 %v4932, %v4931
  %v4947 = vpack.c.bf16 %v4934, %v4933
  %v4948 = vpack.c.bf16 %v4936, %v4935
  %v4949 = vld [vmem:[%s22] sm:$0x1]
  %v4951 = vperm.slane %v4949, 0
  %v4957 = vunpack.c.l.b16 %v4937
  %v4958 = vunpack.c.l.b16 %v4938
  %v4959 = vunpack.c.l.b16 %v4939
  %v4960 = vunpack.c.l.b16 %v4940
  %v4961 = vpack.c.b16 %v4958, %v4957
  %v4962 = vpack.c.b16 %v4960, %v4959
  %v4966 = vsel %vm91, %v4941, 0
  %v4969 = vsel %vm91, %v4942, 0
  %v4972 = vsel %vm91, %v4943, 0
  %v4975 = vsel %vm91, %v4944, 0
  %v4978 = vsel %vm91, %v4945, 0
  %v4981 = vsel %vm91, %v4946, 0
  %v4984 = vsel %vm91, %v4947, 0
  %v4987 = vsel %vm91, %v4948, 0
  %4989 = vmatpush.bf16.msra.mxu0 0
  %4990 = vmatpush.bf16.msra.mxu0 0
  %4991 = vmatpush.bf16.msra.mxu0 0
  %4992 = vmatpush.bf16.msra.mxu0 0
  %4993 = vmatpush.bf16.msra.mxu0 0
  %4994 = vmatpush.bf16.msra.mxu0 0
  %4995 = vmatpush.bf16.msra.mxu0 %v4962
  %4996 = vmatpush.bf16.msra.mxu0 %v4961
  %4997 = vmatmul.bf16.gmra.mxu0 %v4966
  %v4998 = vpop.f32.mrf.mxu0
  %v4999 = vadd.f32 %v4951, %v4998
  %v5000 = vpop.f32.mrf.mxu0
  %v5001 = vadd.f32 %v4951, %v5000
  %5002 = vmatmul.bf16.gmra.mxu0 %v4969
  %v5003 = vpop.f32.mrf.mxu0
  %v5004 = vadd.f32 %v4951, %v5003
  %v5005 = vpop.f32.mrf.mxu0
  %v5006 = vadd.f32 %v4951, %v5005
  %5007 = vmatmul.bf16.gmra.mxu0 %v4972
  %v5008 = vpop.f32.mrf.mxu0
  %v5009 = vadd.f32 %v4951, %v5008
  %v5010 = vpop.f32.mrf.mxu0
  %v5011 = vadd.f32 %v4951, %v5010
  %5012 = vmatmul.bf16.gmra.mxu0 %v4975
  %v5013 = vpop.f32.mrf.mxu0
  %v5014 = vadd.f32 %v4951, %v5013
  %v5015 = vpop.f32.mrf.mxu0
  %v5016 = vadd.f32 %v4951, %v5015
  %5017 = vmatmul.bf16.gmra.mxu0 %v4978
  %v5018 = vpop.f32.mrf.mxu0
  %v5019 = vadd.f32 %v4951, %v5018
  %v5020 = vpop.f32.mrf.mxu0
  %v5021 = vadd.f32 %v4951, %v5020
  %5022 = vmatmul.bf16.gmra.mxu0 %v4981
  %v5023 = vpop.f32.mrf.mxu0
  %v5024 = vadd.f32 %v4951, %v5023
  %v5025 = vpop.f32.mrf.mxu0
  %v5026 = vadd.f32 %v4951, %v5025
  %5027 = vmatmul.bf16.gmra.mxu0 %v4984
  %v5028 = vpop.f32.mrf.mxu0
  %v5029 = vadd.f32 %v4951, %v5028
  %v5030 = vpop.f32.mrf.mxu0
  %v5031 = vadd.f32 %v4951, %v5030
  %5032 = vmatmul.bf16.gmra.mxu0 %v4987
  %v5033 = vpop.f32.mrf.mxu0
  %v5034 = vadd.f32 %v4951, %v5033
  %v5035 = vpop.f32.mrf.mxu0
  %v5036 = vadd.f32 %v4951, %v5035
  %5037 = vdwg.mxu0
  %5038 = vst [vmem:[%s23] sm:$0xff] %v4999
  %5039 = vst [vmem:[%s23 + $0x8] sm:$0xff] %v5001
  %5040 = vst [vmem:[%s23 + $0x10] sm:$0xff] %v5004
  %5041 = vst [vmem:[%s23 + $0x18] sm:$0xff] %v5006
  %5042 = vst [vmem:[%s23 + $0x20] sm:$0xff] %v5009
  %5043 = vst [vmem:[%s23 + $0x28] sm:$0xff] %v5011
  %5044 = vst [vmem:[%s23 + $0x30] sm:$0xff] %v5014
  %5045 = vst [vmem:[%s23 + $0x38] sm:$0xff] %v5016
  %5046 = vst [vmem:[%s23 + $0x40] sm:$0xff] %v5019
  %5047 = vst [vmem:[%s23 + $0x48] sm:$0xff] %v5021
  %5048 = vst [vmem:[%s23 + $0x50] sm:$0xff] %v5024
  %5049 = vst [vmem:[%s23 + $0x58] sm:$0xff] %v5026
  %5050 = vst [vmem:[%s23 + $0x60] sm:$0xff] %v5029
  %5051 = vst [vmem:[%s23 + $0x68] sm:$0xff] %v5031
  %5052 = vst [vmem:[%s23 + $0x70] sm:$0xff] %v5034
  %5053 = vst [vmem:[%s23 + $0x78] sm:$0xff] %v5036
  // Predicated region
  $region101: #{ggnn_forward.1} parent=0 // pred_check
    _
  $region102: #{ggnn_forward.1} parent=0 // pred_check_branch
    %5055 = sbr.rel (0) target = $region104
  $region103: #{ggnn_forward.1} parent=0 // pred_region
    _
  $region104: #{ggnn_forward.1} parent=0 // pred_fallthru
    _
  // Predicated region
  $region105: #{ggnn_forward.1} parent=0 // pred_check
    _
  $region106: #{ggnn_forward.1} parent=0 // pred_check_branch
    %5057 = sbr.rel (0) target = $region108
  $region107: #{ggnn_forward.1} parent=0 // pred_region
    _
  $region108: #{ggnn_forward.1} parent=0 // pred_fallthru
    _

</llo_original>
